<compile_context>
chip_gen: v5e
topology: v5e:2x2
jax: 0.10.0
libtpu: 0.0.40
codegen_flags: <defaults>
</compile_context>

<pallas_src>
import functools

import jax
import jax.numpy as jnp
from jax.experimental import pallas as pl
from jax.experimental.pallas import tpu as pltpu


def _leaky(v, slope):
    # LeakyReLU / PReLU(a) share the same formula.
    return jnp.where(v >= 0, v, slope * v)


# --------------------------------------------------------------------------
# Single fused Pallas kernel (B images per grid step, stacked along lanes)
# --------------------------------------------------------------------------
def _fused_kernel(x_ref,
                  w_c1m_ref, b_c1m_ref, w_b1_ref, b_b1_ref, w_b2_ref, b_b2_ref,
                  g2_ref, be2_ref, w_c2_ref, b_c2_ref, w_dn_ref,
                  masks_ref, sel_ref,
                  out_ref, down_ref,
                  *, H, W, B, relu_slope, prelu1, prelu2, eps):
    HW = H * W
    P = B * HW                      # lanes for one image-set
    bf16 = jnp.bfloat16

    def tap(img, dy, dx):
        # img[c, p] -> value at pixel offset (dy, dx), zero outside the image.
        # Images/chunks are stacked along lanes with period HW; the
        # host-precomputed border masks already encode that periodicity, so
        # lanes that would leak across an image boundary are zeroed.
        # (pltpu.roll would also work here; the shift+mask form is kept as the
        #  proven-lowering path.)
        C, Pc = img.shape
        off = dy * W + dx
        if off > 0:
            v = jnp.concatenate([img[:, off:], jnp.zeros((C, off), img.dtype)], axis=1)
        elif off < 0:
            v = jnp.concatenate([jnp.zeros((C, -off), img.dtype), img[:, :off]], axis=1)
        else:
            v = img
        if dy == 0 and dx == 0:
            return v
        i0 = (dy + 1) * 4 + (dx + 1)
        m = masks_ref[i0:i0 + 1, 0:Pc]            # (1, Pc) f32, grid-invariant
        return v * m

    def im2col(img, offs):
        # (C, Pc) -> (len(offs)^2 * C, Pc); taps in (ky, kx) row-major order,
        # matching the pre-reshaped weights; cast once to bf16 for the MXU.
        pieces = [tap(img, dy, dx) for dy in offs for dx in offs]
        return jnp.concatenate(pieces, axis=0).astype(bf16)

    def conv(w_ref, patches, b_ref=None):
        r = jnp.dot(w_ref[...], patches, preferred_element_type=jnp.float32)
        return r if b_ref is None else r + b_ref[...]

    x_img = x_ref[0]                                                  # (Cin, P) f32

    # ---- conv_1 and the 1x1 identity conv fused into ONE dot -----------------
    o_all = conv(w_c1m_ref, im2col(x_img, (-1, 0, 1)), b_c1m_ref)     # (2*Cout, P)
    Cout = o_all.shape[0] // 2
    out0, ident = o_all[:Cout], o_all[Cout:]
    C4 = Cout // 4
    o1, o2 = out0[:C4], out0[C4:2 * C4]
    o34 = jnp.concatenate([out0[2 * C4:3 * C4], out0[3 * C4:]], axis=1)   # (C4, 2P)

    # ---- HIN branches: o3 & o4 share conv1/conv2/PReLU; batched along lanes --
    t34 = _leaky(conv(w_b1_ref, im2col(o34, (-1, 0, 1)), b_b1_ref), prelu1)
    cat34 = jnp.concatenate([o34, t34], axis=0)                       # (2*C4, 2P)
    u34 = conv(w_b2_ref, im2col(cat34, (-1, 0, 1)), b_b2_ref) + o34   # conv2 + residual
    u34 = _leaky(u34, prelu2)
    out3, out4 = u34[:, :P], u34[:, P:]

    # ---- norm2: per-image instance norm (biased var, affine) on chunk 1 ------
    o1n_parts = []
    for b in range(B):                       # static B, static aligned slices
        ob = o1[:, b * HW:(b + 1) * HW]
        mu = jnp.mean(ob, axis=1, keepdims=True)
        d = ob - mu
        var = jnp.mean(d * d, axis=1, keepdims=True)
        o1n_parts.append(d * jax.lax.rsqrt(var + eps))
    o1n = o1n_parts[0] if B == 1 else jnp.concatenate(o1n_parts, axis=1)
    o1n = o1n * g2_ref[...] + be2_ref[...]

    hin = jnp.concatenate([o1n, o2, out3, out4], axis=0)              # (Cout, P)

    # ---- relu_1 -> conv_2 -> relu_2 -> + identity -----------------------------
    h = _leaky(hin, relu_slope)
    y = _leaky(conv(w_c2_ref, im2col(h, (-1, 0, 1)), b_c2_ref), relu_slope)
    out = y + ident                                                   # (Cout, P)
    out_ref[0] = out

    # ---- downsample: 4x4 / stride 2 / pad 1 / no bias -------------------------
    # Reassociated: stride-1 conv with small M first, THEN the precomputed 0/1
    # stride-2 picker.  The (Cout, P) intermediate stays f32, so the selection
    # reproduces the picked values exactly (each sel column has a single 1).
    dpatch = im2col(out, (-1, 0, 1, 2))                               # (16*Cout, P) bf16
    full = jnp.dot(w_dn_ref[...], dpatch, preferred_element_type=jnp.float32)   # (Cout, P)
    down_ref[0] = jnp.dot(full, sel_ref[...], preferred_element_type=jnp.float32)

    # TODO(synk): csff path (enc/dec inputs) and the unused `self.norm`
    # InstanceNorm2d(out_size//2) layer are not exercised by this config
    # (enc=dec=None, use_csff=False) and are omitted.


# --------------------------------------------------------------------------
# Host-side grid-invariant constants (masks + stride-2 selection)
# --------------------------------------------------------------------------
def _make_masks(B, H, W):
    # (16, 2*B*H*W) f32; row (dy+1)*4+(dx+1) is the border mask for offset
    # (dy, dx), periodic per image (period H*W), so any prefix that is a
    # multiple of H*W lanes is valid for fewer lane-stacked images/chunks.
    HW = H * W
    q = jnp.arange(2 * B * HW, dtype=jnp.int32) % HW
    x, y = q % W, q // W
    rows = []
    for dy in (-1, 0, 1, 2):
        for dx in (-1, 0, 1, 2):
            ok = (x + dx >= 0) & (x + dx < W) & (y + dy >= 0) & (y + dy < H)
            rows.append(ok.astype(jnp.float32))
    return jnp.stack(rows, axis=0)


def _make_sel(B, H, W):
    # (B*H*W, B*Ho*Wo) f32 block-diagonal stride-2 pixel picker (one 1 / col).
    HW, Ho, Wo = H * W, H // 2, W // 2
    HoWo = Ho * Wo
    r = jnp.arange(B * HW, dtype=jnp.int32)[:, None]
    c = jnp.arange(B * HoWo, dtype=jnp.int32)[None, :]
    b_r, q_r = r // HW, r % HW
    b_c, q_c = c // HoWo, c % HoWo
    src = (q_c // Wo) * (2 * W) + (q_c % Wo) * 2
    return jnp.where((b_r == b_c) & (q_r == src), 1.0, 0.0).astype(jnp.float32)


def _pick_images_per_step(n_images, hw, max_lanes):
    # Largest divisor B of N with B*HW <= max_lanes that still leaves at
    # least two grid steps (keeps both v7x TensorCores busy); B=1 if N < 2.
    best = 1
    for b in range(1, n_images // 2 + 1):
        if n_images % b == 0 and b * hw <= max_lanes:
            best = b
    return best


# --------------------------------------------------------------------------
# pallas_call wrapper (public forward keeps the PyTorch NCHW convention)
# --------------------------------------------------------------------------
_PARAM_ORDER = ("w_conv1_id", "b_conv1_id", "w_b1", "b_b1", "w_b2", "b_b2",
                "gamma2", "beta2", "w_conv_2", "b_conv_2", "w_down")


def unet_conv4_block_forward(params, x_nchw, *, relu_slope=0.2, prelu1=0.25,
                             prelu2=0.25, eps=1e-5, max_lanes=1024):
    N, Cin, H, W = x_nchw.shape
    assert H % 2 == 0 and W % 2 == 0
    Cout = params["b_conv_2"].shape[0]
    HW, Ho, Wo = H * W, H // 2, W // 2
    B = _pick_images_per_step(N, HW, max_lanes)
    G = N // B
    P, Pd = B * HW, B * Ho * Wo

    # Group B images along the lane (pixel) axis: (G, Cin, B*HW).
    # (Wrapper-side layout plumbing only; the kernel sees lane-dense slabs.)
    xg = x_nchw.reshape(G, B, Cin, HW).transpose(0, 2, 1, 3).reshape(G, Cin, P)

    masks = _make_masks(B, H, W)                  # (16, 2*P) f32, grid-invariant
    sel = _make_sel(B, H, W)                      # (P, Pd)   f32, grid-invariant
    plist = [params[k] for k in _PARAM_ORDER] + [masks, sel]

    def _const_spec(a):
        nd = a.ndim
        return pl.BlockSpec(a.shape, lambda n, _nd=nd: (0,) * _nd)

    in_specs = [pl.BlockSpec((1, Cin, P), lambda n: (n, 0, 0))]
    in_specs += [_const_spec(a) for a in plist]
    out_specs = (pl.BlockSpec((1, Cout, P), lambda n: (n, 0, 0)),
                 pl.BlockSpec((1, Cout, Pd), lambda n: (n, 0, 0)))
    out_shape = (jax.ShapeDtypeStruct((G, Cout, P), jnp.float32),
                 jax.ShapeDtypeStruct((G, Cout, Pd), jnp.float32))

    kernel = functools.partial(_fused_kernel, H=H, W=W, B=B,
                               relu_slope=relu_slope, prelu1=prelu1,
                               prelu2=prelu2, eps=eps)
    out, down = pl.pallas_call(
        kernel,
        grid=(G,),
        in_specs=in_specs,
        out_specs=out_specs,
        out_shape=out_shape,
        compiler_params=pltpu.CompilerParams(
            dimension_semantics=("parallel",),
            vmem_limit_bytes=32 * 1024 * 1024),
    )(xg, *plist)

    # Un-group back to NCHW (wrapper-side layout plumbing).
    out = out.reshape(G, Cout, B, HW).transpose(0, 2, 1, 3).reshape(N, Cout, H, W)
    down = down.reshape(G, Cout, B, Ho * Wo).transpose(0, 2, 1, 3).reshape(N, Cout, Ho, Wo)
    return down, out


# --------------------------------------------------------------------------
# Deterministic parameter construction (torch layouts) + kernel-layout prep
# --------------------------------------------------------------------------
def make_torch_params(in_size, out_size, key):
    C4 = out_size // 4
    ks = jax.random.split(key, 13)
    n = lambda k, s: 0.1 * jax.random.normal(k, s, jnp.float32)
    return {
        "conv_1.w": n(ks[0], (out_size, in_size, 3, 3)),  "conv_1.b": n(ks[1], (out_size,)),
        "conv_2.w": n(ks[2], (out_size, out_size, 3, 3)), "conv_2.b": n(ks[3], (out_size,)),
        "identity.w": n(ks[4], (out_size, in_size, 1, 1)), "identity.b": n(ks[5], (out_size,)),
        "conv1.w": n(ks[6], (C4, C4, 3, 3)),              "conv1.b": n(ks[7], (C4,)),
        "conv2.w": n(ks[8], (C4, 2 * C4, 3, 3)),          "conv2.b": n(ks[9], (C4,)),
        "norm2.g": 1.0 + n(ks[10], (C4,)),                "norm2.b": n(ks[11], (C4,)),
        "down.w": n(ks[12], (out_size, out_size, 4, 4)),
    }


def prepare_params(tp):
    # Convs -> (Cout, kh*kw*Cin) bf16 matrices (tap-major, channel-minor),
    # biases / affine params -> (C, 1) f32 columns (broadcast over lanes).
    # The 1x1 identity conv is folded into conv_1's matrix: its weights go
    # into the centre-tap columns (4*Cin..5*Cin) of an extra Cout-row block.
    def conv_mat(w_oihw):
        O, I, kh, kw = w_oihw.shape
        return jnp.transpose(w_oihw, (0, 2, 3, 1)).reshape(O, kh * kw * I).astype(jnp.bfloat16)

    col = lambda b: b.reshape(-1, 1).astype(jnp.float32)

    w1 = conv_mat(tp["conv_1.w"])                                 # (Cout, 9*Cin)
    Cout, Cin = tp["conv_1.w"].shape[0], tp["conv_1.w"].shape[1]
    wid = tp["identity.w"][:, :, 0, 0].astype(jnp.bfloat16)       # (Cout, Cin)
    wid_full = jnp.zeros((Cout, 9 * Cin), jnp.bfloat16).at[:, 4 * Cin:5 * Cin].set(wid)

    return {
        "w_conv1_id": jnp.concatenate([w1, wid_full], axis=0),            # (2*Cout, 9*Cin)
        "b_conv1_id": jnp.concatenate([col(tp["conv_1.b"]),
                                       col(tp["identity.b"])], axis=0),   # (2*Cout, 1)
        "w_b1": conv_mat(tp["conv1.w"]),      "b_b1": col(tp["conv1.b"]),
        "w_b2": conv_mat(tp["conv2.w"]),      "b_b2": col(tp["conv2.b"]),
        "gamma2": col(tp["norm2.g"]),         "beta2": col(tp["norm2.b"]),
        "w_conv_2": conv_mat(tp["conv_2.w"]), "b_conv_2": col(tp["conv_2.b"]),
        "w_down": conv_mat(tp["down.w"]),
        # TODO(synk): per-channel PReLU weights from a real checkpoint would be
        # passed here as (C, 1) columns instead of baked-in 0.25 scalars.
    }


# --------------------------------------------------------------------------
# Pure-JAX reference (PyTorch semantics).  bf16_matmul=True mimics the
# kernel's bf16 MXU operands (f32 accumulation) for a tight comparison.
# --------------------------------------------------------------------------
def _conv_ref(x, w, b=None, stride=1, pad=0, bf16_ops=False):
    if bf16_ops:
        x = x.astype(jnp.bfloat16)
        w = w.astype(jnp.bfloat16)
    out = jax.lax.conv_general_dilated(
        x, w, (stride, stride), ((pad, pad), (pad, pad)),
        dimension_numbers=("NCHW", "OIHW", "NCHW"),
        preferred_element_type=jnp.float32,
        precision=jax.lax.Precision.HIGHEST)
    if b is not None:
        out = out + b[None, :, None, None]
    return out


def reference_forward(tp, x, relu_slope, *, bf16_matmul=False):
    cv = functools.partial(_conv_ref, bf16_ops=bf16_matmul)
    out = cv(x, tp["conv_1.w"], tp["conv_1.b"], 1, 1)
    o1, o2, o3, o4 = jnp.split(out, 4, axis=1)

    def branch(o):
        t = _leaky(cv(o, tp["conv1.w"], tp["conv1.b"], 1, 1), 0.25)
        u = cv(jnp.concatenate([o, t], 1), tp["conv2.w"], tp["conv2.b"], 1, 1) + o
        return _leaky(u, 0.25)

    out3, out4 = branch(o3), branch(o4)
    mean = jnp.mean(o1, axis=(2, 3), keepdims=True)
    var = jnp.mean((o1 - mean) ** 2, axis=(2, 3), keepdims=True)
    o1n = (o1 - mean) * jax.lax.rsqrt(var + 1e-5)
    o1n = o1n * tp["norm2.g"][None, :, None, None] + tp["norm2.b"][None, :, None, None]
    out = jnp.concatenate([o1n, o2, out3, out4], axis=1)
    out = _leaky(out, relu_slope)
    out = _leaky(cv(out, tp["conv_2.w"], tp["conv_2.b"], 1, 1), relu_slope)
    out = out + cv(x, tp["identity.w"], tp["identity.b"], 1, 0)
    out_down = cv(out, tp["down.w"], None, 2, 1)
    return out_down, out


# --------------------------------------------------------------------------
if __name__ == "__main__":
    # N=4 -> 2 images per grid step (lane-dense down output, 512-lane out
    # output) and a 2-step parallel grid (both v7x TensorCores busy).
    N, in_size, out_size, H, W = 4, 8, 16, 16, 16
    relu_slope = 0.2
    key = jax.random.PRNGKey(0)
    kparam, kx = jax.random.split(key)
    torch_p = make_torch_params(in_size, out_size, kparam)
    kernel_p = prepare_params(torch_p)
    x = jax.random.normal(kx, (N, in_size, H, W), jnp.float32)   # NCHW input

    fwd = jax.jit(lambda xx: unet_conv4_block_forward(kernel_p, xx, relu_slope=relu_slope))
    out_down, out = fwd(x)
    jax.block_until_ready((out_down, out))

    assert out.shape == (N, out_size, H, W)
    assert out_down.shape == (N, out_size, H // 2, W // 2)

    # Tight check vs. a reference with matching bf16 MXU-operand rounding.
    ref_down_b, ref_out_b = reference_forward(torch_p, x, relu_slope, bf16_matmul=True)
    assert jnp.allclose(out, ref_out_b, atol=1e-2, rtol=1e-2)
    assert jnp.allclose(out_down, ref_down_b, atol=1e-2, rtol=1e-2)

    # Loose check vs. the full-f32 (HIGHEST precision) reference: differences
    # are purely bf16-operand quantization of the MXU inputs.
    ref_down_f, ref_out_f = reference_forward(torch_p, x, relu_slope, bf16_matmul=False)
    assert jnp.allclose(out, ref_out_f, atol=1e-1, rtol=1e-1)
    assert jnp.allclose(out_down, ref_down_f, atol=1e-1, rtol=1e-1)

    print("KERNEL_OK")
</pallas_src>

<mosaic_0001>
module attributes {stable_mosaic.version = 11 : i64} {
  func.func @_fused_kernel(%arg0: i32, %arg1: memref<1x8x512xf32, #tpu.memory_space<vmem>>, %arg2: memref<32x72xbf16, #tpu.memory_space<vmem>>, %arg3: memref<32x1xf32, #tpu.memory_space<vmem>>, %arg4: memref<4x36xbf16, #tpu.memory_space<vmem>>, %arg5: memref<4x1xf32, #tpu.memory_space<vmem>>, %arg6: memref<4x72xbf16, #tpu.memory_space<vmem>>, %arg7: memref<4x1xf32, #tpu.memory_space<vmem>>, %arg8: memref<4x1xf32, #tpu.memory_space<vmem>>, %arg9: memref<4x1xf32, #tpu.memory_space<vmem>>, %arg10: memref<16x144xbf16, #tpu.memory_space<vmem>>, %arg11: memref<16x1xf32, #tpu.memory_space<vmem>>, %arg12: memref<16x256xbf16, #tpu.memory_space<vmem>>, %arg13: memref<16x1024xf32, #tpu.memory_space<vmem>>, %arg14: memref<512x128xf32, #tpu.memory_space<vmem>>, %arg15: memref<1x16x512xf32, #tpu.memory_space<vmem>>, %arg16: memref<1x16x128xf32, #tpu.memory_space<vmem>>) attributes {dimension_semantics = [#tpu.dimension_semantics<parallel>], iteration_bounds = array<i64: 2>, scalar_prefetch = 0 : i64, scratch_operands = 0 : i64, tpu.core_type = #tpu.core_type<tc>, window_params = [{transform_indices = @transform_0, window_bounds = array<i64: 1, 8, 512>}, {pipeline_mode = #tpu.pipeline_mode<synchronous>, transform_indices = @transform_1, window_bounds = array<i64: 32, 72>}, {pipeline_mode = #tpu.pipeline_mode<synchronous>, transform_indices = @transform_2, window_bounds = array<i64: 32, 1>}, {pipeline_mode = #tpu.pipeline_mode<synchronous>, transform_indices = @transform_3, window_bounds = array<i64: 4, 36>}, {pipeline_mode = #tpu.pipeline_mode<synchronous>, transform_indices = @transform_4, window_bounds = array<i64: 4, 1>}, {pipeline_mode = #tpu.pipeline_mode<synchronous>, transform_indices = @transform_5, window_bounds = array<i64: 4, 72>}, {pipeline_mode = #tpu.pipeline_mode<synchronous>, transform_indices = @transform_6, window_bounds = array<i64: 4, 1>}, {pipeline_mode = #tpu.pipeline_mode<synchronous>, transform_indices = @transform_7, window_bounds = array<i64: 4, 1>}, {pipeline_mode = #tpu.pipeline_mode<synchronous>, transform_indices = @transform_8, window_bounds = array<i64: 4, 1>}, {pipeline_mode = #tpu.pipeline_mode<synchronous>, transform_indices = @transform_9, window_bounds = array<i64: 16, 144>}, {pipeline_mode = #tpu.pipeline_mode<synchronous>, transform_indices = @transform_10, window_bounds = array<i64: 16, 1>}, {pipeline_mode = #tpu.pipeline_mode<synchronous>, transform_indices = @transform_11, window_bounds = array<i64: 16, 256>}, {pipeline_mode = #tpu.pipeline_mode<synchronous>, transform_indices = @transform_12, window_bounds = array<i64: 16, 1024>}, {pipeline_mode = #tpu.pipeline_mode<synchronous>, transform_indices = @transform_13, window_bounds = array<i64: 512, 128>}, {transform_indices = @transform_14, window_bounds = array<i64: 1, 16, 512>}, {transform_indices = @transform_15, window_bounds = array<i64: 1, 16, 128>}]} {
    %c0 = arith.constant 0 : index
    %c0_0 = arith.constant 0 : index
    %c0_1 = arith.constant 0 : index
    %0 = vector.load %arg1[%c0, %c0_0, %c0_1] : memref<1x8x512xf32, #tpu.memory_space<vmem>>, vector<1x8x512xf32>
    %1 = vector.shape_cast %0 : vector<1x8x512xf32> to vector<8x512xf32>
    %cst = arith.constant 0.000000e+00 : f32
    %2 = vector.broadcast %cst : f32 to vector<8x17xf32>
    %3 = vector.extract_strided_slice %1 {offsets = [0, 0], sizes = [8, 495], strides = [1, 1]} : vector<8x512xf32> to vector<8x495xf32>
    %4 = tpu.concatenate %2, %3 in 1 : vector<8x17xf32>, vector<8x495xf32> -> vector<8x512xf32>
    %c0_2 = arith.constant 0 : index
    %c0_3 = arith.constant 0 : index
    %5 = vector.load %arg13[%c0_2, %c0_3] : memref<16x1024xf32, #tpu.memory_space<vmem>>, vector<1x512xf32>
    %6 = vector.broadcast %5 : vector<1x512xf32> to vector<8x512xf32>
    %7 = arith.mulf %4, %6 : vector<8x512xf32>
    %cst_4 = arith.constant 0.000000e+00 : f32
    %8 = vector.broadcast %cst_4 : f32 to vector<8x16xf32>
    %9 = vector.extract_strided_slice %1 {offsets = [0, 0], sizes = [8, 496], strides = [1, 1]} : vector<8x512xf32> to vector<8x496xf32>
    %10 = tpu.concatenate %8, %9 in 1 : vector<8x16xf32>, vector<8x496xf32> -> vector<8x512xf32>
    %c1 = arith.constant 1 : index
    %c0_5 = arith.constant 0 : index
    %11 = vector.load %arg13[%c1, %c0_5] : memref<16x1024xf32, #tpu.memory_space<vmem>>, vector<1x512xf32>
    %12 = vector.broadcast %11 : vector<1x512xf32> to vector<8x512xf32>
    %13 = arith.mulf %10, %12 : vector<8x512xf32>
    %cst_6 = arith.constant 0.000000e+00 : f32
    %14 = vector.broadcast %cst_6 : f32 to vector<8x15xf32>
    %15 = vector.extract_strided_slice %1 {offsets = [0, 0], sizes = [8, 497], strides = [1, 1]} : vector<8x512xf32> to vector<8x497xf32>
    %16 = tpu.concatenate %14, %15 in 1 : vector<8x15xf32>, vector<8x497xf32> -> vector<8x512xf32>
    %c2 = arith.constant 2 : index
    %c0_7 = arith.constant 0 : index
    %17 = vector.load %arg13[%c2, %c0_7] : memref<16x1024xf32, #tpu.memory_space<vmem>>, vector<1x512xf32>
    %18 = vector.broadcast %17 : vector<1x512xf32> to vector<8x512xf32>
    %19 = arith.mulf %16, %18 : vector<8x512xf32>
    %cst_8 = arith.constant 0.000000e+00 : f32
    %20 = vector.broadcast %cst_8 : f32 to vector<8x1xf32>
    %21 = vector.extract_strided_slice %1 {offsets = [0, 0], sizes = [8, 511], strides = [1, 1]} : vector<8x512xf32> to vector<8x511xf32>
    %22 = tpu.concatenate %20, %21 in 1 : vector<8x1xf32>, vector<8x511xf32> -> vector<8x512xf32>
    %c4 = arith.constant 4 : index
    %c0_9 = arith.constant 0 : index
    %23 = vector.load %arg13[%c4, %c0_9] : memref<16x1024xf32, #tpu.memory_space<vmem>>, vector<1x512xf32>
    %24 = vector.broadcast %23 : vector<1x512xf32> to vector<8x512xf32>
    %25 = arith.mulf %22, %24 : vector<8x512xf32>
    %26 = vector.extract_strided_slice %1 {offsets = [0, 1], sizes = [8, 511], strides = [1, 1]} : vector<8x512xf32> to vector<8x511xf32>
    %cst_10 = arith.constant 0.000000e+00 : f32
    %27 = vector.broadcast %cst_10 : f32 to vector<8x1xf32>
    %28 = tpu.concatenate %26, %27 in 1 : vector<8x511xf32>, vector<8x1xf32> -> vector<8x512xf32>
    %c6 = arith.constant 6 : index
    %c0_11 = arith.constant 0 : index
    %29 = vector.load %arg13[%c6, %c0_11] : memref<16x1024xf32, #tpu.memory_space<vmem>>, vector<1x512xf32>
    %30 = vector.broadcast %29 : vector<1x512xf32> to vector<8x512xf32>
    %31 = arith.mulf %28, %30 : vector<8x512xf32>
    %32 = vector.extract_strided_slice %1 {offsets = [0, 15], sizes = [8, 497], strides = [1, 1]} : vector<8x512xf32> to vector<8x497xf32>
    %cst_12 = arith.constant 0.000000e+00 : f32
    %33 = vector.broadcast %cst_12 : f32 to vector<8x15xf32>
    %34 = tpu.concatenate %32, %33 in 1 : vector<8x497xf32>, vector<8x15xf32> -> vector<8x512xf32>
    %c8 = arith.constant 8 : index
    %c0_13 = arith.constant 0 : index
    %35 = vector.load %arg13[%c8, %c0_13] : memref<16x1024xf32, #tpu.memory_space<vmem>>, vector<1x512xf32>
    %36 = vector.broadcast %35 : vector<1x512xf32> to vector<8x512xf32>
    %37 = arith.mulf %34, %36 : vector<8x512xf32>
    %38 = vector.extract_strided_slice %1 {offsets = [0, 16], sizes = [8, 496], strides = [1, 1]} : vector<8x512xf32> to vector<8x496xf32>
    %cst_14 = arith.constant 0.000000e+00 : f32
    %39 = vector.broadcast %cst_14 : f32 to vector<8x16xf32>
    %40 = tpu.concatenate %38, %39 in 1 : vector<8x496xf32>, vector<8x16xf32> -> vector<8x512xf32>
    %c9 = arith.constant 9 : index
    %c0_15 = arith.constant 0 : index
    %41 = vector.load %arg13[%c9, %c0_15] : memref<16x1024xf32, #tpu.memory_space<vmem>>, vector<1x512xf32>
    %42 = vector.broadcast %41 : vector<1x512xf32> to vector<8x512xf32>
    %43 = arith.mulf %40, %42 : vector<8x512xf32>
    %44 = vector.extract_strided_slice %1 {offsets = [0, 17], sizes = [8, 495], strides = [1, 1]} : vector<8x512xf32> to vector<8x495xf32>
    %cst_16 = arith.constant 0.000000e+00 : f32
    %45 = vector.broadcast %cst_16 : f32 to vector<8x17xf32>
    %46 = tpu.concatenate %44, %45 in 1 : vector<8x495xf32>, vector<8x17xf32> -> vector<8x512xf32>
    %c10 = arith.constant 10 : index
    %c0_17 = arith.constant 0 : index
    %47 = vector.load %arg13[%c10, %c0_17] : memref<16x1024xf32, #tpu.memory_space<vmem>>, vector<1x512xf32>
    %48 = vector.broadcast %47 : vector<1x512xf32> to vector<8x512xf32>
    %49 = arith.mulf %46, %48 : vector<8x512xf32>
    %50 = tpu.concatenate %7, %13, %19, %25, %1, %31, %37, %43, %49 in 0 : vector<8x512xf32>, vector<8x512xf32>, vector<8x512xf32>, vector<8x512xf32>, vector<8x512xf32>, vector<8x512xf32>, vector<8x512xf32>, vector<8x512xf32>, vector<8x512xf32> -> vector<72x512xf32>
    %51 = arith.truncf %50 : vector<72x512xf32> to vector<72x512xbf16>
    %c0_18 = arith.constant 0 : index
    %c0_19 = arith.constant 0 : index
    %52 = vector.load %arg2[%c0_18, %c0_19] : memref<32x72xbf16, #tpu.memory_space<vmem>>, vector<32x72xbf16>
    %cst_20 = arith.constant dense<0.000000e+00> : vector<32x512xf32>
    %53 = tpu.matmul %52, %51, %cst_20 {dimension_numbers = #tpu.dot_dimension_numbers<[1], [0], [0], [1], [0, 0, 1, 1], [], []>} : vector<32x72xbf16>, vector<72x512xbf16>, vector<32x512xf32> -> vector<32x512xf32>
    %c0_21 = arith.constant 0 : index
    %c0_22 = arith.constant 0 : index
    %54 = vector.load %arg3[%c0_21, %c0_22] : memref<32x1xf32, #tpu.memory_space<vmem>>, vector<32x1xf32>
    %55 = vector.broadcast %54 : vector<32x1xf32> to vector<32x512xf32>
    %56 = arith.addf %53, %55 : vector<32x512xf32>
    %57 = vector.extract_strided_slice %56 {offsets = [0, 0], sizes = [16, 512], strides = [1, 1]} : vector<32x512xf32> to vector<16x512xf32>
    %58 = vector.extract_strided_slice %56 {offsets = [16, 0], sizes = [16, 512], strides = [1, 1]} : vector<32x512xf32> to vector<16x512xf32>
    %59 = vector.extract_strided_slice %57 {offsets = [0, 0], sizes = [4, 512], strides = [1, 1]} : vector<16x512xf32> to vector<4x512xf32>
    %60 = vector.extract_strided_slice %57 {offsets = [4, 0], sizes = [4, 512], strides = [1, 1]} : vector<16x512xf32> to vector<4x512xf32>
    %61 = vector.extract_strided_slice %57 {offsets = [8, 0], sizes = [4, 512], strides = [1, 1]} : vector<16x512xf32> to vector<4x512xf32>
    %62 = vector.extract_strided_slice %57 {offsets = [12, 0], sizes = [4, 512], strides = [1, 1]} : vector<16x512xf32> to vector<4x512xf32>
    %63 = tpu.concatenate %61, %62 in 1 : vector<4x512xf32>, vector<4x512xf32> -> vector<4x1024xf32>
    %cst_23 = arith.constant 0.000000e+00 : f32
    %64 = vector.broadcast %cst_23 : f32 to vector<4x17xf32>
    %65 = vector.extract_strided_slice %63 {offsets = [0, 0], sizes = [4, 1007], strides = [1, 1]} : vector<4x1024xf32> to vector<4x1007xf32>
    %66 = tpu.concatenate %64, %65 in 1 : vector<4x17xf32>, vector<4x1007xf32> -> vector<4x1024xf32>
    %c0_24 = arith.constant 0 : index
    %c0_25 = arith.constant 0 : index
    %67 = vector.load %arg13[%c0_24, %c0_25] : memref<16x1024xf32, #tpu.memory_space<vmem>>, vector<1x1024xf32>
    %68 = vector.broadcast %67 : vector<1x1024xf32> to vector<4x1024xf32>
    %69 = arith.mulf %66, %68 : vector<4x1024xf32>
    %cst_26 = arith.constant 0.000000e+00 : f32
    %70 = vector.broadcast %cst_26 : f32 to vector<4x16xf32>
    %71 = vector.extract_strided_slice %63 {offsets = [0, 0], sizes = [4, 1008], strides = [1, 1]} : vector<4x1024xf32> to vector<4x1008xf32>
    %72 = tpu.concatenate %70, %71 in 1 : vector<4x16xf32>, vector<4x1008xf32> -> vector<4x1024xf32>
    %c1_27 = arith.constant 1 : index
    %c0_28 = arith.constant 0 : index
    %73 = vector.load %arg13[%c1_27, %c0_28] : memref<16x1024xf32, #tpu.memory_space<vmem>>, vector<1x1024xf32>
    %74 = vector.broadcast %73 : vector<1x1024xf32> to vector<4x1024xf32>
    %75 = arith.mulf %72, %74 : vector<4x1024xf32>
    %cst_29 = arith.constant 0.000000e+00 : f32
    %76 = vector.broadcast %cst_29 : f32 to vector<4x15xf32>
    %77 = vector.extract_strided_slice %63 {offsets = [0, 0], sizes = [4, 1009], strides = [1, 1]} : vector<4x1024xf32> to vector<4x1009xf32>
    %78 = tpu.concatenate %76, %77 in 1 : vector<4x15xf32>, vector<4x1009xf32> -> vector<4x1024xf32>
    %c2_30 = arith.constant 2 : index
    %c0_31 = arith.constant 0 : index
    %79 = vector.load %arg13[%c2_30, %c0_31] : memref<16x1024xf32, #tpu.memory_space<vmem>>, vector<1x1024xf32>
    %80 = vector.broadcast %79 : vector<1x1024xf32> to vector<4x1024xf32>
    %81 = arith.mulf %78, %80 : vector<4x1024xf32>
    %cst_32 = arith.constant 0.000000e+00 : f32
    %82 = vector.broadcast %cst_32 : f32 to vector<4x1xf32>
    %83 = vector.extract_strided_slice %63 {offsets = [0, 0], sizes = [4, 1023], strides = [1, 1]} : vector<4x1024xf32> to vector<4x1023xf32>
    %84 = tpu.concatenate %82, %83 in 1 : vector<4x1xf32>, vector<4x1023xf32> -> vector<4x1024xf32>
    %c4_33 = arith.constant 4 : index
    %c0_34 = arith.constant 0 : index
    %85 = vector.load %arg13[%c4_33, %c0_34] : memref<16x1024xf32, #tpu.memory_space<vmem>>, vector<1x1024xf32>
    %86 = vector.broadcast %85 : vector<1x1024xf32> to vector<4x1024xf32>
    %87 = arith.mulf %84, %86 : vector<4x1024xf32>
    %88 = vector.extract_strided_slice %63 {offsets = [0, 1], sizes = [4, 1023], strides = [1, 1]} : vector<4x1024xf32> to vector<4x1023xf32>
    %cst_35 = arith.constant 0.000000e+00 : f32
    %89 = vector.broadcast %cst_35 : f32 to vector<4x1xf32>
    %90 = tpu.concatenate %88, %89 in 1 : vector<4x1023xf32>, vector<4x1xf32> -> vector<4x1024xf32>
    %c6_36 = arith.constant 6 : index
    %c0_37 = arith.constant 0 : index
    %91 = vector.load %arg13[%c6_36, %c0_37] : memref<16x1024xf32, #tpu.memory_space<vmem>>, vector<1x1024xf32>
    %92 = vector.broadcast %91 : vector<1x1024xf32> to vector<4x1024xf32>
    %93 = arith.mulf %90, %92 : vector<4x1024xf32>
    %94 = vector.extract_strided_slice %63 {offsets = [0, 15], sizes = [4, 1009], strides = [1, 1]} : vector<4x1024xf32> to vector<4x1009xf32>
    %cst_38 = arith.constant 0.000000e+00 : f32
    %95 = vector.broadcast %cst_38 : f32 to vector<4x15xf32>
    %96 = tpu.concatenate %94, %95 in 1 : vector<4x1009xf32>, vector<4x15xf32> -> vector<4x1024xf32>
    %c8_39 = arith.constant 8 : index
    %c0_40 = arith.constant 0 : index
    %97 = vector.load %arg13[%c8_39, %c0_40] : memref<16x1024xf32, #tpu.memory_space<vmem>>, vector<1x1024xf32>
    %98 = vector.broadcast %97 : vector<1x1024xf32> to vector<4x1024xf32>
    %99 = arith.mulf %96, %98 : vector<4x1024xf32>
    %100 = vector.extract_strided_slice %63 {offsets = [0, 16], sizes = [4, 1008], strides = [1, 1]} : vector<4x1024xf32> to vector<4x1008xf32>
    %cst_41 = arith.constant 0.000000e+00 : f32
    %101 = vector.broadcast %cst_41 : f32 to vector<4x16xf32>
    %102 = tpu.concatenate %100, %101 in 1 : vector<4x1008xf32>, vector<4x16xf32> -> vector<4x1024xf32>
    %c9_42 = arith.constant 9 : index
    %c0_43 = arith.constant 0 : index
    %103 = vector.load %arg13[%c9_42, %c0_43] : memref<16x1024xf32, #tpu.memory_space<vmem>>, vector<1x1024xf32>
    %104 = vector.broadcast %103 : vector<1x1024xf32> to vector<4x1024xf32>
    %105 = arith.mulf %102, %104 : vector<4x1024xf32>
    %106 = vector.extract_strided_slice %63 {offsets = [0, 17], sizes = [4, 1007], strides = [1, 1]} : vector<4x1024xf32> to vector<4x1007xf32>
    %cst_44 = arith.constant 0.000000e+00 : f32
    %107 = vector.broadcast %cst_44 : f32 to vector<4x17xf32>
    %108 = tpu.concatenate %106, %107 in 1 : vector<4x1007xf32>, vector<4x17xf32> -> vector<4x1024xf32>
    %c10_45 = arith.constant 10 : index
    %c0_46 = arith.constant 0 : index
    %109 = vector.load %arg13[%c10_45, %c0_46] : memref<16x1024xf32, #tpu.memory_space<vmem>>, vector<1x1024xf32>
    %110 = vector.broadcast %109 : vector<1x1024xf32> to vector<4x1024xf32>
    %111 = arith.mulf %108, %110 : vector<4x1024xf32>
    %112 = tpu.concatenate %69, %75, %81, %87, %63, %93, %99, %105, %111 in 0 : vector<4x1024xf32>, vector<4x1024xf32>, vector<4x1024xf32>, vector<4x1024xf32>, vector<4x1024xf32>, vector<4x1024xf32>, vector<4x1024xf32>, vector<4x1024xf32>, vector<4x1024xf32> -> vector<36x1024xf32>
    %113 = arith.truncf %112 : vector<36x1024xf32> to vector<36x1024xbf16>
    %c0_47 = arith.constant 0 : index
    %c0_48 = arith.constant 0 : index
    %114 = vector.load %arg4[%c0_47, %c0_48] : memref<4x36xbf16, #tpu.memory_space<vmem>>, vector<4x36xbf16>
    %cst_49 = arith.constant dense<0.000000e+00> : vector<4x1024xf32>
    %115 = tpu.matmul %114, %113, %cst_49 {dimension_numbers = #tpu.dot_dimension_numbers<[1], [0], [0], [1], [0, 0, 1, 1], [], []>} : vector<4x36xbf16>, vector<36x1024xbf16>, vector<4x1024xf32> -> vector<4x1024xf32>
    %c0_50 = arith.constant 0 : index
    %c0_51 = arith.constant 0 : index
    %116 = vector.load %arg5[%c0_50, %c0_51] : memref<4x1xf32, #tpu.memory_space<vmem>>, vector<4x1xf32>
    %117 = vector.broadcast %116 : vector<4x1xf32> to vector<4x1024xf32>
    %118 = arith.addf %115, %117 : vector<4x1024xf32>
    %cst_52 = arith.constant 0.000000e+00 : f32
    %119 = vector.broadcast %cst_52 : f32 to vector<4x1024xf32>
    %120 = arith.cmpf oge, %118, %119 : vector<4x1024xf32>
    %cst_53 = arith.constant 2.500000e-01 : f32
    %121 = vector.broadcast %cst_53 : f32 to vector<4x1024xf32>
    %122 = arith.mulf %121, %118 : vector<4x1024xf32>
    %123 = arith.select %120, %118, %122 : vector<4x1024xi1>, vector<4x1024xf32>
    %124 = tpu.concatenate %63, %123 in 0 : vector<4x1024xf32>, vector<4x1024xf32> -> vector<8x1024xf32>
    %cst_54 = arith.constant 0.000000e+00 : f32
    %125 = vector.broadcast %cst_54 : f32 to vector<8x17xf32>
    %126 = vector.extract_strided_slice %124 {offsets = [0, 0], sizes = [8, 1007], strides = [1, 1]} : vector<8x1024xf32> to vector<8x1007xf32>
    %127 = tpu.concatenate %125, %126 in 1 : vector<8x17xf32>, vector<8x1007xf32> -> vector<8x1024xf32>
    %c0_55 = arith.constant 0 : index
    %c0_56 = arith.constant 0 : index
    %128 = vector.load %arg13[%c0_55, %c0_56] : memref<16x1024xf32, #tpu.memory_space<vmem>>, vector<1x1024xf32>
    %129 = vector.broadcast %128 : vector<1x1024xf32> to vector<8x1024xf32>
    %130 = arith.mulf %127, %129 : vector<8x1024xf32>
    %cst_57 = arith.constant 0.000000e+00 : f32
    %131 = vector.broadcast %cst_57 : f32 to vector<8x16xf32>
    %132 = vector.extract_strided_slice %124 {offsets = [0, 0], sizes = [8, 1008], strides = [1, 1]} : vector<8x1024xf32> to vector<8x1008xf32>
    %133 = tpu.concatenate %131, %132 in 1 : vector<8x16xf32>, vector<8x1008xf32> -> vector<8x1024xf32>
    %c1_58 = arith.constant 1 : index
    %c0_59 = arith.constant 0 : index
    %134 = vector.load %arg13[%c1_58, %c0_59] : memref<16x1024xf32, #tpu.memory_space<vmem>>, vector<1x1024xf32>
    %135 = vector.broadcast %134 : vector<1x1024xf32> to vector<8x1024xf32>
    %136 = arith.mulf %133, %135 : vector<8x1024xf32>
    %cst_60 = arith.constant 0.000000e+00 : f32
    %137 = vector.broadcast %cst_60 : f32 to vector<8x15xf32>
    %138 = vector.extract_strided_slice %124 {offsets = [0, 0], sizes = [8, 1009], strides = [1, 1]} : vector<8x1024xf32> to vector<8x1009xf32>
    %139 = tpu.concatenate %137, %138 in 1 : vector<8x15xf32>, vector<8x1009xf32> -> vector<8x1024xf32>
    %c2_61 = arith.constant 2 : index
    %c0_62 = arith.constant 0 : index
    %140 = vector.load %arg13[%c2_61, %c0_62] : memref<16x1024xf32, #tpu.memory_space<vmem>>, vector<1x1024xf32>
    %141 = vector.broadcast %140 : vector<1x1024xf32> to vector<8x1024xf32>
    %142 = arith.mulf %139, %141 : vector<8x1024xf32>
    %cst_63 = arith.constant 0.000000e+00 : f32
    %143 = vector.broadcast %cst_63 : f32 to vector<8x1xf32>
    %144 = vector.extract_strided_slice %124 {offsets = [0, 0], sizes = [8, 1023], strides = [1, 1]} : vector<8x1024xf32> to vector<8x1023xf32>
    %145 = tpu.concatenate %143, %144 in 1 : vector<8x1xf32>, vector<8x1023xf32> -> vector<8x1024xf32>
    %c4_64 = arith.constant 4 : index
    %c0_65 = arith.constant 0 : index
    %146 = vector.load %arg13[%c4_64, %c0_65] : memref<16x1024xf32, #tpu.memory_space<vmem>>, vector<1x1024xf32>
    %147 = vector.broadcast %146 : vector<1x1024xf32> to vector<8x1024xf32>
    %148 = arith.mulf %145, %147 : vector<8x1024xf32>
    %149 = vector.extract_strided_slice %124 {offsets = [0, 1], sizes = [8, 1023], strides = [1, 1]} : vector<8x1024xf32> to vector<8x1023xf32>
    %cst_66 = arith.constant 0.000000e+00 : f32
    %150 = vector.broadcast %cst_66 : f32 to vector<8x1xf32>
    %151 = tpu.concatenate %149, %150 in 1 : vector<8x1023xf32>, vector<8x1xf32> -> vector<8x1024xf32>
    %c6_67 = arith.constant 6 : index
    %c0_68 = arith.constant 0 : index
    %152 = vector.load %arg13[%c6_67, %c0_68] : memref<16x1024xf32, #tpu.memory_space<vmem>>, vector<1x1024xf32>
    %153 = vector.broadcast %152 : vector<1x1024xf32> to vector<8x1024xf32>
    %154 = arith.mulf %151, %153 : vector<8x1024xf32>
    %155 = vector.extract_strided_slice %124 {offsets = [0, 15], sizes = [8, 1009], strides = [1, 1]} : vector<8x1024xf32> to vector<8x1009xf32>
    %cst_69 = arith.constant 0.000000e+00 : f32
    %156 = vector.broadcast %cst_69 : f32 to vector<8x15xf32>
    %157 = tpu.concatenate %155, %156 in 1 : vector<8x1009xf32>, vector<8x15xf32> -> vector<8x1024xf32>
    %c8_70 = arith.constant 8 : index
    %c0_71 = arith.constant 0 : index
    %158 = vector.load %arg13[%c8_70, %c0_71] : memref<16x1024xf32, #tpu.memory_space<vmem>>, vector<1x1024xf32>
    %159 = vector.broadcast %158 : vector<1x1024xf32> to vector<8x1024xf32>
    %160 = arith.mulf %157, %159 : vector<8x1024xf32>
    %161 = vector.extract_strided_slice %124 {offsets = [0, 16], sizes = [8, 1008], strides = [1, 1]} : vector<8x1024xf32> to vector<8x1008xf32>
    %cst_72 = arith.constant 0.000000e+00 : f32
    %162 = vector.broadcast %cst_72 : f32 to vector<8x16xf32>
    %163 = tpu.concatenate %161, %162 in 1 : vector<8x1008xf32>, vector<8x16xf32> -> vector<8x1024xf32>
    %c9_73 = arith.constant 9 : index
    %c0_74 = arith.constant 0 : index
    %164 = vector.load %arg13[%c9_73, %c0_74] : memref<16x1024xf32, #tpu.memory_space<vmem>>, vector<1x1024xf32>
    %165 = vector.broadcast %164 : vector<1x1024xf32> to vector<8x1024xf32>
    %166 = arith.mulf %163, %165 : vector<8x1024xf32>
    %167 = vector.extract_strided_slice %124 {offsets = [0, 17], sizes = [8, 1007], strides = [1, 1]} : vector<8x1024xf32> to vector<8x1007xf32>
    %cst_75 = arith.constant 0.000000e+00 : f32
    %168 = vector.broadcast %cst_75 : f32 to vector<8x17xf32>
    %169 = tpu.concatenate %167, %168 in 1 : vector<8x1007xf32>, vector<8x17xf32> -> vector<8x1024xf32>
    %c10_76 = arith.constant 10 : index
    %c0_77 = arith.constant 0 : index
    %170 = vector.load %arg13[%c10_76, %c0_77] : memref<16x1024xf32, #tpu.memory_space<vmem>>, vector<1x1024xf32>
    %171 = vector.broadcast %170 : vector<1x1024xf32> to vector<8x1024xf32>
    %172 = arith.mulf %169, %171 : vector<8x1024xf32>
    %173 = tpu.concatenate %130, %136, %142, %148, %124, %154, %160, %166, %172 in 0 : vector<8x1024xf32>, vector<8x1024xf32>, vector<8x1024xf32>, vector<8x1024xf32>, vector<8x1024xf32>, vector<8x1024xf32>, vector<8x1024xf32>, vector<8x1024xf32>, vector<8x1024xf32> -> vector<72x1024xf32>
    %174 = arith.truncf %173 : vector<72x1024xf32> to vector<72x1024xbf16>
    %c0_78 = arith.constant 0 : index
    %c0_79 = arith.constant 0 : index
    %175 = vector.load %arg6[%c0_78, %c0_79] : memref<4x72xbf16, #tpu.memory_space<vmem>>, vector<4x72xbf16>
    %cst_80 = arith.constant dense<0.000000e+00> : vector<4x1024xf32>
    %176 = tpu.matmul %175, %174, %cst_80 {dimension_numbers = #tpu.dot_dimension_numbers<[1], [0], [0], [1], [0, 0, 1, 1], [], []>} : vector<4x72xbf16>, vector<72x1024xbf16>, vector<4x1024xf32> -> vector<4x1024xf32>
    %c0_81 = arith.constant 0 : index
    %c0_82 = arith.constant 0 : index
    %177 = vector.load %arg7[%c0_81, %c0_82] : memref<4x1xf32, #tpu.memory_space<vmem>>, vector<4x1xf32>
    %178 = vector.broadcast %177 : vector<4x1xf32> to vector<4x1024xf32>
    %179 = arith.addf %176, %178 : vector<4x1024xf32>
    %180 = arith.addf %179, %63 : vector<4x1024xf32>
    %cst_83 = arith.constant 0.000000e+00 : f32
    %181 = vector.broadcast %cst_83 : f32 to vector<4x1024xf32>
    %182 = arith.cmpf oge, %180, %181 : vector<4x1024xf32>
    %cst_84 = arith.constant 2.500000e-01 : f32
    %183 = vector.broadcast %cst_84 : f32 to vector<4x1024xf32>
    %184 = arith.mulf %183, %180 : vector<4x1024xf32>
    %185 = arith.select %182, %180, %184 : vector<4x1024xi1>, vector<4x1024xf32>
    %186 = vector.extract_strided_slice %185 {offsets = [0, 0], sizes = [4, 512], strides = [1, 1]} : vector<4x1024xf32> to vector<4x512xf32>
    %187 = vector.extract_strided_slice %185 {offsets = [0, 512], sizes = [4, 512], strides = [1, 1]} : vector<4x1024xf32> to vector<4x512xf32>
    %188 = vector.extract_strided_slice %59 {offsets = [0, 0], sizes = [4, 256], strides = [1, 1]} : vector<4x512xf32> to vector<4x256xf32>
    %cst_85 = arith.constant dense<0.000000e+00> : vector<4xf32>
    %189 = vector.multi_reduction <add>, %188, %cst_85 [1] : vector<4x256xf32> to vector<4xf32>
    %190 = vector.shape_cast %189 : vector<4xf32> to vector<4x1xf32>
    %cst_86 = arith.constant 2.560000e+02 : f32
    %191 = vector.broadcast %cst_86 : f32 to vector<4x1xf32>
    %192 = arith.divf %190, %191 : vector<4x1xf32>
    %193 = vector.broadcast %192 : vector<4x1xf32> to vector<4x256xf32>
    %194 = arith.subf %188, %193 : vector<4x256xf32>
    %195 = arith.mulf %194, %194 : vector<4x256xf32>
    %cst_87 = arith.constant dense<0.000000e+00> : vector<4xf32>
    %196 = vector.multi_reduction <add>, %195, %cst_87 [1] : vector<4x256xf32> to vector<4xf32>
    %197 = vector.shape_cast %196 : vector<4xf32> to vector<4x1xf32>
    %cst_88 = arith.constant 2.560000e+02 : f32
    %198 = vector.broadcast %cst_88 : f32 to vector<4x1xf32>
    %199 = arith.divf %197, %198 : vector<4x1xf32>
    %cst_89 = arith.constant 9.99999974E-6 : f32
    %200 = vector.broadcast %cst_89 : f32 to vector<4x1xf32>
    %201 = arith.addf %199, %200 : vector<4x1xf32>
    %202 = math.rsqrt %201 : vector<4x1xf32>
    %203 = vector.broadcast %202 : vector<4x1xf32> to vector<4x256xf32>
    %204 = arith.mulf %194, %203 : vector<4x256xf32>
    %205 = vector.extract_strided_slice %59 {offsets = [0, 256], sizes = [4, 256], strides = [1, 1]} : vector<4x512xf32> to vector<4x256xf32>
    %cst_90 = arith.constant dense<0.000000e+00> : vector<4xf32>
    %206 = vector.multi_reduction <add>, %205, %cst_90 [1] : vector<4x256xf32> to vector<4xf32>
    %207 = vector.shape_cast %206 : vector<4xf32> to vector<4x1xf32>
    %cst_91 = arith.constant 2.560000e+02 : f32
    %208 = vector.broadcast %cst_91 : f32 to vector<4x1xf32>
    %209 = arith.divf %207, %208 : vector<4x1xf32>
    %210 = vector.broadcast %209 : vector<4x1xf32> to vector<4x256xf32>
    %211 = arith.subf %205, %210 : vector<4x256xf32>
    %212 = arith.mulf %211, %211 : vector<4x256xf32>
    %cst_92 = arith.constant dense<0.000000e+00> : vector<4xf32>
    %213 = vector.multi_reduction <add>, %212, %cst_92 [1] : vector<4x256xf32> to vector<4xf32>
    %214 = vector.shape_cast %213 : vector<4xf32> to vector<4x1xf32>
    %cst_93 = arith.constant 2.560000e+02 : f32
    %215 = vector.broadcast %cst_93 : f32 to vector<4x1xf32>
    %216 = arith.divf %214, %215 : vector<4x1xf32>
    %cst_94 = arith.constant 9.99999974E-6 : f32
    %217 = vector.broadcast %cst_94 : f32 to vector<4x1xf32>
    %218 = arith.addf %216, %217 : vector<4x1xf32>
    %219 = math.rsqrt %218 : vector<4x1xf32>
    %220 = vector.broadcast %219 : vector<4x1xf32> to vector<4x256xf32>
    %221 = arith.mulf %211, %220 : vector<4x256xf32>
    %222 = tpu.concatenate %204, %221 in 1 : vector<4x256xf32>, vector<4x256xf32> -> vector<4x512xf32>
    %c0_95 = arith.constant 0 : index
    %c0_96 = arith.constant 0 : index
    %223 = vector.load %arg8[%c0_95, %c0_96] : memref<4x1xf32, #tpu.memory_space<vmem>>, vector<4x1xf32>
    %224 = vector.broadcast %223 : vector<4x1xf32> to vector<4x512xf32>
    %225 = arith.mulf %222, %224 : vector<4x512xf32>
    %c0_97 = arith.constant 0 : index
    %c0_98 = arith.constant 0 : index
    %226 = vector.load %arg9[%c0_97, %c0_98] : memref<4x1xf32, #tpu.memory_space<vmem>>, vector<4x1xf32>
    %227 = vector.broadcast %226 : vector<4x1xf32> to vector<4x512xf32>
    %228 = arith.addf %225, %227 : vector<4x512xf32>
    %229 = tpu.concatenate %228, %60, %186, %187 in 0 : vector<4x512xf32>, vector<4x512xf32>, vector<4x512xf32>, vector<4x512xf32> -> vector<16x512xf32>
    %cst_99 = arith.constant 0.000000e+00 : f32
    %230 = vector.broadcast %cst_99 : f32 to vector<16x512xf32>
    %231 = arith.cmpf oge, %229, %230 : vector<16x512xf32>
    %cst_100 = arith.constant 2.000000e-01 : f32
    %232 = vector.broadcast %cst_100 : f32 to vector<16x512xf32>
    %233 = arith.mulf %232, %229 : vector<16x512xf32>
    %234 = arith.select %231, %229, %233 : vector<16x512xi1>, vector<16x512xf32>
    %cst_101 = arith.constant 0.000000e+00 : f32
    %235 = vector.broadcast %cst_101 : f32 to vector<16x17xf32>
    %236 = vector.extract_strided_slice %234 {offsets = [0, 0], sizes = [16, 495], strides = [1, 1]} : vector<16x512xf32> to vector<16x495xf32>
    %237 = tpu.concatenate %235, %236 in 1 : vector<16x17xf32>, vector<16x495xf32> -> vector<16x512xf32>
    %c0_102 = arith.constant 0 : index
    %c0_103 = arith.constant 0 : index
    %238 = vector.load %arg13[%c0_102, %c0_103] : memref<16x1024xf32, #tpu.memory_space<vmem>>, vector<1x512xf32>
    %239 = vector.broadcast %238 : vector<1x512xf32> to vector<16x512xf32>
    %240 = arith.mulf %237, %239 : vector<16x512xf32>
    %cst_104 = arith.constant 0.000000e+00 : f32
    %241 = vector.broadcast %cst_104 : f32 to vector<16x16xf32>
    %242 = vector.extract_strided_slice %234 {offsets = [0, 0], sizes = [16, 496], strides = [1, 1]} : vector<16x512xf32> to vector<16x496xf32>
    %243 = tpu.concatenate %241, %242 in 1 : vector<16x16xf32>, vector<16x496xf32> -> vector<16x512xf32>
    %c1_105 = arith.constant 1 : index
    %c0_106 = arith.constant 0 : index
    %244 = vector.load %arg13[%c1_105, %c0_106] : memref<16x1024xf32, #tpu.memory_space<vmem>>, vector<1x512xf32>
    %245 = vector.broadcast %244 : vector<1x512xf32> to vector<16x512xf32>
    %246 = arith.mulf %243, %245 : vector<16x512xf32>
    %cst_107 = arith.constant 0.000000e+00 : f32
    %247 = vector.broadcast %cst_107 : f32 to vector<16x15xf32>
    %248 = vector.extract_strided_slice %234 {offsets = [0, 0], sizes = [16, 497], strides = [1, 1]} : vector<16x512xf32> to vector<16x497xf32>
    %249 = tpu.concatenate %247, %248 in 1 : vector<16x15xf32>, vector<16x497xf32> -> vector<16x512xf32>
    %c2_108 = arith.constant 2 : index
    %c0_109 = arith.constant 0 : index
    %250 = vector.load %arg13[%c2_108, %c0_109] : memref<16x1024xf32, #tpu.memory_space<vmem>>, vector<1x512xf32>
    %251 = vector.broadcast %250 : vector<1x512xf32> to vector<16x512xf32>
    %252 = arith.mulf %249, %251 : vector<16x512xf32>
    %cst_110 = arith.constant 0.000000e+00 : f32
    %253 = vector.broadcast %cst_110 : f32 to vector<16x1xf32>
    %254 = vector.extract_strided_slice %234 {offsets = [0, 0], sizes = [16, 511], strides = [1, 1]} : vector<16x512xf32> to vector<16x511xf32>
    %255 = tpu.concatenate %253, %254 in 1 : vector<16x1xf32>, vector<16x511xf32> -> vector<16x512xf32>
    %c4_111 = arith.constant 4 : index
    %c0_112 = arith.constant 0 : index
    %256 = vector.load %arg13[%c4_111, %c0_112] : memref<16x1024xf32, #tpu.memory_space<vmem>>, vector<1x512xf32>
    %257 = vector.broadcast %256 : vector<1x512xf32> to vector<16x512xf32>
    %258 = arith.mulf %255, %257 : vector<16x512xf32>
    %259 = vector.extract_strided_slice %234 {offsets = [0, 1], sizes = [16, 511], strides = [1, 1]} : vector<16x512xf32> to vector<16x511xf32>
    %cst_113 = arith.constant 0.000000e+00 : f32
    %260 = vector.broadcast %cst_113 : f32 to vector<16x1xf32>
    %261 = tpu.concatenate %259, %260 in 1 : vector<16x511xf32>, vector<16x1xf32> -> vector<16x512xf32>
    %c6_114 = arith.constant 6 : index
    %c0_115 = arith.constant 0 : index
    %262 = vector.load %arg13[%c6_114, %c0_115] : memref<16x1024xf32, #tpu.memory_space<vmem>>, vector<1x512xf32>
    %263 = vector.broadcast %262 : vector<1x512xf32> to vector<16x512xf32>
    %264 = arith.mulf %261, %263 : vector<16x512xf32>
    %265 = vector.extract_strided_slice %234 {offsets = [0, 15], sizes = [16, 497], strides = [1, 1]} : vector<16x512xf32> to vector<16x497xf32>
    %cst_116 = arith.constant 0.000000e+00 : f32
    %266 = vector.broadcast %cst_116 : f32 to vector<16x15xf32>
    %267 = tpu.concatenate %265, %266 in 1 : vector<16x497xf32>, vector<16x15xf32> -> vector<16x512xf32>
    %c8_117 = arith.constant 8 : index
    %c0_118 = arith.constant 0 : index
    %268 = vector.load %arg13[%c8_117, %c0_118] : memref<16x1024xf32, #tpu.memory_space<vmem>>, vector<1x512xf32>
    %269 = vector.broadcast %268 : vector<1x512xf32> to vector<16x512xf32>
    %270 = arith.mulf %267, %269 : vector<16x512xf32>
    %271 = vector.extract_strided_slice %234 {offsets = [0, 16], sizes = [16, 496], strides = [1, 1]} : vector<16x512xf32> to vector<16x496xf32>
    %cst_119 = arith.constant 0.000000e+00 : f32
    %272 = vector.broadcast %cst_119 : f32 to vector<16x16xf32>
    %273 = tpu.concatenate %271, %272 in 1 : vector<16x496xf32>, vector<16x16xf32> -> vector<16x512xf32>
    %c9_120 = arith.constant 9 : index
    %c0_121 = arith.constant 0 : index
    %274 = vector.load %arg13[%c9_120, %c0_121] : memref<16x1024xf32, #tpu.memory_space<vmem>>, vector<1x512xf32>
    %275 = vector.broadcast %274 : vector<1x512xf32> to vector<16x512xf32>
    %276 = arith.mulf %273, %275 : vector<16x512xf32>
    %277 = vector.extract_strided_slice %234 {offsets = [0, 17], sizes = [16, 495], strides = [1, 1]} : vector<16x512xf32> to vector<16x495xf32>
    %cst_122 = arith.constant 0.000000e+00 : f32
    %278 = vector.broadcast %cst_122 : f32 to vector<16x17xf32>
    %279 = tpu.concatenate %277, %278 in 1 : vector<16x495xf32>, vector<16x17xf32> -> vector<16x512xf32>
    %c10_123 = arith.constant 10 : index
    %c0_124 = arith.constant 0 : index
    %280 = vector.load %arg13[%c10_123, %c0_124] : memref<16x1024xf32, #tpu.memory_space<vmem>>, vector<1x512xf32>
    %281 = vector.broadcast %280 : vector<1x512xf32> to vector<16x512xf32>
    %282 = arith.mulf %279, %281 : vector<16x512xf32>
    %283 = tpu.concatenate %240, %246, %252, %258, %234, %264, %270, %276, %282 in 0 : vector<16x512xf32>, vector<16x512xf32>, vector<16x512xf32>, vector<16x512xf32>, vector<16x512xf32>, vector<16x512xf32>, vector<16x512xf32>, vector<16x512xf32>, vector<16x512xf32> -> vector<144x512xf32>
    %284 = arith.truncf %283 : vector<144x512xf32> to vector<144x512xbf16>
    %c0_125 = arith.constant 0 : index
    %c0_126 = arith.constant 0 : index
    %285 = vector.load %arg10[%c0_125, %c0_126] : memref<16x144xbf16, #tpu.memory_space<vmem>>, vector<16x144xbf16>
    %cst_127 = arith.constant dense<0.000000e+00> : vector<16x512xf32>
    %286 = tpu.matmul %285, %284, %cst_127 {dimension_numbers = #tpu.dot_dimension_numbers<[1], [0], [0], [1], [0, 0, 1, 1], [], []>} : vector<16x144xbf16>, vector<144x512xbf16>, vector<16x512xf32> -> vector<16x512xf32>
    %c0_128 = arith.constant 0 : index
    %c0_129 = arith.constant 0 : index
    %287 = vector.load %arg11[%c0_128, %c0_129] : memref<16x1xf32, #tpu.memory_space<vmem>>, vector<16x1xf32>
    %288 = vector.broadcast %287 : vector<16x1xf32> to vector<16x512xf32>
    %289 = arith.addf %286, %288 : vector<16x512xf32>
    %cst_130 = arith.constant 0.000000e+00 : f32
    %290 = vector.broadcast %cst_130 : f32 to vector<16x512xf32>
    %291 = arith.cmpf oge, %289, %290 : vector<16x512xf32>
    %cst_131 = arith.constant 2.000000e-01 : f32
    %292 = vector.broadcast %cst_131 : f32 to vector<16x512xf32>
    %293 = arith.mulf %292, %289 : vector<16x512xf32>
    %294 = arith.select %291, %289, %293 : vector<16x512xi1>, vector<16x512xf32>
    %295 = arith.addf %294, %58 : vector<16x512xf32>
    %c0_132 = arith.constant 0 : index
    %c0_133 = arith.constant 0 : index
    %c0_134 = arith.constant 0 : index
    %296 = vector.load %arg15[%c0_132, %c0_133, %c0_134] : memref<1x16x512xf32, #tpu.memory_space<vmem>>, vector<1x16x512xf32>
    %297 = vector.shape_cast %296 : vector<1x16x512xf32> to vector<16x512xf32>
    %298 = vector.shape_cast %295 : vector<16x512xf32> to vector<1x16x512xf32>
    tpu.vector_store %arg15[%c0_132, %c0_133, %c0_134], %298 {strides = array<i32>} : memref<1x16x512xf32, #tpu.memory_space<vmem>>, vector<1x16x512xf32>,
    %cst_135 = arith.constant 0.000000e+00 : f32
    %299 = vector.broadcast %cst_135 : f32 to vector<16x17xf32>
    %300 = vector.extract_strided_slice %295 {offsets = [0, 0], sizes = [16, 495], strides = [1, 1]} : vector<16x512xf32> to vector<16x495xf32>
    %301 = tpu.concatenate %299, %300 in 1 : vector<16x17xf32>, vector<16x495xf32> -> vector<16x512xf32>
    %c0_136 = arith.constant 0 : index
    %c0_137 = arith.constant 0 : index
    %302 = vector.load %arg13[%c0_136, %c0_137] : memref<16x1024xf32, #tpu.memory_space<vmem>>, vector<1x512xf32>
    %303 = vector.broadcast %302 : vector<1x512xf32> to vector<16x512xf32>
    %304 = arith.mulf %301, %303 : vector<16x512xf32>
    %cst_138 = arith.constant 0.000000e+00 : f32
    %305 = vector.broadcast %cst_138 : f32 to vector<16x16xf32>
    %306 = vector.extract_strided_slice %295 {offsets = [0, 0], sizes = [16, 496], strides = [1, 1]} : vector<16x512xf32> to vector<16x496xf32>
    %307 = tpu.concatenate %305, %306 in 1 : vector<16x16xf32>, vector<16x496xf32> -> vector<16x512xf32>
    %c1_139 = arith.constant 1 : index
    %c0_140 = arith.constant 0 : index
    %308 = vector.load %arg13[%c1_139, %c0_140] : memref<16x1024xf32, #tpu.memory_space<vmem>>, vector<1x512xf32>
    %309 = vector.broadcast %308 : vector<1x512xf32> to vector<16x512xf32>
    %310 = arith.mulf %307, %309 : vector<16x512xf32>
    %cst_141 = arith.constant 0.000000e+00 : f32
    %311 = vector.broadcast %cst_141 : f32 to vector<16x15xf32>
    %312 = vector.extract_strided_slice %295 {offsets = [0, 0], sizes = [16, 497], strides = [1, 1]} : vector<16x512xf32> to vector<16x497xf32>
    %313 = tpu.concatenate %311, %312 in 1 : vector<16x15xf32>, vector<16x497xf32> -> vector<16x512xf32>
    %c2_142 = arith.constant 2 : index
    %c0_143 = arith.constant 0 : index
    %314 = vector.load %arg13[%c2_142, %c0_143] : memref<16x1024xf32, #tpu.memory_space<vmem>>, vector<1x512xf32>
    %315 = vector.broadcast %314 : vector<1x512xf32> to vector<16x512xf32>
    %316 = arith.mulf %313, %315 : vector<16x512xf32>
    %cst_144 = arith.constant 0.000000e+00 : f32
    %317 = vector.broadcast %cst_144 : f32 to vector<16x14xf32>
    %318 = vector.extract_strided_slice %295 {offsets = [0, 0], sizes = [16, 498], strides = [1, 1]} : vector<16x512xf32> to vector<16x498xf32>
    %319 = tpu.concatenate %317, %318 in 1 : vector<16x14xf32>, vector<16x498xf32> -> vector<16x512xf32>
    %c3 = arith.constant 3 : index
    %c0_145 = arith.constant 0 : index
    %320 = vector.load %arg13[%c3, %c0_145] : memref<16x1024xf32, #tpu.memory_space<vmem>>, vector<1x512xf32>
    %321 = vector.broadcast %320 : vector<1x512xf32> to vector<16x512xf32>
    %322 = arith.mulf %319, %321 : vector<16x512xf32>
    %cst_146 = arith.constant 0.000000e+00 : f32
    %323 = vector.broadcast %cst_146 : f32 to vector<16x1xf32>
    %324 = vector.extract_strided_slice %295 {offsets = [0, 0], sizes = [16, 511], strides = [1, 1]} : vector<16x512xf32> to vector<16x511xf32>
    %325 = tpu.concatenate %323, %324 in 1 : vector<16x1xf32>, vector<16x511xf32> -> vector<16x512xf32>
    %c4_147 = arith.constant 4 : index
    %c0_148 = arith.constant 0 : index
    %326 = vector.load %arg13[%c4_147, %c0_148] : memref<16x1024xf32, #tpu.memory_space<vmem>>, vector<1x512xf32>
    %327 = vector.broadcast %326 : vector<1x512xf32> to vector<16x512xf32>
    %328 = arith.mulf %325, %327 : vector<16x512xf32>
    %329 = vector.extract_strided_slice %295 {offsets = [0, 1], sizes = [16, 511], strides = [1, 1]} : vector<16x512xf32> to vector<16x511xf32>
    %cst_149 = arith.constant 0.000000e+00 : f32
    %330 = vector.broadcast %cst_149 : f32 to vector<16x1xf32>
    %331 = tpu.concatenate %329, %330 in 1 : vector<16x511xf32>, vector<16x1xf32> -> vector<16x512xf32>
    %c6_150 = arith.constant 6 : index
    %c0_151 = arith.constant 0 : index
    %332 = vector.load %arg13[%c6_150, %c0_151] : memref<16x1024xf32, #tpu.memory_space<vmem>>, vector<1x512xf32>
    %333 = vector.broadcast %332 : vector<1x512xf32> to vector<16x512xf32>
    %334 = arith.mulf %331, %333 : vector<16x512xf32>
    %335 = vector.extract_strided_slice %295 {offsets = [0, 2], sizes = [16, 510], strides = [1, 1]} : vector<16x512xf32> to vector<16x510xf32>
    %cst_152 = arith.constant 0.000000e+00 : f32
    %336 = vector.broadcast %cst_152 : f32 to vector<16x2xf32>
    %337 = tpu.concatenate %335, %336 in 1 : vector<16x510xf32>, vector<16x2xf32> -> vector<16x512xf32>
    %c7 = arith.constant 7 : index
    %c0_153 = arith.constant 0 : index
    %338 = vector.load %arg13[%c7, %c0_153] : memref<16x1024xf32, #tpu.memory_space<vmem>>, vector<1x512xf32>
    %339 = vector.broadcast %338 : vector<1x512xf32> to vector<16x512xf32>
    %340 = arith.mulf %337, %339 : vector<16x512xf32>
    %341 = vector.extract_strided_slice %295 {offsets = [0, 15], sizes = [16, 497], strides = [1, 1]} : vector<16x512xf32> to vector<16x497xf32>
    %cst_154 = arith.constant 0.000000e+00 : f32
    %342 = vector.broadcast %cst_154 : f32 to vector<16x15xf32>
    %343 = tpu.concatenate %341, %342 in 1 : vector<16x497xf32>, vector<16x15xf32> -> vector<16x512xf32>
    %c8_155 = arith.constant 8 : index
    %c0_156 = arith.constant 0 : index
    %344 = vector.load %arg13[%c8_155, %c0_156] : memref<16x1024xf32, #tpu.memory_space<vmem>>, vector<1x512xf32>
    %345 = vector.broadcast %344 : vector<1x512xf32> to vector<16x512xf32>
    %346 = arith.mulf %343, %345 : vector<16x512xf32>
    %347 = vector.extract_strided_slice %295 {offsets = [0, 16], sizes = [16, 496], strides = [1, 1]} : vector<16x512xf32> to vector<16x496xf32>
    %cst_157 = arith.constant 0.000000e+00 : f32
    %348 = vector.broadcast %cst_157 : f32 to vector<16x16xf32>
    %349 = tpu.concatenate %347, %348 in 1 : vector<16x496xf32>, vector<16x16xf32> -> vector<16x512xf32>
    %c9_158 = arith.constant 9 : index
    %c0_159 = arith.constant 0 : index
    %350 = vector.load %arg13[%c9_158, %c0_159] : memref<16x1024xf32, #tpu.memory_space<vmem>>, vector<1x512xf32>
    %351 = vector.broadcast %350 : vector<1x512xf32> to vector<16x512xf32>
    %352 = arith.mulf %349, %351 : vector<16x512xf32>
    %353 = vector.extract_strided_slice %295 {offsets = [0, 17], sizes = [16, 495], strides = [1, 1]} : vector<16x512xf32> to vector<16x495xf32>
    %cst_160 = arith.constant 0.000000e+00 : f32
    %354 = vector.broadcast %cst_160 : f32 to vector<16x17xf32>
    %355 = tpu.concatenate %353, %354 in 1 : vector<16x495xf32>, vector<16x17xf32> -> vector<16x512xf32>
    %c10_161 = arith.constant 10 : index
    %c0_162 = arith.constant 0 : index
    %356 = vector.load %arg13[%c10_161, %c0_162] : memref<16x1024xf32, #tpu.memory_space<vmem>>, vector<1x512xf32>
    %357 = vector.broadcast %356 : vector<1x512xf32> to vector<16x512xf32>
    %358 = arith.mulf %355, %357 : vector<16x512xf32>
    %359 = vector.extract_strided_slice %295 {offsets = [0, 18], sizes = [16, 494], strides = [1, 1]} : vector<16x512xf32> to vector<16x494xf32>
    %cst_163 = arith.constant 0.000000e+00 : f32
    %360 = vector.broadcast %cst_163 : f32 to vector<16x18xf32>
    %361 = tpu.concatenate %359, %360 in 1 : vector<16x494xf32>, vector<16x18xf32> -> vector<16x512xf32>
    %c11 = arith.constant 11 : index
    %c0_164 = arith.constant 0 : index
    %362 = vector.load %arg13[%c11, %c0_164] : memref<16x1024xf32, #tpu.memory_space<vmem>>, vector<1x512xf32>
    %363 = vector.broadcast %362 : vector<1x512xf32> to vector<16x512xf32>
    %364 = arith.mulf %361, %363 : vector<16x512xf32>
    %365 = vector.extract_strided_slice %295 {offsets = [0, 31], sizes = [16, 481], strides = [1, 1]} : vector<16x512xf32> to vector<16x481xf32>
    %cst_165 = arith.constant 0.000000e+00 : f32
    %366 = vector.broadcast %cst_165 : f32 to vector<16x31xf32>
    %367 = tpu.concatenate %365, %366 in 1 : vector<16x481xf32>, vector<16x31xf32> -> vector<16x512xf32>
    %c12 = arith.constant 12 : index
    %c0_166 = arith.constant 0 : index
    %368 = vector.load %arg13[%c12, %c0_166] : memref<16x1024xf32, #tpu.memory_space<vmem>>, vector<1x512xf32>
    %369 = vector.broadcast %368 : vector<1x512xf32> to vector<16x512xf32>
    %370 = arith.mulf %367, %369 : vector<16x512xf32>
    %371 = vector.extract_strided_slice %295 {offsets = [0, 32], sizes = [16, 480], strides = [1, 1]} : vector<16x512xf32> to vector<16x480xf32>
    %cst_167 = arith.constant 0.000000e+00 : f32
    %372 = vector.broadcast %cst_167 : f32 to vector<16x32xf32>
    %373 = tpu.concatenate %371, %372 in 1 : vector<16x480xf32>, vector<16x32xf32> -> vector<16x512xf32>
    %c13 = arith.constant 13 : index
    %c0_168 = arith.constant 0 : index
    %374 = vector.load %arg13[%c13, %c0_168] : memref<16x1024xf32, #tpu.memory_space<vmem>>, vector<1x512xf32>
    %375 = vector.broadcast %374 : vector<1x512xf32> to vector<16x512xf32>
    %376 = arith.mulf %373, %375 : vector<16x512xf32>
    %377 = vector.extract_strided_slice %295 {offsets = [0, 33], sizes = [16, 479], strides = [1, 1]} : vector<16x512xf32> to vector<16x479xf32>
    %cst_169 = arith.constant 0.000000e+00 : f32
    %378 = vector.broadcast %cst_169 : f32 to vector<16x33xf32>
    %379 = tpu.concatenate %377, %378 in 1 : vector<16x479xf32>, vector<16x33xf32> -> vector<16x512xf32>
    %c14 = arith.constant 14 : index
    %c0_170 = arith.constant 0 : index
    %380 = vector.load %arg13[%c14, %c0_170] : memref<16x1024xf32, #tpu.memory_space<vmem>>, vector<1x512xf32>
    %381 = vector.broadcast %380 : vector<1x512xf32> to vector<16x512xf32>
    %382 = arith.mulf %379, %381 : vector<16x512xf32>
    %383 = vector.extract_strided_slice %295 {offsets = [0, 34], sizes = [16, 478], strides = [1, 1]} : vector<16x512xf32> to vector<16x478xf32>
    %cst_171 = arith.constant 0.000000e+00 : f32
    %384 = vector.broadcast %cst_171 : f32 to vector<16x34xf32>
    %385 = tpu.concatenate %383, %384 in 1 : vector<16x478xf32>, vector<16x34xf32> -> vector<16x512xf32>
    %c15 = arith.constant 15 : index
    %c0_172 = arith.constant 0 : index
    %386 = vector.load %arg13[%c15, %c0_172] : memref<16x1024xf32, #tpu.memory_space<vmem>>, vector<1x512xf32>
    %387 = vector.broadcast %386 : vector<1x512xf32> to vector<16x512xf32>
    %388 = arith.mulf %385, %387 : vector<16x512xf32>
    %389 = tpu.concatenate %304, %310, %316, %322, %328, %295, %334, %340, %346, %352, %358, %364, %370, %376, %382, %388 in 0 : vector<16x512xf32>, vector<16x512xf32>, vector<16x512xf32>, vector<16x512xf32>, vector<16x512xf32>, vector<16x512xf32>, vector<16x512xf32>, vector<16x512xf32>, vector<16x512xf32>, vector<16x512xf32>, vector<16x512xf32>, vector<16x512xf32>, vector<16x512xf32>, vector<16x512xf32>, vector<16x512xf32>, vector<16x512xf32> -> vector<256x512xf32>
    %390 = arith.truncf %389 : vector<256x512xf32> to vector<256x512xbf16>
    %c0_173 = arith.constant 0 : index
    %c0_174 = arith.constant 0 : index
    %391 = vector.load %arg12[%c0_173, %c0_174] : memref<16x256xbf16, #tpu.memory_space<vmem>>, vector<16x256xbf16>
    %cst_175 = arith.constant dense<0.000000e+00> : vector<16x512xf32>
    %392 = tpu.matmul %391, %390, %cst_175 {dimension_numbers = #tpu.dot_dimension_numbers<[1], [0], [0], [1], [0, 0, 1, 1], [], []>} : vector<16x256xbf16>, vector<256x512xbf16>, vector<16x512xf32> -> vector<16x512xf32>
    %c0_176 = arith.constant 0 : index
    %c0_177 = arith.constant 0 : index
    %393 = vector.load %arg14[%c0_176, %c0_177] : memref<512x128xf32, #tpu.memory_space<vmem>>, vector<512x128xf32>
    %cst_178 = arith.constant dense<0.000000e+00> : vector<16x128xf32>
    %394 = tpu.matmul %392, %393, %cst_178 {dimension_numbers = #tpu.dot_dimension_numbers<[1], [0], [0], [1], [0, 0, 1, 1], [], []>} : vector<16x512xf32>, vector<512x128xf32>, vector<16x128xf32> -> vector<16x128xf32>
    %c0_179 = arith.constant 0 : index
    %c0_180 = arith.constant 0 : index
    %c0_181 = arith.constant 0 : index
    %395 = vector.load %arg16[%c0_179, %c0_180, %c0_181] : memref<1x16x128xf32, #tpu.memory_space<vmem>>, vector<1x16x128xf32>
    %396 = vector.shape_cast %395 : vector<1x16x128xf32> to vector<16x128xf32>
    %397 = vector.shape_cast %394 : vector<16x128xf32> to vector<1x16x128xf32>
    tpu.vector_store %arg16[%c0_179, %c0_180, %c0_181], %397 {strides = array<i32>} : memref<1x16x128xf32, #tpu.memory_space<vmem>>, vector<1x16x128xf32>,
    return
  }
  func.func @transform_0(%arg0: i32) -> (i32, i32, i32) {
    %c0_i32 = arith.constant 0 : i32
    %c0_i32_0 = arith.constant 0 : i32
    %c0_i32_1 = arith.constant 0 : i32
    return %arg0, %c0_i32, %c0_i32_0 : i32, i32, i32
  }
  func.func @transform_1(%arg0: i32) -> (i32, i32) {
    %c0_i32 = arith.constant 0 : i32
    %c0_i32_0 = arith.constant 0 : i32
    %c0_i32_1 = arith.constant 0 : i32
    return %c0_i32, %c0_i32_0 : i32, i32
  }
  func.func @transform_2(%arg0: i32) -> (i32, i32) {
    %c0_i32 = arith.constant 0 : i32
    %c0_i32_0 = arith.constant 0 : i32
    %c0_i32_1 = arith.constant 0 : i32
    return %c0_i32, %c0_i32_0 : i32, i32
  }
  func.func @transform_3(%arg0: i32) -> (i32, i32) {
    %c0_i32 = arith.constant 0 : i32
    %c0_i32_0 = arith.constant 0 : i32
    %c0_i32_1 = arith.constant 0 : i32
    return %c0_i32, %c0_i32_0 : i32, i32
  }
  func.func @transform_4(%arg0: i32) -> (i32, i32) {
    %c0_i32 = arith.constant 0 : i32
    %c0_i32_0 = arith.constant 0 : i32
    %c0_i32_1 = arith.constant 0 : i32
    return %c0_i32, %c0_i32_0 : i32, i32
  }
  func.func @transform_5(%arg0: i32) -> (i32, i32) {
    %c0_i32 = arith.constant 0 : i32
    %c0_i32_0 = arith.constant 0 : i32
    %c0_i32_1 = arith.constant 0 : i32
    return %c0_i32, %c0_i32_0 : i32, i32
  }
  func.func @transform_6(%arg0: i32) -> (i32, i32) {
    %c0_i32 = arith.constant 0 : i32
    %c0_i32_0 = arith.constant 0 : i32
    %c0_i32_1 = arith.constant 0 : i32
    return %c0_i32, %c0_i32_0 : i32, i32
  }
  func.func @transform_7(%arg0: i32) -> (i32, i32) {
    %c0_i32 = arith.constant 0 : i32
    %c0_i32_0 = arith.constant 0 : i32
    %c0_i32_1 = arith.constant 0 : i32
    return %c0_i32, %c0_i32_0 : i32, i32
  }
  func.func @transform_8(%arg0: i32) -> (i32, i32) {
    %c0_i32 = arith.constant 0 : i32
    %c0_i32_0 = arith.constant 0 : i32
    %c0_i32_1 = arith.constant 0 : i32
    return %c0_i32, %c0_i32_0 : i32, i32
  }
  func.func @transform_9(%arg0: i32) -> (i32, i32) {
    %c0_i32 = arith.constant 0 : i32
    %c0_i32_0 = arith.constant 0 : i32
    %c0_i32_1 = arith.constant 0 : i32
    return %c0_i32, %c0_i32_0 : i32, i32
  }
  func.func @transform_10(%arg0: i32) -> (i32, i32) {
    %c0_i32 = arith.constant 0 : i32
    %c0_i32_0 = arith.constant 0 : i32
    %c0_i32_1 = arith.constant 0 : i32
    return %c0_i32, %c0_i32_0 : i32, i32
  }
  func.func @transform_11(%arg0: i32) -> (i32, i32) {
    %c0_i32 = arith.constant 0 : i32
    %c0_i32_0 = arith.constant 0 : i32
    %c0_i32_1 = arith.constant 0 : i32
    return %c0_i32, %c0_i32_0 : i32, i32
  }
  func.func @transform_12(%arg0: i32) -> (i32, i32) {
    %c0_i32 = arith.constant 0 : i32
    %c0_i32_0 = arith.constant 0 : i32
    %c0_i32_1 = arith.constant 0 : i32
    return %c0_i32, %c0_i32_0 : i32, i32
  }
  func.func @transform_13(%arg0: i32) -> (i32, i32) {
    %c0_i32 = arith.constant 0 : i32
    %c0_i32_0 = arith.constant 0 : i32
    %c0_i32_1 = arith.constant 0 : i32
    return %c0_i32, %c0_i32_0 : i32, i32
  }
  func.func @transform_14(%arg0: i32) -> (i32, i32, i32) {
    %c0_i32 = arith.constant 0 : i32
    %c0_i32_0 = arith.constant 0 : i32
    %c0_i32_1 = arith.constant 0 : i32
    return %arg0, %c0_i32, %c0_i32_0 : i32, i32, i32
  }
  func.func @transform_15(%arg0: i32) -> (i32, i32, i32) {
    %c0_i32 = arith.constant 0 : i32
    %c0_i32_0 = arith.constant 0 : i32
    %c0_i32_1 = arith.constant 0 : i32
    return %arg0, %c0_i32, %c0_i32_0 : i32, i32, i32
  }
}

</mosaic_0001>

<llo_original>
// kernel: _lambda_.1
$region0: #{_lambda_.1}
  #allocation0 [shape = 'u32[]', space=smem, size = 0x4, offset = 0x4, fixed_abs, tag = 'smem constant byte address 0x4 - core index']
  #allocation1 [shape = 'u32[72,128]{1,0:T(1,128)}', space=vmem, size = 0x9000, scoped, tag = 'internal scratch']
  %s0 = inlined_call_operand.vmem [shape: f32[2,8,512], index: 0, kind: input, shape index: {}]
  %s1 = inlined_call_operand.vmem [shape: bf16[32,72], index: 1, kind: input, shape index: {}]
  %s2 = inlined_call_operand.vmem [shape: f32[32,1], index: 2, kind: input, shape index: {}]
  %s3 = inlined_call_operand.vmem [shape: bf16[4,36], index: 3, kind: input, shape index: {}]
  %s4 = inlined_call_operand.vmem [shape: f32[4,1], index: 4, kind: input, shape index: {}]
  %s5 = inlined_call_operand.vmem [shape: bf16[4,72], index: 5, kind: input, shape index: {}]
  %s6 = inlined_call_operand.vmem [shape: f32[4,1], index: 6, kind: input, shape index: {}]
  %s7 = inlined_call_operand.vmem [shape: f32[4,1], index: 7, kind: input, shape index: {}]
  %s8 = inlined_call_operand.vmem [shape: f32[4,1], index: 8, kind: input, shape index: {}]
  %s9 = inlined_call_operand.vmem [shape: bf16[16,144], index: 9, kind: input, shape index: {}]
  %s10 = inlined_call_operand.vmem [shape: f32[16,1], index: 10, kind: input, shape index: {}]
  %s11 = inlined_call_operand.vmem [shape: bf16[16,256], index: 11, kind: input, shape index: {}]
  %s12 = inlined_call_operand.vmem [shape: f32[16,1024], index: 12, kind: input, shape index: {}]
  %s13 = inlined_call_operand.vmem [shape: f32[512,128], index: 13, kind: input, shape index: {}]
  %s14 = inlined_call_operand.vmem [shape: f32[2,16,512], index: 14, kind: output, shape index: {0}]
  %s15 = inlined_call_operand.vmem [shape: f32[2,16,128], index: 15, kind: output, shape index: {1}]
  %16 = xla_tuple %s14, %s15
  %s17 = sld [smem:[#allocation0]]
  $region97: #{_lambda_.1} parent=0
    _
  %s19 = ssub.s32 1, %s17
  %s20 = scalar_select 0, %s19, %s17
  loop: start=0, step=1, limit=4
  $region2: #{_lambda_.1} parent=0 // loop_pre_header
    _
  $region3: #{_lambda_.1} parent=0 // loop_header
    %s22 = sphi 0, %s26
    %p23 = scmp.ge.s32.totalorder %s22, 4
    %s32 = sphi 0, %s34
    %s35 = sphi 0, %s32
    %s36 = sphi 0, %s35
    %s52 = sphi 0, %s36
    %s56 = sphi 0, %s56
    %s58 = sphi 0, %s56
    %s59 = sphi 0, %s58
    %s73 = sphi 0, %s59
    %s77 = sphi 0, %s77
    %s79 = sphi 0, %s77
    %s80 = sphi 0, %s79
    %s94 = sphi 0, %s80
    %s98 = sphi 0, %s98
    %s100 = sphi 0, %s98
    %s101 = sphi 0, %s100
    %s115 = sphi 0, %s101
    %s119 = sphi 0, %s119
    %s121 = sphi 0, %s119
    %s122 = sphi 0, %s121
    %s136 = sphi 0, %s122
    %s140 = sphi 0, %s140
    %s142 = sphi 0, %s140
    %s143 = sphi 0, %s142
    %s157 = sphi 0, %s143
    %s161 = sphi 0, %s161
    %s163 = sphi 0, %s161
    %s164 = sphi 0, %s163
    %s178 = sphi 0, %s164
    %s182 = sphi 0, %s182
    %s184 = sphi 0, %s182
    %s185 = sphi 0, %s184
    %s199 = sphi 0, %s185
    %s203 = sphi 0, %s203
    %s205 = sphi 0, %s203
    %s206 = sphi 0, %s205
    %s220 = sphi 0, %s206
    %s224 = sphi 0, %s224
    %s226 = sphi 0, %s224
    %s227 = sphi 0, %s226
    %s241 = sphi 0, %s227
    %s245 = sphi 0, %s245
    %s247 = sphi 0, %s245
    %s248 = sphi 0, %s247
    %s262 = sphi 0, %s248
    %s266 = sphi 0, %s266
    %s268 = sphi 0, %s266
    %s269 = sphi 0, %s268
    %s283 = sphi 0, %s269
    %s287 = sphi 0, %s287
    %s289 = sphi 0, %s287
    %s290 = sphi 0, %s289
    %s304 = sphi 0, %s290
    %s308 = sphi 0, %s308
    %s310 = sphi 0, %s308
    %s311 = sphi 0, %s310
    %s325 = sphi 0, %s311
    %s331 = sphi 0, %s333
    %s334 = sphi 0, %s331
    %s335 = sphi 0, %s334
    %s351 = sphi 0, %s335
    %s357 = sphi 0, %s359
    %s360 = sphi 0, %s357
    %s361 = sphi 0, %s360
    %s377 = sphi 0, %s361
  $region4: #{_lambda_.1} parent=0 // loop_header_branch
    %25 = sbr.rel (%p23) target = $region8
  $region5: #{_lambda_.1} parent=0 // loop_body
    %s27 = ssub.s32 %s22, 1
    %s28 = ssub.s32 %s22, 2
    %s29 = sadd.s32 %s22, 1
    %s30 = ssub.s32 %s22, %s29
    %p31 = scmp.eq.s32.totalorder %s30, 0
    %s33 = sadd.s32 %s32, 1
    %s34 = scalar_select %p31, %s32, %s33
    %p37 = pneg %p31
    %p38 = scmp.eq.s32.totalorder %s22, 1
    %p39 = por %p37, %p38
    %p40 = scmp.ne.s32.totalorder %s32, %s35
    %p41 = scmp.eq.s32.totalorder %s22, 0
    %p42 = por %p40, %p41
    %p43 = scmp.ne.s32.totalorder %s32, %s35
    %p44 = scmp.eq.s32.totalorder %s27, 1
    %p45 = por %p43, %p44
    %p46 = scmp.ne.s32.totalorder %s35, %s36
    %p47 = scmp.eq.s32.totalorder %s27, 0
    %p48 = por %p46, %p47
    %p49 = scmp.ne.s32.totalorder %s35, %s36
    %p50 = scmp.eq.s32.totalorder %s28, 1
    %p51 = por %p49, %p50
    %p53 = scmp.ne.s32.totalorder %s36, %s52
    %p54 = scmp.eq.s32.totalorder %s28, 0
    %p55 = por %p53, %p54
    %s57 = sadd.s32 %s56, 1
    %p60 = scmp.eq.s32.totalorder %s22, 1
    %p61 = scmp.ne.s32.totalorder %s56, %s58
    %p62 = scmp.eq.s32.totalorder %s22, 0
    %p63 = por %p61, %p62
    %p64 = scmp.ne.s32.totalorder %s56, %s58
    %p65 = scmp.eq.s32.totalorder %s27, 1
    %p66 = por %p64, %p65
    %p67 = scmp.ne.s32.totalorder %s58, %s59
    %p68 = scmp.eq.s32.totalorder %s27, 0
    %p69 = por %p67, %p68
    %p70 = scmp.ne.s32.totalorder %s58, %s59
    %p71 = scmp.eq.s32.totalorder %s28, 1
    %p72 = por %p70, %p71
    %p74 = scmp.ne.s32.totalorder %s59, %s73
    %p75 = scmp.eq.s32.totalorder %s28, 0
    %p76 = por %p74, %p75
    %s78 = sadd.s32 %s77, 1
    %p81 = scmp.eq.s32.totalorder %s22, 1
    %p82 = scmp.ne.s32.totalorder %s77, %s79
    %p83 = scmp.eq.s32.totalorder %s22, 0
    %p84 = por %p82, %p83
    %p85 = scmp.ne.s32.totalorder %s77, %s79
    %p86 = scmp.eq.s32.totalorder %s27, 1
    %p87 = por %p85, %p86
    %p88 = scmp.ne.s32.totalorder %s79, %s80
    %p89 = scmp.eq.s32.totalorder %s27, 0
    %p90 = por %p88, %p89
    %p91 = scmp.ne.s32.totalorder %s79, %s80
    %p92 = scmp.eq.s32.totalorder %s28, 1
    %p93 = por %p91, %p92
    %p95 = scmp.ne.s32.totalorder %s80, %s94
    %p96 = scmp.eq.s32.totalorder %s28, 0
    %p97 = por %p95, %p96
    %s99 = sadd.s32 %s98, 1
    %p102 = scmp.eq.s32.totalorder %s22, 1
    %p103 = scmp.ne.s32.totalorder %s98, %s100
    %p104 = scmp.eq.s32.totalorder %s22, 0
    %p105 = por %p103, %p104
    %p106 = scmp.ne.s32.totalorder %s98, %s100
    %p107 = scmp.eq.s32.totalorder %s27, 1
    %p108 = por %p106, %p107
    %p109 = scmp.ne.s32.totalorder %s100, %s101
    %p110 = scmp.eq.s32.totalorder %s27, 0
    %p111 = por %p109, %p110
    %p112 = scmp.ne.s32.totalorder %s100, %s101
    %p113 = scmp.eq.s32.totalorder %s28, 1
    %p114 = por %p112, %p113
    %p116 = scmp.ne.s32.totalorder %s101, %s115
    %p117 = scmp.eq.s32.totalorder %s28, 0
    %p118 = por %p116, %p117
    %s120 = sadd.s32 %s119, 1
    %p123 = scmp.eq.s32.totalorder %s22, 1
    %p124 = scmp.ne.s32.totalorder %s119, %s121
    %p125 = scmp.eq.s32.totalorder %s22, 0
    %p126 = por %p124, %p125
    %p127 = scmp.ne.s32.totalorder %s119, %s121
    %p128 = scmp.eq.s32.totalorder %s27, 1
    %p129 = por %p127, %p128
    %p130 = scmp.ne.s32.totalorder %s121, %s122
    %p131 = scmp.eq.s32.totalorder %s27, 0
    %p132 = por %p130, %p131
    %p133 = scmp.ne.s32.totalorder %s121, %s122
    %p134 = scmp.eq.s32.totalorder %s28, 1
    %p135 = por %p133, %p134
    %p137 = scmp.ne.s32.totalorder %s122, %s136
    %p138 = scmp.eq.s32.totalorder %s28, 0
    %p139 = por %p137, %p138
    %s141 = sadd.s32 %s140, 1
    %p144 = scmp.eq.s32.totalorder %s22, 1
    %p145 = scmp.ne.s32.totalorder %s140, %s142
    %p146 = scmp.eq.s32.totalorder %s22, 0
    %p147 = por %p145, %p146
    %p148 = scmp.ne.s32.totalorder %s140, %s142
    %p149 = scmp.eq.s32.totalorder %s27, 1
    %p150 = por %p148, %p149
    %p151 = scmp.ne.s32.totalorder %s142, %s143
    %p152 = scmp.eq.s32.totalorder %s27, 0
    %p153 = por %p151, %p152
    %p154 = scmp.ne.s32.totalorder %s142, %s143
    %p155 = scmp.eq.s32.totalorder %s28, 1
    %p156 = por %p154, %p155
    %p158 = scmp.ne.s32.totalorder %s143, %s157
    %p159 = scmp.eq.s32.totalorder %s28, 0
    %p160 = por %p158, %p159
    %s162 = sadd.s32 %s161, 1
    %p165 = scmp.eq.s32.totalorder %s22, 1
    %p166 = scmp.ne.s32.totalorder %s161, %s163
    %p167 = scmp.eq.s32.totalorder %s22, 0
    %p168 = por %p166, %p167
    %p169 = scmp.ne.s32.totalorder %s161, %s163
    %p170 = scmp.eq.s32.totalorder %s27, 1
    %p171 = por %p169, %p170
    %p172 = scmp.ne.s32.totalorder %s163, %s164
    %p173 = scmp.eq.s32.totalorder %s27, 0
    %p174 = por %p172, %p173
    %p175 = scmp.ne.s32.totalorder %s163, %s164
    %p176 = scmp.eq.s32.totalorder %s28, 1
    %p177 = por %p175, %p176
    %p179 = scmp.ne.s32.totalorder %s164, %s178
    %p180 = scmp.eq.s32.totalorder %s28, 0
    %p181 = por %p179, %p180
    %s183 = sadd.s32 %s182, 1
    %p186 = scmp.eq.s32.totalorder %s22, 1
    %p187 = scmp.ne.s32.totalorder %s182, %s184
    %p188 = scmp.eq.s32.totalorder %s22, 0
    %p189 = por %p187, %p188
    %p190 = scmp.ne.s32.totalorder %s182, %s184
    %p191 = scmp.eq.s32.totalorder %s27, 1
    %p192 = por %p190, %p191
    %p193 = scmp.ne.s32.totalorder %s184, %s185
    %p194 = scmp.eq.s32.totalorder %s27, 0
    %p195 = por %p193, %p194
    %p196 = scmp.ne.s32.totalorder %s184, %s185
    %p197 = scmp.eq.s32.totalorder %s28, 1
    %p198 = por %p196, %p197
    %p200 = scmp.ne.s32.totalorder %s185, %s199
    %p201 = scmp.eq.s32.totalorder %s28, 0
    %p202 = por %p200, %p201
    %s204 = sadd.s32 %s203, 1
    %p207 = scmp.eq.s32.totalorder %s22, 1
    %p208 = scmp.ne.s32.totalorder %s203, %s205
    %p209 = scmp.eq.s32.totalorder %s22, 0
    %p210 = por %p208, %p209
    %p211 = scmp.ne.s32.totalorder %s203, %s205
    %p212 = scmp.eq.s32.totalorder %s27, 1
    %p213 = por %p211, %p212
    %p214 = scmp.ne.s32.totalorder %s205, %s206
    %p215 = scmp.eq.s32.totalorder %s27, 0
    %p216 = por %p214, %p215
    %p217 = scmp.ne.s32.totalorder %s205, %s206
    %p218 = scmp.eq.s32.totalorder %s28, 1
    %p219 = por %p217, %p218
    %p221 = scmp.ne.s32.totalorder %s206, %s220
    %p222 = scmp.eq.s32.totalorder %s28, 0
    %p223 = por %p221, %p222
    %s225 = sadd.s32 %s224, 1
    %p228 = scmp.eq.s32.totalorder %s22, 1
    %p229 = scmp.ne.s32.totalorder %s224, %s226
    %p230 = scmp.eq.s32.totalorder %s22, 0
    %p231 = por %p229, %p230
    %p232 = scmp.ne.s32.totalorder %s224, %s226
    %p233 = scmp.eq.s32.totalorder %s27, 1
    %p234 = por %p232, %p233
    %p235 = scmp.ne.s32.totalorder %s226, %s227
    %p236 = scmp.eq.s32.totalorder %s27, 0
    %p237 = por %p235, %p236
    %p238 = scmp.ne.s32.totalorder %s226, %s227
    %p239 = scmp.eq.s32.totalorder %s28, 1
    %p240 = por %p238, %p239
    %p242 = scmp.ne.s32.totalorder %s227, %s241
    %p243 = scmp.eq.s32.totalorder %s28, 0
    %p244 = por %p242, %p243
    %s246 = sadd.s32 %s245, 1
    %p249 = scmp.eq.s32.totalorder %s22, 1
    %p250 = scmp.ne.s32.totalorder %s245, %s247
    %p251 = scmp.eq.s32.totalorder %s22, 0
    %p252 = por %p250, %p251
    %p253 = scmp.ne.s32.totalorder %s245, %s247
    %p254 = scmp.eq.s32.totalorder %s27, 1
    %p255 = por %p253, %p254
    %p256 = scmp.ne.s32.totalorder %s247, %s248
    %p257 = scmp.eq.s32.totalorder %s27, 0
    %p258 = por %p256, %p257
    %p259 = scmp.ne.s32.totalorder %s247, %s248
    %p260 = scmp.eq.s32.totalorder %s28, 1
    %p261 = por %p259, %p260
    %p263 = scmp.ne.s32.totalorder %s248, %s262
    %p264 = scmp.eq.s32.totalorder %s28, 0
    %p265 = por %p263, %p264
    %s267 = sadd.s32 %s266, 1
    %p270 = scmp.eq.s32.totalorder %s22, 1
    %p271 = scmp.ne.s32.totalorder %s266, %s268
    %p272 = scmp.eq.s32.totalorder %s22, 0
    %p273 = por %p271, %p272
    %p274 = scmp.ne.s32.totalorder %s266, %s268
    %p275 = scmp.eq.s32.totalorder %s27, 1
    %p276 = por %p274, %p275
    %p277 = scmp.ne.s32.totalorder %s268, %s269
    %p278 = scmp.eq.s32.totalorder %s27, 0
    %p279 = por %p277, %p278
    %p280 = scmp.ne.s32.totalorder %s268, %s269
    %p281 = scmp.eq.s32.totalorder %s28, 1
    %p282 = por %p280, %p281
    %p284 = scmp.ne.s32.totalorder %s269, %s283
    %p285 = scmp.eq.s32.totalorder %s28, 0
    %p286 = por %p284, %p285
    %s288 = sadd.s32 %s287, 1
    %p291 = scmp.eq.s32.totalorder %s22, 1
    %p292 = scmp.ne.s32.totalorder %s287, %s289
    %p293 = scmp.eq.s32.totalorder %s22, 0
    %p294 = por %p292, %p293
    %p295 = scmp.ne.s32.totalorder %s287, %s289
    %p296 = scmp.eq.s32.totalorder %s27, 1
    %p297 = por %p295, %p296
    %p298 = scmp.ne.s32.totalorder %s289, %s290
    %p299 = scmp.eq.s32.totalorder %s27, 0
    %p300 = por %p298, %p299
    %p301 = scmp.ne.s32.totalorder %s289, %s290
    %p302 = scmp.eq.s32.totalorder %s28, 1
    %p303 = por %p301, %p302
    %p305 = scmp.ne.s32.totalorder %s290, %s304
    %p306 = scmp.eq.s32.totalorder %s28, 0
    %p307 = por %p305, %p306
    %s309 = sadd.s32 %s308, 1
    %p312 = scmp.eq.s32.totalorder %s22, 1
    %p313 = scmp.ne.s32.totalorder %s308, %s310
    %p314 = scmp.eq.s32.totalorder %s22, 0
    %p315 = por %p313, %p314
    %p316 = scmp.ne.s32.totalorder %s308, %s310
    %p317 = scmp.eq.s32.totalorder %s27, 1
    %p318 = por %p316, %p317
    %p319 = scmp.ne.s32.totalorder %s310, %s311
    %p320 = scmp.eq.s32.totalorder %s27, 0
    %p321 = por %p319, %p320
    %p322 = scmp.ne.s32.totalorder %s310, %s311
    %p323 = scmp.eq.s32.totalorder %s28, 1
    %p324 = por %p322, %p323
    %p326 = scmp.ne.s32.totalorder %s311, %s325
    %p327 = scmp.eq.s32.totalorder %s28, 0
    %p328 = por %p326, %p327
    %s329 = ssub.s32 %s22, %s29
    %p330 = scmp.eq.s32.totalorder %s329, 0
    %s332 = sadd.s32 %s331, 1
    %s333 = scalar_select %p330, %s331, %s332
    %p336 = pneg %p330
    %p337 = scmp.eq.s32.totalorder %s22, 1
    %p338 = por %p336, %p337
    %p339 = scmp.ne.s32.totalorder %s331, %s334
    %p340 = scmp.eq.s32.totalorder %s22, 0
    %p341 = por %p339, %p340
    %p342 = scmp.ne.s32.totalorder %s331, %s334
    %p343 = scmp.eq.s32.totalorder %s27, 1
    %p344 = por %p342, %p343
    %p345 = scmp.ne.s32.totalorder %s334, %s335
    %p346 = scmp.eq.s32.totalorder %s27, 0
    %p347 = por %p345, %p346
    %p348 = scmp.ne.s32.totalorder %s334, %s335
    %p349 = scmp.eq.s32.totalorder %s28, 1
    %p350 = por %p348, %p349
    %p352 = scmp.ne.s32.totalorder %s335, %s351
    %p353 = scmp.eq.s32.totalorder %s28, 0
    %p354 = por %p352, %p353
    %s355 = ssub.s32 %s22, %s29
    %p356 = scmp.eq.s32.totalorder %s355, 0
    %s358 = sadd.s32 %s357, 1
    %s359 = scalar_select %p356, %s357, %s358
    %p362 = pneg %p356
    %p363 = scmp.eq.s32.totalorder %s22, 1
    %p364 = por %p362, %p363
    %p365 = scmp.ne.s32.totalorder %s357, %s360
    %p366 = scmp.eq.s32.totalorder %s22, 0
    %p367 = por %p365, %p366
    %p368 = scmp.ne.s32.totalorder %s357, %s360
    %p369 = scmp.eq.s32.totalorder %s27, 1
    %p370 = por %p368, %p369
    %p371 = scmp.ne.s32.totalorder %s360, %s361
    %p372 = scmp.eq.s32.totalorder %s27, 0
    %p373 = por %p371, %p372
    %p374 = scmp.ne.s32.totalorder %s360, %s361
    %p375 = scmp.eq.s32.totalorder %s28, 1
    %p376 = por %p374, %p375
    %p378 = scmp.ne.s32.totalorder %s361, %s377
    %p379 = scmp.eq.s32.totalorder %s28, 0
    %p380 = por %p378, %p379
    %p381 = scmp.le.s32.totalorder 1, %s22
    %p382 = scmp.lt.s32.totalorder %s22, 3
    %p383 = pnand %p381, %p382
    %p384 = pneg %p383
    // Predicated region
    $region9: #{_lambda_.1} parent=5 // pred_check
      _
    $region10: #{_lambda_.1} parent=5 // pred_check_branch
      %386 = sbr.rel (%p383) target = $region12
    $region11: #{_lambda_.1} parent=5 // pred_region
      %s387 = ssub.s32 %s22, 1
      // Predicated region
      $region13: #{_lambda_.1} parent=11 // pred_check
        %p388 = pneg %p69
      $region14: #{_lambda_.1} parent=11 // pred_check_branch
        %390 = sbr.rel (%p388) target = $region16
      $region15: #{_lambda_.1} parent=11 // pred_region
        _
      $region16: #{_lambda_.1} parent=11 // pred_fallthru
        _
      // Predicated region
      $region17: #{_lambda_.1} parent=11 // pred_check
        %p391 = pneg %p90
      $region18: #{_lambda_.1} parent=11 // pred_check_branch
        %393 = sbr.rel (%p391) target = $region20
      $region19: #{_lambda_.1} parent=11 // pred_region
        _
      $region20: #{_lambda_.1} parent=11 // pred_fallthru
        _
      // Predicated region
      $region21: #{_lambda_.1} parent=11 // pred_check
        %p394 = pneg %p111
      $region22: #{_lambda_.1} parent=11 // pred_check_branch
        %396 = sbr.rel (%p394) target = $region24
      $region23: #{_lambda_.1} parent=11 // pred_region
        _
      $region24: #{_lambda_.1} parent=11 // pred_fallthru
        _
      // Predicated region
      $region25: #{_lambda_.1} parent=11 // pred_check
        %p397 = pneg %p132
      $region26: #{_lambda_.1} parent=11 // pred_check_branch
        %399 = sbr.rel (%p397) target = $region28
      $region27: #{_lambda_.1} parent=11 // pred_region
        _
      $region28: #{_lambda_.1} parent=11 // pred_fallthru
        _
      // Predicated region
      $region29: #{_lambda_.1} parent=11 // pred_check
        %p400 = pneg %p153
      $region30: #{_lambda_.1} parent=11 // pred_check_branch
        %402 = sbr.rel (%p400) target = $region32
      $region31: #{_lambda_.1} parent=11 // pred_region
        _
      $region32: #{_lambda_.1} parent=11 // pred_fallthru
        _
      // Predicated region
      $region33: #{_lambda_.1} parent=11 // pred_check
        %p403 = pneg %p174
      $region34: #{_lambda_.1} parent=11 // pred_check_branch
        %405 = sbr.rel (%p403) target = $region36
      $region35: #{_lambda_.1} parent=11 // pred_region
        _
      $region36: #{_lambda_.1} parent=11 // pred_fallthru
        _
      // Predicated region
      $region37: #{_lambda_.1} parent=11 // pred_check
        %p406 = pneg %p195
      $region38: #{_lambda_.1} parent=11 // pred_check_branch
        %408 = sbr.rel (%p406) target = $region40
      $region39: #{_lambda_.1} parent=11 // pred_region
        _
      $region40: #{_lambda_.1} parent=11 // pred_fallthru
        _
      // Predicated region
      $region41: #{_lambda_.1} parent=11 // pred_check
        %p409 = pneg %p216
      $region42: #{_lambda_.1} parent=11 // pred_check_branch
        %411 = sbr.rel (%p409) target = $region44
      $region43: #{_lambda_.1} parent=11 // pred_region
        _
      $region44: #{_lambda_.1} parent=11 // pred_fallthru
        _
      // Predicated region
      $region45: #{_lambda_.1} parent=11 // pred_check
        %p412 = pneg %p237
      $region46: #{_lambda_.1} parent=11 // pred_check_branch
        %414 = sbr.rel (%p412) target = $region48
      $region47: #{_lambda_.1} parent=11 // pred_region
        _
      $region48: #{_lambda_.1} parent=11 // pred_fallthru
        _
      // Predicated region
      $region49: #{_lambda_.1} parent=11 // pred_check
        %p415 = pneg %p258
      $region50: #{_lambda_.1} parent=11 // pred_check_branch
        %417 = sbr.rel (%p415) target = $region52
      $region51: #{_lambda_.1} parent=11 // pred_region
        _
      $region52: #{_lambda_.1} parent=11 // pred_fallthru
        _
      // Predicated region
      $region53: #{_lambda_.1} parent=11 // pred_check
        %p418 = pneg %p279
      $region54: #{_lambda_.1} parent=11 // pred_check_branch
        %420 = sbr.rel (%p418) target = $region56
      $region55: #{_lambda_.1} parent=11 // pred_region
        _
      $region56: #{_lambda_.1} parent=11 // pred_fallthru
        _
      // Predicated region
      $region57: #{_lambda_.1} parent=11 // pred_check
        %p421 = pneg %p300
      $region58: #{_lambda_.1} parent=11 // pred_check_branch
        %423 = sbr.rel (%p421) target = $region60
      $region59: #{_lambda_.1} parent=11 // pred_region
        _
      $region60: #{_lambda_.1} parent=11 // pred_fallthru
        _
      // Predicated region
      $region61: #{_lambda_.1} parent=11 // pred_check
        %p424 = pneg %p321
      $region62: #{_lambda_.1} parent=11 // pred_check_branch
        %426 = sbr.rel (%p424) target = $region64
      $region63: #{_lambda_.1} parent=11 // pred_region
        _
      $region64: #{_lambda_.1} parent=11 // pred_fallthru
        _
    $region12: #{_lambda_.1} parent=5 // pred_fallthru
      _
    %p427 = scmp.lt.s32.totalorder %s22, 2
    // Predicated region
    $region65: #{_lambda_.1} parent=5 // pred_check
      %p428 = pneg %p427
    $region66: #{_lambda_.1} parent=5 // pred_check_branch
      %430 = sbr.rel (%p428) target = $region68
    $region67: #{_lambda_.1} parent=5 // pred_region
      // Predicated region
      $region69: #{_lambda_.1} parent=67 // pred_check
        %p431 = pneg %p42
      $region70: #{_lambda_.1} parent=67 // pred_check_branch
        %433 = sbr.rel (%p431) target = $region72
      $region71: #{_lambda_.1} parent=67 // pred_region
        %p434 = scmp.lt.s32.totalorder %s22, 1
        %s435 = scalar_select %p434, %s22, 1
        %s436 = smul.addr %s435, 4
        %s437 = smul.addr %s436, 8
        %s438 = scalar_lea.vmem %s0, %s437
      $region72: #{_lambda_.1} parent=67 // pred_fallthru
        _
    $region68: #{_lambda_.1} parent=5 // pred_fallthru
      _
    %p439 = scmp.le.s32.totalorder 1, %s22
    %p440 = scmp.lt.s32.totalorder %s22, 3
    %p441 = pnand %p439, %p440
    %p442 = pneg %p441
    // Predicated region
    $region73: #{_lambda_.1} parent=5 // pred_check
      _
    $region74: #{_lambda_.1} parent=5 // pred_check_branch
      %444 = sbr.rel (%p441) target = $region76
    $region75: #{_lambda_.1} parent=5 // pred_region
      %s445 = ssub.s32 %s22, 1
      %p446 = scmp.lt.s32.totalorder %s27, 1
      %s447 = scalar_select %p446, %s27, 1
      %s448 = smul.addr %s447, 4
      %s449 = smul.addr %s448, 8
      %s450 = scalar_lea.vmem %s0, %s449
      %p451 = pneg %p48
      %p452 = pneg %p45
      %p453 = pneg %p69
      %p454 = pneg %p66
      %p455 = pneg %p90
      %p456 = pneg %p87
      %p457 = pneg %p111
      %p458 = pneg %p108
      %p459 = pneg %p132
      %p460 = pneg %p129
      %p461 = pneg %p153
      %p462 = pneg %p150
      %p463 = pneg %p174
      %p464 = pneg %p171
      %p465 = pneg %p195
      %p466 = pneg %p192
      %p467 = pneg %p216
      %p468 = pneg %p213
      %p469 = pneg %p237
      %p470 = pneg %p234
      %p471 = pneg %p258
      %p472 = pneg %p255
      %p473 = pneg %p279
      %p474 = pneg %p276
      %p475 = pneg %p300
      %p476 = pneg %p297
      %p477 = pneg %p321
      %p478 = pneg %p318
      %p479 = pneg %p347
      %p480 = pneg %p344
      %p481 = scmp.lt.s32.totalorder %s27, 1
      %s482 = scalar_select %p481, %s27, 1
      %s483 = smul.addr %s482, 8
      %s484 = smul.addr %s483, 8
      %s485 = scalar_lea.vmem %s14, %s484
      %p486 = pneg %p373
      %p487 = pneg %p370
      %p488 = scmp.lt.s32.totalorder %s27, 1
      %s489 = scalar_select %p488, %s27, 1
      %s490 = smul.addr %s489, 2
      %s491 = smul.addr %s490, 8
      %s492 = scalar_lea.vmem %s15, %s491
      %p493 = scmp.lt.s32.totalorder %s27, 1
      %s494 = scalar_select %p493, %s27, 1
      %s495 = smul.addr %s494, 4
      %s496 = smul.addr %s495, 8
      %s497 = scalar_lea.vmem %s0, %s496
      %p498 = scmp.lt.s32.totalorder %s27, 1
      %s499 = scalar_select %p498, %s27, 1
      %s500 = smul.addr %s499, 8
      %s501 = smul.addr %s500, 8
      %s502 = scalar_lea.vmem %s14, %s501
      %p503 = scmp.lt.s32.totalorder %s27, 1
      %s504 = scalar_select %p503, %s27, 1
      %s505 = smul.addr %s504, 2
      %s506 = smul.addr %s505, 8
      %s507 = scalar_lea.vmem %s15, %s506
      %v509 = vld [vmem:[%s497] sm:$0xff]
      %v510 = vld [vmem:[%s497 + $0x8] sm:$0xff]
      %v511 = vld [vmem:[%s497 + $0x10] sm:$0xff]
      %v512 = vld [vmem:[%s497 + $0x18] sm:$0xff]
      %517 = vrot.lane.b32.xlu0 %v509, 17
      %v518 = vpop.permute.xlu0 %517
      %519 = vrot.lane.b32.xlu0 %v510, 17
      %v520 = vpop.permute.xlu0 %519
      %521 = vrot.lane.b32.xlu0 %v511, 17
      %v522 = vpop.permute.xlu0 %521
      %523 = vrot.lane.b32.xlu0 %v512, 17
      %v524 = vpop.permute.xlu0 %523
      %vm525 = vcmask 138240
      %v526 = vsel %vm525, %v518, %v520
      %v527 = vsel %vm525, %v520, %v522
      %v528 = vsel %vm525, %v522, %v524
      %v533 = vsel %vm525, 0.0, %v518
      %v534 = vld [vmem:[%s12] ss:$8 sm:$0xf]
      %v536 = vperm.slane %v534, 0
      %v537 = vperm.slane %v534, 1
      %v538 = vperm.slane %v534, 2
      %v539 = vperm.slane %v534, 3
      %v544 = vmul.f32 %v533, %v536
      %v545 = vmul.f32 %v526, %v537
      %v546 = vmul.f32 %v527, %v538
      %v547 = vmul.f32 %v528, %v539
      %548 = vrot.lane.b32.xlu0 %v509, 16
      %v549 = vpop.permute.xlu0 %548
      %550 = vrot.lane.b32.xlu0 %v510, 16
      %v551 = vpop.permute.xlu0 %550
      %552 = vrot.lane.b32.xlu0 %v511, 16
      %v553 = vpop.permute.xlu0 %552
      %554 = vrot.lane.b32.xlu0 %v512, 16
      %v555 = vpop.permute.xlu0 %554
      %vm556 = vcmask 130048
      %v557 = vsel %vm556, %v549, %v551
      %v558 = vsel %vm556, %v551, %v553
      %v559 = vsel %vm556, %v553, %v555
      %v564 = vsel %vm556, 0.0, %v549
      %s565 = scalar_lea.vmem %s12, 1
      %v566 = vld [vmem:[%s565] ss:$8 sm:$0xf]
      %v568 = vperm.slane %v566, 0
      %v569 = vperm.slane %v566, 1
      %v570 = vperm.slane %v566, 2
      %v571 = vperm.slane %v566, 3
      %v576 = vmul.f32 %v564, %v568
      %v577 = vmul.f32 %v557, %v569
      %v578 = vmul.f32 %v558, %v570
      %v579 = vmul.f32 %v559, %v571
      %580 = vrot.lane.b32.xlu0 %v509, 15
      %v581 = vpop.permute.xlu0 %580
      %582 = vrot.lane.b32.xlu0 %v510, 15
      %v583 = vpop.permute.xlu0 %582
      %584 = vrot.lane.b32.xlu0 %v511, 15
      %v585 = vpop.permute.xlu0 %584
      %586 = vrot.lane.b32.xlu0 %v512, 15
      %v587 = vpop.permute.xlu0 %586
      %vm588 = vcmask 121856
      %v589 = vsel %vm588, %v581, %v583
      %v590 = vsel %vm588, %v583, %v585
      %v591 = vsel %vm588, %v585, %v587
      %v596 = vsel %vm588, 0.0, %v581
      %s597 = scalar_lea.vmem %s12, 2
      %v598 = vld [vmem:[%s597] ss:$8 sm:$0xf]
      %v600 = vperm.slane %v598, 0
      %v601 = vperm.slane %v598, 1
      %v602 = vperm.slane %v598, 2
      %v603 = vperm.slane %v598, 3
      %v608 = vmul.f32 %v596, %v600
      %v609 = vmul.f32 %v589, %v601
      %v610 = vmul.f32 %v590, %v602
      %v611 = vmul.f32 %v591, %v603
      %612 = vrot.lane.b32.xlu0 %v509, 1
      %v613 = vpop.permute.xlu0 %612
      %614 = vrot.lane.b32.xlu0 %v510, 1
      %v615 = vpop.permute.xlu0 %614
      %616 = vrot.lane.b32.xlu0 %v511, 1
      %v617 = vpop.permute.xlu0 %616
      %618 = vrot.lane.b32.xlu0 %v512, 1
      %v619 = vpop.permute.xlu0 %618
      %vm620 = vcmask 7168
      %v621 = vsel %vm620, %v613, %v615
      %v622 = vsel %vm620, %v615, %v617
      %v623 = vsel %vm620, %v617, %v619
      %v628 = vsel %vm620, 0.0, %v613
      %s629 = scalar_lea.vmem %s12, 4
      %v630 = vld [vmem:[%s629] ss:$8 sm:$0xf]
      %v632 = vperm.slane %v630, 0
      %v633 = vperm.slane %v630, 1
      %v634 = vperm.slane %v630, 2
      %v635 = vperm.slane %v630, 3
      %v640 = vmul.f32 %v628, %v632
      %v641 = vmul.f32 %v621, %v633
      %v642 = vmul.f32 %v622, %v634
      %v643 = vmul.f32 %v623, %v635
      %644 = vrot.lane.b32.xlu0 %v509, 127
      %v645 = vpop.permute.xlu0 %644
      %646 = vrot.lane.b32.xlu0 %v510, 127
      %v647 = vpop.permute.xlu0 %646
      %648 = vrot.lane.b32.xlu0 %v511, 127
      %v649 = vpop.permute.xlu0 %648
      %650 = vrot.lane.b32.xlu0 %v512, 127
      %v651 = vpop.permute.xlu0 %650
      %vm652 = vcmask 1039360
      %v653 = vsel %vm652, %v645, %v647
      %v654 = vsel %vm652, %v647, %v649
      %v655 = vsel %vm652, %v649, %v651
      %v660 = vsel %vm652, %v651, 0.0
      %s661 = scalar_lea.vmem %s12, 6
      %v662 = vld [vmem:[%s661] ss:$8 sm:$0xf]
      %v664 = vperm.slane %v662, 0
      %v665 = vperm.slane %v662, 1
      %v666 = vperm.slane %v662, 2
      %v667 = vperm.slane %v662, 3
      %v672 = vmul.f32 %v653, %v664
      %v673 = vmul.f32 %v654, %v665
      %v674 = vmul.f32 %v655, %v666
      %v675 = vmul.f32 %v660, %v667
      %676 = vrot.lane.b32.xlu0 %v509, 113
      %v677 = vpop.permute.xlu0 %676
      %678 = vrot.lane.b32.xlu0 %v510, 113
      %v679 = vpop.permute.xlu0 %678
      %680 = vrot.lane.b32.xlu0 %v511, 113
      %v681 = vpop.permute.xlu0 %680
      %682 = vrot.lane.b32.xlu0 %v512, 113
      %v683 = vpop.permute.xlu0 %682
      %vm684 = vcmask 924672
      %v685 = vsel %vm684, %v677, %v679
      %v686 = vsel %vm684, %v679, %v681
      %v687 = vsel %vm684, %v681, %v683
      %v692 = vsel %vm684, %v683, 0.0
      %s693 = scalar_lea.vmem %s12, 64
      %v694 = vld [vmem:[%s693] ss:$8 sm:$0xf]
      %v696 = vperm.slane %v694, 0
      %v697 = vperm.slane %v694, 1
      %v698 = vperm.slane %v694, 2
      %v699 = vperm.slane %v694, 3
      %v704 = vmul.f32 %v685, %v696
      %v705 = vmul.f32 %v686, %v697
      %v706 = vmul.f32 %v687, %v698
      %v707 = vmul.f32 %v692, %v699
      %708 = vrot.lane.b32.xlu0 %v509, 112
      %v709 = vpop.permute.xlu0 %708
      %710 = vrot.lane.b32.xlu0 %v510, 112
      %v711 = vpop.permute.xlu0 %710
      %712 = vrot.lane.b32.xlu0 %v511, 112
      %v713 = vpop.permute.xlu0 %712
      %714 = vrot.lane.b32.xlu0 %v512, 112
      %v715 = vpop.permute.xlu0 %714
      %vm716 = vcmask 916480
      %v717 = vsel %vm716, %v709, %v711
      %v718 = vsel %vm716, %v711, %v713
      %v719 = vsel %vm716, %v713, %v715
      %v724 = vsel %vm716, %v715, 0.0
      %s725 = scalar_lea.vmem %s12, 65
      %v726 = vld [vmem:[%s725] ss:$8 sm:$0xf]
      %v728 = vperm.slane %v726, 0
      %v729 = vperm.slane %v726, 1
      %v730 = vperm.slane %v726, 2
      %v731 = vperm.slane %v726, 3
      %v736 = vmul.f32 %v717, %v728
      %v737 = vmul.f32 %v718, %v729
      %v738 = vmul.f32 %v719, %v730
      %v739 = vmul.f32 %v724, %v731
      %740 = vrot.lane.b32.xlu0 %v509, 111
      %v741 = vpop.permute.xlu0 %740
      %742 = vrot.lane.b32.xlu0 %v510, 111
      %v743 = vpop.permute.xlu0 %742
      %744 = vrot.lane.b32.xlu0 %v511, 111
      %v745 = vpop.permute.xlu0 %744
      %746 = vrot.lane.b32.xlu0 %v512, 111
      %v747 = vpop.permute.xlu0 %746
      %vm748 = vcmask 908288
      %v749 = vsel %vm748, %v741, %v743
      %v750 = vsel %vm748, %v743, %v745
      %v751 = vsel %vm748, %v745, %v747
      %v756 = vsel %vm748, %v747, 0.0
      %s757 = scalar_lea.vmem %s12, 66
      %v758 = vld [vmem:[%s757] ss:$8 sm:$0xf]
      %v760 = vperm.slane %v758, 0
      %v761 = vperm.slane %v758, 1
      %v762 = vperm.slane %v758, 2
      %v763 = vperm.slane %v758, 3
      %v768 = vmul.f32 %v749, %v760
      %v769 = vmul.f32 %v750, %v761
      %v770 = vmul.f32 %v751, %v762
      %v771 = vmul.f32 %v756, %v763
      %v772 = vpack.c.bf16 %v576, %v544
      %v773 = vpack.c.bf16 %v577, %v545
      %v774 = vpack.c.bf16 %v578, %v546
      %v775 = vpack.c.bf16 %v579, %v547
      %v776 = vpack.c.bf16 %v640, %v608
      %v777 = vpack.c.bf16 %v641, %v609
      %v778 = vpack.c.bf16 %v642, %v610
      %v779 = vpack.c.bf16 %v643, %v611
      %v780 = vpack.c.bf16 %v672, %v509
      %v781 = vpack.c.bf16 %v673, %v510
      %v782 = vpack.c.bf16 %v674, %v511
      %v783 = vpack.c.bf16 %v675, %v512
      %v784 = vpack.c.bf16 %v736, %v704
      %v785 = vpack.c.bf16 %v737, %v705
      %v786 = vpack.c.bf16 %v738, %v706
      %v787 = vpack.c.bf16 %v739, %v707
      %v788 = vpack.c.bf16 %v768, %v768
      %v789 = vpack.c.bf16 %v769, %v769
      %v790 = vpack.c.bf16 %v770, %v770
      %v791 = vpack.c.bf16 %v771, %v771
      %v792 = vld [vmem:[%s1] sm:$0xf]
      %v793 = vld [vmem:[%s1 + $0x4] sm:$0xf]
      %v794 = vld [vmem:[%s1 + $0x8] sm:$0xf]
      %v795 = vld [vmem:[%s1 + $0xc] sm:$0xf]
      %v796 = vld [vmem:[%s2] sm:$0xff]
      %v797 = vld [vmem:[%s2 + $0x8] sm:$0xff]
      %v798 = vld [vmem:[%s2 + $0x10] sm:$0xff]
      %v799 = vld [vmem:[%s2 + $0x18] sm:$0xff]
      %801 = vset.pattern.permute.xlu0 0
      %802 = vperm.xlu0 %801, %v796
      %v803 = vpop.permute.xlu0 %802
      %806 = vset.pattern.permute.xlu0 0
      %807 = vperm.xlu0 %806, %v797
      %v808 = vpop.permute.xlu0 %807
      %811 = vset.pattern.permute.xlu0 0
      %812 = vperm.xlu0 %811, %v798
      %v813 = vpop.permute.xlu0 %812
      %816 = vset.pattern.permute.xlu0 0
      %817 = vperm.xlu0 %816, %v799
      %v818 = vpop.permute.xlu0 %817
      %v824 = vunpack.c.l.b16 %v792
      %v825 = vunpack.c.l.b16 %v793
      %v826 = vunpack.c.l.b16 %v794
      %v827 = vunpack.c.l.b16 %v795
      %v828 = vpack.c.b16 %v825, %v824
      %v829 = vpack.c.b16 %v827, %v826
      %vm830 = vcmask 588800
      %v832 = vsel %vm830, %v828, 0
      %v835 = vsel %vm830, %v829, 0
      %vm837 = vcmask 1043456
      %v839 = vsel %vm837, %v788, 0
      %v842 = vsel %vm837, %v789, 0
      %v845 = vsel %vm837, %v790, 0
      %v848 = vsel %vm837, %v791, 0
      %850 = vmatpush.bf16.msra.mxu0 0
      %851 = vmatpush.bf16.msra.mxu0 0
      %852 = vmatpush.bf16.msra.mxu0 0
      %853 = vmatpush.bf16.msra.mxu0 %v839
      %854 = vmatpush.bf16.msra.mxu0 %v784
      %855 = vmatpush.bf16.msra.mxu0 %v780
      %856 = vmatpush.bf16.msra.mxu0 %v776
      %857 = vmatpush.bf16.msra.mxu0 %v772
      %858 = vmatmul.bf16.gmra.mxu0 %v832
      %v859 = vpop.f32.mrf.mxu0
      %v860 = vadd.f32 %v803, %v859
      %v861 = vpop.f32.mrf.mxu0
      %v862 = vadd.f32 %v808, %v861
      %863 = vmatmul.bf16.gmra.mxu0 %v835
      %v864 = vpop.f32.mrf.mxu0
      %v865 = vadd.f32 %v813, %v864
      %v866 = vpop.f32.mrf.mxu0
      %v867 = vadd.f32 %v818, %v866
      %868 = vdwg.mxu0
      %869 = vmatpush.bf16.msra.mxu0 0
      %870 = vmatpush.bf16.msra.mxu0 0
      %871 = vmatpush.bf16.msra.mxu0 0
      %872 = vmatpush.bf16.msra.mxu0 %v842
      %873 = vmatpush.bf16.msra.mxu0 %v785
      %874 = vmatpush.bf16.msra.mxu0 %v781
      %875 = vmatpush.bf16.msra.mxu0 %v777
      %876 = vmatpush.bf16.msra.mxu0 %v773
      %877 = vmatmul.bf16.gmra.mxu0 %v832
      %v878 = vpop.f32.mrf.mxu0
      %v879 = vadd.f32 %v803, %v878
      %v880 = vpop.f32.mrf.mxu0
      %v881 = vadd.f32 %v808, %v880
      %882 = vmatmul.bf16.gmra.mxu0 %v835
      %v883 = vpop.f32.mrf.mxu0
      %v884 = vadd.f32 %v813, %v883
      %v885 = vpop.f32.mrf.mxu0
      %v886 = vadd.f32 %v818, %v885
      %887 = vdwg.mxu0
      %888 = vmatpush.bf16.msra.mxu0 0
      %889 = vmatpush.bf16.msra.mxu0 0
      %890 = vmatpush.bf16.msra.mxu0 0
      %891 = vmatpush.bf16.msra.mxu0 %v845
      %892 = vmatpush.bf16.msra.mxu0 %v786
      %893 = vmatpush.bf16.msra.mxu0 %v782
      %894 = vmatpush.bf16.msra.mxu0 %v778
      %895 = vmatpush.bf16.msra.mxu0 %v774
      %896 = vmatmul.bf16.gmra.mxu0 %v832
      %v897 = vpop.f32.mrf.mxu0
      %v898 = vadd.f32 %v803, %v897
      %v899 = vpop.f32.mrf.mxu0
      %v900 = vadd.f32 %v808, %v899
      %901 = vmatmul.bf16.gmra.mxu0 %v835
      %v902 = vpop.f32.mrf.mxu0
      %v903 = vadd.f32 %v813, %v902
      %v904 = vpop.f32.mrf.mxu0
      %v905 = vadd.f32 %v818, %v904
      %906 = vdwg.mxu0
      %907 = vmatpush.bf16.msra.mxu0 0
      %908 = vmatpush.bf16.msra.mxu0 0
      %909 = vmatpush.bf16.msra.mxu0 0
      %910 = vmatpush.bf16.msra.mxu0 %v848
      %911 = vmatpush.bf16.msra.mxu0 %v787
      %912 = vmatpush.bf16.msra.mxu0 %v783
      %913 = vmatpush.bf16.msra.mxu0 %v779
      %914 = vmatpush.bf16.msra.mxu0 %v775
      %915 = vmatmul.bf16.gmra.mxu0 %v832
      %v916 = vpop.f32.mrf.mxu0
      %v917 = vadd.f32 %v803, %v916
      %v918 = vpop.f32.mrf.mxu0
      %v919 = vadd.f32 %v808, %v918
      %920 = vmatmul.bf16.gmra.mxu0 %v835
      %v921 = vpop.f32.mrf.mxu0
      %v922 = vadd.f32 %v813, %v921
      %v923 = vpop.f32.mrf.mxu0
      %v924 = vadd.f32 %v818, %v923
      %925 = vdwg.mxu0
      %v930 = vrot.slane %v862, 4
      %v931 = vrot.slane %v881, 4
      %v932 = vrot.slane %v900, 4
      %v933 = vrot.slane %v919, 4
      %938 = vrot.lane.b32.xlu0 %v862, 17
      %v939 = vpop.permute.xlu0 %938
      %940 = vrot.lane.b32.xlu0 %v881, 17
      %v941 = vpop.permute.xlu0 %940
      %942 = vrot.lane.b32.xlu0 %v900, 17
      %v943 = vpop.permute.xlu0 %942
      %944 = vrot.lane.b32.xlu0 %v919, 17
      %v945 = vpop.permute.xlu0 %944
      %946 = vrot.lane.b32.xlu0 %v930, 17
      %v947 = vpop.permute.xlu0 %946
      %948 = vrot.lane.b32.xlu0 %v931, 17
      %v949 = vpop.permute.xlu0 %948
      %950 = vrot.lane.b32.xlu0 %v932, 17
      %v951 = vpop.permute.xlu0 %950
      %952 = vrot.lane.b32.xlu0 %v933, 17
      %v953 = vpop.permute.xlu0 %952
      %v954 = vsel %vm525, %v939, %v941
      %v955 = vsel %vm525, %v941, %v943
      %v956 = vsel %vm525, %v943, %v945
      %v957 = vsel %vm525, %v945, %v947
      %v958 = vsel %vm525, %v947, %v949
      %v959 = vsel %vm525, %v949, %v951
      %v960 = vsel %vm525, %v951, %v953
      %v969 = vsel %vm525, 0.0, %v939
      %v970 = vld [vmem:[%s12] ss:$8 sm:$0xf]
      %v971 = vld [vmem:[%s12] ss:$8 sm:$0xf0]
      %v972 = vor.u32 %v970, %v971
      %v974 = vperm.slane %v972, 0
      %v975 = vperm.slane %v972, 1
      %v976 = vperm.slane %v972, 2
      %v977 = vperm.slane %v972, 3
      %v978 = vperm.slane %v972, 4
      %v979 = vperm.slane %v972, 5
      %v980 = vperm.slane %v972, 6
      %v981 = vperm.slane %v972, 7
      %v990 = vmul.f32 %v969, %v974
      %v991 = vmul.f32 %v954, %v975
      %v992 = vmul.f32 %v955, %v976
      %v993 = vmul.f32 %v956, %v977
      %v994 = vmul.f32 %v957, %v978
      %v995 = vmul.f32 %v958, %v979
      %v996 = vmul.f32 %v959, %v980
      %v997 = vmul.f32 %v960, %v981
      %998 = vrot.lane.b32.xlu0 %v862, 16
      %v999 = vpop.permute.xlu0 %998
      %1000 = vrot.lane.b32.xlu0 %v881, 16
      %v1001 = vpop.permute.xlu0 %1000
      %1002 = vrot.lane.b32.xlu0 %v900, 16
      %v1003 = vpop.permute.xlu0 %1002
      %1004 = vrot.lane.b32.xlu0 %v919, 16
      %v1005 = vpop.permute.xlu0 %1004
      %1006 = vrot.lane.b32.xlu0 %v930, 16
      %v1007 = vpop.permute.xlu0 %1006
      %1008 = vrot.lane.b32.xlu0 %v931, 16
      %v1009 = vpop.permute.xlu0 %1008
      %1010 = vrot.lane.b32.xlu0 %v932, 16
      %v1011 = vpop.permute.xlu0 %1010
      %1012 = vrot.lane.b32.xlu0 %v933, 16
      %v1013 = vpop.permute.xlu0 %1012
      %v1014 = vsel %vm556, %v999, %v1001
      %v1015 = vsel %vm556, %v1001, %v1003
      %v1016 = vsel %vm556, %v1003, %v1005
      %v1017 = vsel %vm556, %v1005, %v1007
      %v1018 = vsel %vm556, %v1007, %v1009
      %v1019 = vsel %vm556, %v1009, %v1011
      %v1020 = vsel %vm556, %v1011, %v1013
      %v1029 = vsel %vm556, 0.0, %v999
      %v1030 = vld [vmem:[%s565] ss:$8 sm:$0xf]
      %v1031 = vld [vmem:[%s565] ss:$8 sm:$0xf0]
      %v1032 = vor.u32 %v1030, %v1031
      %v1034 = vperm.slane %v1032, 0
      %v1035 = vperm.slane %v1032, 1
      %v1036 = vperm.slane %v1032, 2
      %v1037 = vperm.slane %v1032, 3
      %v1038 = vperm.slane %v1032, 4
      %v1039 = vperm.slane %v1032, 5
      %v1040 = vperm.slane %v1032, 6
      %v1041 = vperm.slane %v1032, 7
      %v1050 = vmul.f32 %v1029, %v1034
      %v1051 = vmul.f32 %v1014, %v1035
      %v1052 = vmul.f32 %v1015, %v1036
      %v1053 = vmul.f32 %v1016, %v1037
      %v1054 = vmul.f32 %v1017, %v1038
      %v1055 = vmul.f32 %v1018, %v1039
      %v1056 = vmul.f32 %v1019, %v1040
      %v1057 = vmul.f32 %v1020, %v1041
      %1058 = vrot.lane.b32.xlu0 %v862, 15
      %v1059 = vpop.permute.xlu0 %1058
      %1060 = vrot.lane.b32.xlu0 %v881, 15
      %v1061 = vpop.permute.xlu0 %1060
      %1062 = vrot.lane.b32.xlu0 %v900, 15
      %v1063 = vpop.permute.xlu0 %1062
      %1064 = vrot.lane.b32.xlu0 %v919, 15
      %v1065 = vpop.permute.xlu0 %1064
      %1066 = vrot.lane.b32.xlu0 %v930, 15
      %v1067 = vpop.permute.xlu0 %1066
      %1068 = vrot.lane.b32.xlu0 %v931, 15
      %v1069 = vpop.permute.xlu0 %1068
      %1070 = vrot.lane.b32.xlu0 %v932, 15
      %v1071 = vpop.permute.xlu0 %1070
      %1072 = vrot.lane.b32.xlu0 %v933, 15
      %v1073 = vpop.permute.xlu0 %1072
      %v1074 = vsel %vm588, %v1059, %v1061
      %v1075 = vsel %vm588, %v1061, %v1063
      %v1076 = vsel %vm588, %v1063, %v1065
      %v1077 = vsel %vm588, %v1065, %v1067
      %v1078 = vsel %vm588, %v1067, %v1069
      %v1079 = vsel %vm588, %v1069, %v1071
      %v1080 = vsel %vm588, %v1071, %v1073
      %v1089 = vsel %vm588, 0.0, %v1059
      %v1090 = vld [vmem:[%s597] ss:$8 sm:$0xf]
      %v1091 = vld [vmem:[%s597] ss:$8 sm:$0xf0]
      %v1092 = vor.u32 %v1090, %v1091
      %v1094 = vperm.slane %v1092, 0
      %v1095 = vperm.slane %v1092, 1
      %v1096 = vperm.slane %v1092, 2
      %v1097 = vperm.slane %v1092, 3
      %v1098 = vperm.slane %v1092, 4
      %v1099 = vperm.slane %v1092, 5
      %v1100 = vperm.slane %v1092, 6
      %v1101 = vperm.slane %v1092, 7
      %v1110 = vmul.f32 %v1089, %v1094
      %v1111 = vmul.f32 %v1074, %v1095
      %v1112 = vmul.f32 %v1075, %v1096
      %v1113 = vmul.f32 %v1076, %v1097
      %v1114 = vmul.f32 %v1077, %v1098
      %v1115 = vmul.f32 %v1078, %v1099
      %v1116 = vmul.f32 %v1079, %v1100
      %v1117 = vmul.f32 %v1080, %v1101
      %1118 = vrot.lane.b32.xlu0 %v862, 1
      %v1119 = vpop.permute.xlu0 %1118
      %1120 = vrot.lane.b32.xlu0 %v881, 1
      %v1121 = vpop.permute.xlu0 %1120
      %1122 = vrot.lane.b32.xlu0 %v900, 1
      %v1123 = vpop.permute.xlu0 %1122
      %1124 = vrot.lane.b32.xlu0 %v919, 1
      %v1125 = vpop.permute.xlu0 %1124
      %1126 = vrot.lane.b32.xlu0 %v930, 1
      %v1127 = vpop.permute.xlu0 %1126
      %1128 = vrot.lane.b32.xlu0 %v931, 1
      %v1129 = vpop.permute.xlu0 %1128
      %1130 = vrot.lane.b32.xlu0 %v932, 1
      %v1131 = vpop.permute.xlu0 %1130
      %1132 = vrot.lane.b32.xlu0 %v933, 1
      %v1133 = vpop.permute.xlu0 %1132
      %v1134 = vsel %vm620, %v1119, %v1121
      %v1135 = vsel %vm620, %v1121, %v1123
      %v1136 = vsel %vm620, %v1123, %v1125
      %v1137 = vsel %vm620, %v1125, %v1127
      %v1138 = vsel %vm620, %v1127, %v1129
      %v1139 = vsel %vm620, %v1129, %v1131
      %v1140 = vsel %vm620, %v1131, %v1133
      %v1149 = vsel %vm620, 0.0, %v1119
      %v1150 = vld [vmem:[%s629] ss:$8 sm:$0xf]
      %v1151 = vld [vmem:[%s629] ss:$8 sm:$0xf0]
      %v1152 = vor.u32 %v1150, %v1151
      %v1154 = vperm.slane %v1152, 0
      %v1155 = vperm.slane %v1152, 1
      %v1156 = vperm.slane %v1152, 2
      %v1157 = vperm.slane %v1152, 3
      %v1158 = vperm.slane %v1152, 4
      %v1159 = vperm.slane %v1152, 5
      %v1160 = vperm.slane %v1152, 6
      %v1161 = vperm.slane %v1152, 7
      %v1170 = vmul.f32 %v1149, %v1154
      %v1171 = vmul.f32 %v1134, %v1155
      %v1172 = vmul.f32 %v1135, %v1156
      %v1173 = vmul.f32 %v1136, %v1157
      %v1174 = vmul.f32 %v1137, %v1158
      %v1175 = vmul.f32 %v1138, %v1159
      %v1176 = vmul.f32 %v1139, %v1160
      %v1177 = vmul.f32 %v1140, %v1161
      %1178 = vrot.lane.b32.xlu0 %v862, 127
      %v1179 = vpop.permute.xlu0 %1178
      %1180 = vrot.lane.b32.xlu0 %v881, 127
      %v1181 = vpop.permute.xlu0 %1180
      %1182 = vrot.lane.b32.xlu0 %v900, 127
      %v1183 = vpop.permute.xlu0 %1182
      %1184 = vrot.lane.b32.xlu0 %v919, 127
      %v1185 = vpop.permute.xlu0 %1184
      %1186 = vrot.lane.b32.xlu0 %v930, 127
      %v1187 = vpop.permute.xlu0 %1186
      %1188 = vrot.lane.b32.xlu0 %v931, 127
      %v1189 = vpop.permute.xlu0 %1188
      %1190 = vrot.lane.b32.xlu0 %v932, 127
      %v1191 = vpop.permute.xlu0 %1190
      %1192 = vrot.lane.b32.xlu0 %v933, 127
      %v1193 = vpop.permute.xlu0 %1192
      %v1194 = vsel %vm652, %v1179, %v1181
      %v1195 = vsel %vm652, %v1181, %v1183
      %v1196 = vsel %vm652, %v1183, %v1185
      %v1197 = vsel %vm652, %v1185, %v1187
      %v1198 = vsel %vm652, %v1187, %v1189
      %v1199 = vsel %vm652, %v1189, %v1191
      %v1200 = vsel %vm652, %v1191, %v1193
      %v1209 = vsel %vm652, %v1193, 0.0
      %v1210 = vld [vmem:[%s661] ss:$8 sm:$0xf]
      %v1211 = vld [vmem:[%s661] ss:$8 sm:$0xf0]
      %v1212 = vor.u32 %v1210, %v1211
      %v1214 = vperm.slane %v1212, 0
      %v1215 = vperm.slane %v1212, 1
      %v1216 = vperm.slane %v1212, 2
      %v1217 = vperm.slane %v1212, 3
      %v1218 = vperm.slane %v1212, 4
      %v1219 = vperm.slane %v1212, 5
      %v1220 = vperm.slane %v1212, 6
      %v1221 = vperm.slane %v1212, 7
      %v1230 = vmul.f32 %v1194, %v1214
      %v1231 = vmul.f32 %v1195, %v1215
      %v1232 = vmul.f32 %v1196, %v1216
      %v1233 = vmul.f32 %v1197, %v1217
      %v1234 = vmul.f32 %v1198, %v1218
      %v1235 = vmul.f32 %v1199, %v1219
      %v1236 = vmul.f32 %v1200, %v1220
      %v1237 = vmul.f32 %v1209, %v1221
      %1238 = vrot.lane.b32.xlu0 %v862, 113
      %v1239 = vpop.permute.xlu0 %1238
      %1240 = vrot.lane.b32.xlu0 %v881, 113
      %v1241 = vpop.permute.xlu0 %1240
      %1242 = vrot.lane.b32.xlu0 %v900, 113
      %v1243 = vpop.permute.xlu0 %1242
      %1244 = vrot.lane.b32.xlu0 %v919, 113
      %v1245 = vpop.permute.xlu0 %1244
      %1246 = vrot.lane.b32.xlu0 %v930, 113
      %v1247 = vpop.permute.xlu0 %1246
      %1248 = vrot.lane.b32.xlu0 %v931, 113
      %v1249 = vpop.permute.xlu0 %1248
      %1250 = vrot.lane.b32.xlu0 %v932, 113
      %v1251 = vpop.permute.xlu0 %1250
      %1252 = vrot.lane.b32.xlu0 %v933, 113
      %v1253 = vpop.permute.xlu0 %1252
      %v1254 = vsel %vm684, %v1239, %v1241
      %v1255 = vsel %vm684, %v1241, %v1243
      %v1256 = vsel %vm684, %v1243, %v1245
      %v1257 = vsel %vm684, %v1245, %v1247
      %v1258 = vsel %vm684, %v1247, %v1249
      %v1259 = vsel %vm684, %v1249, %v1251
      %v1260 = vsel %vm684, %v1251, %v1253
      %v1269 = vsel %vm684, %v1253, 0.0
      %s1270 = scalar_lea.vmem %s12, 64
      %v1271 = vld [vmem:[%s1270] ss:$8 sm:$0xf]
      %v1272 = vld [vmem:[%s1270] ss:$8 sm:$0xf0]
      %v1273 = vor.u32 %v1271, %v1272
      %v1275 = vperm.slane %v1273, 0
      %v1276 = vperm.slane %v1273, 1
      %v1277 = vperm.slane %v1273, 2
      %v1278 = vperm.slane %v1273, 3
      %v1279 = vperm.slane %v1273, 4
      %v1280 = vperm.slane %v1273, 5
      %v1281 = vperm.slane %v1273, 6
      %v1282 = vperm.slane %v1273, 7
      %v1291 = vmul.f32 %v1254, %v1275
      %v1292 = vmul.f32 %v1255, %v1276
      %v1293 = vmul.f32 %v1256, %v1277
      %v1294 = vmul.f32 %v1257, %v1278
      %v1295 = vmul.f32 %v1258, %v1279
      %v1296 = vmul.f32 %v1259, %v1280
      %v1297 = vmul.f32 %v1260, %v1281
      %v1298 = vmul.f32 %v1269, %v1282
      %1299 = vrot.lane.b32.xlu0 %v862, 112
      %v1300 = vpop.permute.xlu0 %1299
      %1301 = vrot.lane.b32.xlu0 %v881, 112
      %v1302 = vpop.permute.xlu0 %1301
      %1303 = vrot.lane.b32.xlu0 %v900, 112
      %v1304 = vpop.permute.xlu0 %1303
      %1305 = vrot.lane.b32.xlu0 %v919, 112
      %v1306 = vpop.permute.xlu0 %1305
      %1307 = vrot.lane.b32.xlu0 %v930, 112
      %v1308 = vpop.permute.xlu0 %1307
      %1309 = vrot.lane.b32.xlu0 %v931, 112
      %v1310 = vpop.permute.xlu0 %1309
      %1311 = vrot.lane.b32.xlu0 %v932, 112
      %v1312 = vpop.permute.xlu0 %1311
      %1313 = vrot.lane.b32.xlu0 %v933, 112
      %v1314 = vpop.permute.xlu0 %1313
      %v1315 = vsel %vm716, %v1300, %v1302
      %v1316 = vsel %vm716, %v1302, %v1304
      %v1317 = vsel %vm716, %v1304, %v1306
      %v1318 = vsel %vm716, %v1306, %v1308
      %v1319 = vsel %vm716, %v1308, %v1310
      %v1320 = vsel %vm716, %v1310, %v1312
      %v1321 = vsel %vm716, %v1312, %v1314
      %v1330 = vsel %vm716, %v1314, 0.0
      %s1331 = scalar_lea.vmem %s12, 65
      %v1332 = vld [vmem:[%s1331] ss:$8 sm:$0xf]
      %v1333 = vld [vmem:[%s1331] ss:$8 sm:$0xf0]
      %v1334 = vor.u32 %v1332, %v1333
      %v1336 = vperm.slane %v1334, 0
      %v1337 = vperm.slane %v1334, 1
      %v1338 = vperm.slane %v1334, 2
      %v1339 = vperm.slane %v1334, 3
      %v1340 = vperm.slane %v1334, 4
      %v1341 = vperm.slane %v1334, 5
      %v1342 = vperm.slane %v1334, 6
      %v1343 = vperm.slane %v1334, 7
      %v1352 = vmul.f32 %v1315, %v1336
      %v1353 = vmul.f32 %v1316, %v1337
      %v1354 = vmul.f32 %v1317, %v1338
      %v1355 = vmul.f32 %v1318, %v1339
      %v1356 = vmul.f32 %v1319, %v1340
      %v1357 = vmul.f32 %v1320, %v1341
      %v1358 = vmul.f32 %v1321, %v1342
      %v1359 = vmul.f32 %v1330, %v1343
      %1360 = vrot.lane.b32.xlu0 %v862, 111
      %v1361 = vpop.permute.xlu0 %1360
      %1362 = vrot.lane.b32.xlu0 %v881, 111
      %v1363 = vpop.permute.xlu0 %1362
      %1364 = vrot.lane.b32.xlu0 %v900, 111
      %v1365 = vpop.permute.xlu0 %1364
      %1366 = vrot.lane.b32.xlu0 %v919, 111
      %v1367 = vpop.permute.xlu0 %1366
      %1368 = vrot.lane.b32.xlu0 %v930, 111
      %v1369 = vpop.permute.xlu0 %1368
      %1370 = vrot.lane.b32.xlu0 %v931, 111
      %v1371 = vpop.permute.xlu0 %1370
      %1372 = vrot.lane.b32.xlu0 %v932, 111
      %v1373 = vpop.permute.xlu0 %1372
      %1374 = vrot.lane.b32.xlu0 %v933, 111
      %v1375 = vpop.permute.xlu0 %1374
      %v1376 = vsel %vm748, %v1361, %v1363
      %v1377 = vsel %vm748, %v1363, %v1365
      %v1378 = vsel %vm748, %v1365, %v1367
      %v1379 = vsel %vm748, %v1367, %v1369
      %v1380 = vsel %vm748, %v1369, %v1371
      %v1381 = vsel %vm748, %v1371, %v1373
      %v1382 = vsel %vm748, %v1373, %v1375
      %v1391 = vsel %vm748, %v1375, 0.0
      %s1392 = scalar_lea.vmem %s12, 66
      %v1393 = vld [vmem:[%s1392] ss:$8 sm:$0xf]
      %v1394 = vld [vmem:[%s1392] ss:$8 sm:$0xf0]
      %v1395 = vor.u32 %v1393, %v1394
      %v1397 = vperm.slane %v1395, 0
      %v1398 = vperm.slane %v1395, 1
      %v1399 = vperm.slane %v1395, 2
      %v1400 = vperm.slane %v1395, 3
      %v1401 = vperm.slane %v1395, 4
      %v1402 = vperm.slane %v1395, 5
      %v1403 = vperm.slane %v1395, 6
      %v1404 = vperm.slane %v1395, 7
      %v1413 = vmul.f32 %v1376, %v1397
      %v1414 = vmul.f32 %v1377, %v1398
      %v1415 = vmul.f32 %v1378, %v1399
      %v1416 = vmul.f32 %v1379, %v1400
      %v1417 = vmul.f32 %v1380, %v1401
      %v1418 = vmul.f32 %v1381, %v1402
      %v1419 = vmul.f32 %v1382, %v1403
      %v1420 = vmul.f32 %v1391, %v1404
      %v1429 = vrot.slane %v1050, 4
      %v1430 = vrot.slane %v1051, 4
      %v1431 = vrot.slane %v1052, 4
      %v1432 = vrot.slane %v1053, 4
      %v1433 = vrot.slane %v1054, 4
      %v1434 = vrot.slane %v1055, 4
      %v1435 = vrot.slane %v1056, 4
      %v1436 = vrot.slane %v1057, 4
      %v1453 = vrot.slane %v1170, 4
      %v1454 = vrot.slane %v1171, 4
      %v1455 = vrot.slane %v1172, 4
      %v1456 = vrot.slane %v1173, 4
      %v1457 = vrot.slane %v1174, 4
      %v1458 = vrot.slane %v1175, 4
      %v1459 = vrot.slane %v1176, 4
      %v1460 = vrot.slane %v1177, 4
      %v1477 = vrot.slane %v1230, 4
      %v1478 = vrot.slane %v1231, 4
      %v1479 = vrot.slane %v1232, 4
      %v1480 = vrot.slane %v1233, 4
      %v1481 = vrot.slane %v1234, 4
      %v1482 = vrot.slane %v1235, 4
      %v1483 = vrot.slane %v1236, 4
      %v1484 = vrot.slane %v1237, 4
      %v1501 = vrot.slane %v1352, 4
      %v1502 = vrot.slane %v1353, 4
      %v1503 = vrot.slane %v1354, 4
      %v1504 = vrot.slane %v1355, 4
      %v1505 = vrot.slane %v1356, 4
      %v1506 = vrot.slane %v1357, 4
      %v1507 = vrot.slane %v1358, 4
      %v1508 = vrot.slane %v1359, 4
      %v1517 = vsel %vm837, %v990, %v1429
      %v1518 = vsel %vm837, %v991, %v1430
      %v1519 = vsel %vm837, %v992, %v1431
      %v1520 = vsel %vm837, %v993, %v1432
      %v1521 = vsel %vm837, %v994, %v1433
      %v1522 = vsel %vm837, %v995, %v1434
      %v1523 = vsel %vm837, %v996, %v1435
      %v1524 = vsel %vm837, %v997, %v1436
      %v1525 = vsel %vm837, %v1110, %v1453
      %v1526 = vsel %vm837, %v1111, %v1454
      %v1527 = vsel %vm837, %v1112, %v1455
      %v1528 = vsel %vm837, %v1113, %v1456
      %v1529 = vsel %vm837, %v1114, %v1457
      %v1530 = vsel %vm837, %v1115, %v1458
      %v1531 = vsel %vm837, %v1116, %v1459
      %v1532 = vsel %vm837, %v1117, %v1460
      %v1533 = vsel %vm837, %v862, %v1477
      %v1534 = vsel %vm837, %v881, %v1478
      %v1535 = vsel %vm837, %v900, %v1479
      %v1536 = vsel %vm837, %v919, %v1480
      %v1537 = vsel %vm837, %v930, %v1481
      %v1538 = vsel %vm837, %v931, %v1482
      %v1539 = vsel %vm837, %v932, %v1483
      %v1540 = vsel %vm837, %v933, %v1484
      %v1541 = vsel %vm837, %v1291, %v1501
      %v1542 = vsel %vm837, %v1292, %v1502
      %v1543 = vsel %vm837, %v1293, %v1503
      %v1544 = vsel %vm837, %v1294, %v1504
      %v1545 = vsel %vm837, %v1295, %v1505
      %v1546 = vsel %vm837, %v1296, %v1506
      %v1547 = vsel %vm837, %v1297, %v1507
      %v1548 = vsel %vm837, %v1298, %v1508
      %v1549 = vpack.c.bf16 %v1525, %v1517
      %v1550 = vpack.c.bf16 %v1526, %v1518
      %v1551 = vpack.c.bf16 %v1527, %v1519
      %v1552 = vpack.c.bf16 %v1528, %v1520
      %v1553 = vpack.c.bf16 %v1529, %v1521
      %v1554 = vpack.c.bf16 %v1530, %v1522
      %v1555 = vpack.c.bf16 %v1531, %v1523
      %v1556 = vpack.c.bf16 %v1532, %v1524
      %v1557 = vpack.c.bf16 %v1541, %v1533
      %v1558 = vpack.c.bf16 %v1542, %v1534
      %v1559 = vpack.c.bf16 %v1543, %v1535
      %v1560 = vpack.c.bf16 %v1544, %v1536
      %v1561 = vpack.c.bf16 %v1545, %v1537
      %v1562 = vpack.c.bf16 %v1546, %v1538
      %v1563 = vpack.c.bf16 %v1547, %v1539
      %v1564 = vpack.c.bf16 %v1548, %v1540
      %v1565 = vpack.c.bf16 %v1413, %v1413
      %v1566 = vpack.c.bf16 %v1414, %v1414
      %v1567 = vpack.c.bf16 %v1415, %v1415
      %v1568 = vpack.c.bf16 %v1416, %v1416
      %v1569 = vpack.c.bf16 %v1417, %v1417
      %v1570 = vpack.c.bf16 %v1418, %v1418
      %v1571 = vpack.c.bf16 %v1419, %v1419
      %v1572 = vpack.c.bf16 %v1420, %v1420
      %v1573 = vld [vmem:[%s3] sm:$0x3]
      %v1574 = vld [vmem:[%s4] sm:$0xf]
      %1576 = vset.pattern.permute.xlu0 0
      %1577 = vperm.xlu0 %1576, %v1574
      %v1578 = vpop.permute.xlu0 %1577
      %vm1580 = vcmask 293888
      %v1582 = vsel %vm1580, %v1573, 0
      %vm1584 = vcmask 1041408
      %v1586 = vsel %vm1584, %v1565, 0
      %v1589 = vsel %vm1584, %v1566, 0
      %v1592 = vsel %vm1584, %v1567, 0
      %v1595 = vsel %vm1584, %v1568, 0
      %v1598 = vsel %vm1584, %v1569, 0
      %v1601 = vsel %vm1584, %v1570, 0
      %v1604 = vsel %vm1584, %v1571, 0
      %v1607 = vsel %vm1584, %v1572, 0
      %1609 = vmatpush.bf16.msra.mxu0 0
      %1610 = vmatpush.bf16.msra.mxu0 0
      %1611 = vmatpush.bf16.msra.mxu0 0
      %1612 = vmatpush.bf16.msra.mxu0 0
      %1613 = vmatpush.bf16.msra.mxu0 0
      %1614 = vmatpush.bf16.msra.mxu0 %v1586
      %1615 = vmatpush.bf16.msra.mxu0 %v1557
      %1616 = vmatpush.bf16.msra.mxu0 %v1549
      %1617 = vmatmul.bf16.gmra.mxu0 %v1582
      %v1618 = vpop.f32.mrf.mxu0
      %v1619 = vadd.f32 %v1578, %v1618
      %v1620 = vpop.f32.mrf.mxu0
      %1621 = vdwg.mxu0
      %1622 = vmatpush.bf16.msra.mxu0 0
      %1623 = vmatpush.bf16.msra.mxu0 0
      %1624 = vmatpush.bf16.msra.mxu0 0
      %1625 = vmatpush.bf16.msra.mxu0 0
      %1626 = vmatpush.bf16.msra.mxu0 0
      %1627 = vmatpush.bf16.msra.mxu0 %v1589
      %1628 = vmatpush.bf16.msra.mxu0 %v1558
      %1629 = vmatpush.bf16.msra.mxu0 %v1550
      %1630 = vmatmul.bf16.gmra.mxu0 %v1582
      %v1631 = vpop.f32.mrf.mxu0
      %v1632 = vadd.f32 %v1578, %v1631
      %v1633 = vpop.f32.mrf.mxu0
      %1634 = vdwg.mxu0
      %1635 = vmatpush.bf16.msra.mxu0 0
      %1636 = vmatpush.bf16.msra.mxu0 0
      %1637 = vmatpush.bf16.msra.mxu0 0
      %1638 = vmatpush.bf16.msra.mxu0 0
      %1639 = vmatpush.bf16.msra.mxu0 0
      %1640 = vmatpush.bf16.msra.mxu0 %v1592
      %1641 = vmatpush.bf16.msra.mxu0 %v1559
      %1642 = vmatpush.bf16.msra.mxu0 %v1551
      %1643 = vmatmul.bf16.gmra.mxu0 %v1582
      %v1644 = vpop.f32.mrf.mxu0
      %v1645 = vadd.f32 %v1578, %v1644
      %v1646 = vpop.f32.mrf.mxu0
      %1647 = vdwg.mxu0
      %1648 = vmatpush.bf16.msra.mxu0 0
      %1649 = vmatpush.bf16.msra.mxu0 0
      %1650 = vmatpush.bf16.msra.mxu0 0
      %1651 = vmatpush.bf16.msra.mxu0 0
      %1652 = vmatpush.bf16.msra.mxu0 0
      %1653 = vmatpush.bf16.msra.mxu0 %v1595
      %1654 = vmatpush.bf16.msra.mxu0 %v1560
      %1655 = vmatpush.bf16.msra.mxu0 %v1552
      %1656 = vmatmul.bf16.gmra.mxu0 %v1582
      %v1657 = vpop.f32.mrf.mxu0
      %v1658 = vadd.f32 %v1578, %v1657
      %v1659 = vpop.f32.mrf.mxu0
      %1660 = vdwg.mxu0
      %1661 = vmatpush.bf16.msra.mxu0 0
      %1662 = vmatpush.bf16.msra.mxu0 0
      %1663 = vmatpush.bf16.msra.mxu0 0
      %1664 = vmatpush.bf16.msra.mxu0 0
      %1665 = vmatpush.bf16.msra.mxu0 0
      %1666 = vmatpush.bf16.msra.mxu0 %v1598
      %1667 = vmatpush.bf16.msra.mxu0 %v1561
      %1668 = vmatpush.bf16.msra.mxu0 %v1553
      %1669 = vmatmul.bf16.gmra.mxu0 %v1582
      %v1670 = vpop.f32.mrf.mxu0
      %v1671 = vadd.f32 %v1578, %v1670
      %v1672 = vpop.f32.mrf.mxu0
      %1673 = vdwg.mxu0
      %1674 = vmatpush.bf16.msra.mxu0 0
      %1675 = vmatpush.bf16.msra.mxu0 0
      %1676 = vmatpush.bf16.msra.mxu0 0
      %1677 = vmatpush.bf16.msra.mxu0 0
      %1678 = vmatpush.bf16.msra.mxu0 0
      %1679 = vmatpush.bf16.msra.mxu0 %v1601
      %1680 = vmatpush.bf16.msra.mxu0 %v1562
      %1681 = vmatpush.bf16.msra.mxu0 %v1554
      %1682 = vmatmul.bf16.gmra.mxu0 %v1582
      %v1683 = vpop.f32.mrf.mxu0
      %v1684 = vadd.f32 %v1578, %v1683
      %v1685 = vpop.f32.mrf.mxu0
      %1686 = vdwg.mxu0
      %1687 = vmatpush.bf16.msra.mxu0 0
      %1688 = vmatpush.bf16.msra.mxu0 0
      %1689 = vmatpush.bf16.msra.mxu0 0
      %1690 = vmatpush.bf16.msra.mxu0 0
      %1691 = vmatpush.bf16.msra.mxu0 0
      %1692 = vmatpush.bf16.msra.mxu0 %v1604
      %1693 = vmatpush.bf16.msra.mxu0 %v1563
      %1694 = vmatpush.bf16.msra.mxu0 %v1555
      %1695 = vmatmul.bf16.gmra.mxu0 %v1582
      %v1696 = vpop.f32.mrf.mxu0
      %v1697 = vadd.f32 %v1578, %v1696
      %v1698 = vpop.f32.mrf.mxu0
      %1699 = vdwg.mxu0
      %1700 = vmatpush.bf16.msra.mxu0 0
      %1701 = vmatpush.bf16.msra.mxu0 0
      %1702 = vmatpush.bf16.msra.mxu0 0
      %1703 = vmatpush.bf16.msra.mxu0 0
      %1704 = vmatpush.bf16.msra.mxu0 0
      %1705 = vmatpush.bf16.msra.mxu0 %v1607
      %1706 = vmatpush.bf16.msra.mxu0 %v1564
      %1707 = vmatpush.bf16.msra.mxu0 %v1556
      %1708 = vmatmul.bf16.gmra.mxu0 %v1582
      %v1709 = vpop.f32.mrf.mxu0
      %v1710 = vadd.f32 %v1578, %v1709
      %v1711 = vpop.f32.mrf.mxu0
      %1712 = vdwg.mxu0
      %vm1713 = vcmp.ge.f32.partialorder %v1619, 0.0
      %vm1714 = vcmp.ge.f32.partialorder %v1632, 0.0
      %vm1715 = vcmp.ge.f32.partialorder %v1645, 0.0
      %vm1716 = vcmp.ge.f32.partialorder %v1658, 0.0
      %vm1717 = vcmp.ge.f32.partialorder %v1671, 0.0
      %vm1718 = vcmp.ge.f32.partialorder %v1684, 0.0
      %vm1719 = vcmp.ge.f32.partialorder %v1697, 0.0
      %vm1720 = vcmp.ge.f32.partialorder %v1710, 0.0
      %v1721 = vmul.f32 %v1619, 0.25
      %v1722 = vmul.f32 %v1632, 0.25
      %v1723 = vmul.f32 %v1645, 0.25
      %v1724 = vmul.f32 %v1658, 0.25
      %v1725 = vmul.f32 %v1671, 0.25
      %v1726 = vmul.f32 %v1684, 0.25
      %v1727 = vmul.f32 %v1697, 0.25
      %v1728 = vmul.f32 %v1710, 0.25
      %v1729 = vsel %vm1713, %v1619, %v1721
      %v1730 = vsel %vm1714, %v1632, %v1722
      %v1731 = vsel %vm1715, %v1645, %v1723
      %v1732 = vsel %vm1716, %v1658, %v1724
      %v1733 = vsel %vm1717, %v1671, %v1725
      %v1734 = vsel %vm1718, %v1684, %v1726
      %v1735 = vsel %vm1719, %v1697, %v1727
      %v1736 = vsel %vm1720, %v1710, %v1728
      %v1745 = vrot.slane %v1729, 4
      %v1746 = vrot.slane %v1730, 4
      %v1747 = vrot.slane %v1731, 4
      %v1748 = vrot.slane %v1732, 4
      %v1749 = vrot.slane %v1733, 4
      %v1750 = vrot.slane %v1734, 4
      %v1751 = vrot.slane %v1735, 4
      %v1752 = vrot.slane %v1736, 4
      %v1761 = vsel %vm837, %v862, %v1745
      %v1762 = vsel %vm837, %v881, %v1746
      %v1763 = vsel %vm837, %v900, %v1747
      %v1764 = vsel %vm837, %v919, %v1748
      %v1765 = vsel %vm837, %v930, %v1749
      %v1766 = vsel %vm837, %v931, %v1750
      %v1767 = vsel %vm837, %v932, %v1751
      %v1768 = vsel %vm837, %v933, %v1752
      %1777 = vrot.lane.b32.xlu0 %v1761, 17
      %v1778 = vpop.permute.xlu0 %1777
      %1779 = vrot.lane.b32.xlu0 %v1762, 17
      %v1780 = vpop.permute.xlu0 %1779
      %1781 = vrot.lane.b32.xlu0 %v1763, 17
      %v1782 = vpop.permute.xlu0 %1781
      %1783 = vrot.lane.b32.xlu0 %v1764, 17
      %v1784 = vpop.permute.xlu0 %1783
      %1785 = vrot.lane.b32.xlu0 %v1765, 17
      %v1786 = vpop.permute.xlu0 %1785
      %1787 = vrot.lane.b32.xlu0 %v1766, 17
      %v1788 = vpop.permute.xlu0 %1787
      %1789 = vrot.lane.b32.xlu0 %v1767, 17
      %v1790 = vpop.permute.xlu0 %1789
      %1791 = vrot.lane.b32.xlu0 %v1768, 17
      %v1792 = vpop.permute.xlu0 %1791
      %v1793 = vsel %vm525, %v1778, %v1780
      %v1794 = vsel %vm525, %v1780, %v1782
      %v1795 = vsel %vm525, %v1782, %v1784
      %v1796 = vsel %vm525, %v1784, %v1786
      %v1797 = vsel %vm525, %v1786, %v1788
      %v1798 = vsel %vm525, %v1788, %v1790
      %v1799 = vsel %vm525, %v1790, %v1792
      %v1808 = vsel %vm525, 0.0, %v1778
      %v1809 = vmul.f32 %v1808, %v974
      %v1810 = vmul.f32 %v1793, %v975
      %v1811 = vmul.f32 %v1794, %v976
      %v1812 = vmul.f32 %v1795, %v977
      %v1813 = vmul.f32 %v1796, %v978
      %v1814 = vmul.f32 %v1797, %v979
      %v1815 = vmul.f32 %v1798, %v980
      %v1816 = vmul.f32 %v1799, %v981
      %1817 = vrot.lane.b32.xlu0 %v1761, 16
      %v1818 = vpop.permute.xlu0 %1817
      %1819 = vrot.lane.b32.xlu0 %v1762, 16
      %v1820 = vpop.permute.xlu0 %1819
      %1821 = vrot.lane.b32.xlu0 %v1763, 16
      %v1822 = vpop.permute.xlu0 %1821
      %1823 = vrot.lane.b32.xlu0 %v1764, 16
      %v1824 = vpop.permute.xlu0 %1823
      %1825 = vrot.lane.b32.xlu0 %v1765, 16
      %v1826 = vpop.permute.xlu0 %1825
      %1827 = vrot.lane.b32.xlu0 %v1766, 16
      %v1828 = vpop.permute.xlu0 %1827
      %1829 = vrot.lane.b32.xlu0 %v1767, 16
      %v1830 = vpop.permute.xlu0 %1829
      %1831 = vrot.lane.b32.xlu0 %v1768, 16
      %v1832 = vpop.permute.xlu0 %1831
      %v1833 = vsel %vm556, %v1818, %v1820
      %v1834 = vsel %vm556, %v1820, %v1822
      %v1835 = vsel %vm556, %v1822, %v1824
      %v1836 = vsel %vm556, %v1824, %v1826
      %v1837 = vsel %vm556, %v1826, %v1828
      %v1838 = vsel %vm556, %v1828, %v1830
      %v1839 = vsel %vm556, %v1830, %v1832
      %v1848 = vsel %vm556, 0.0, %v1818
      %v1849 = vmul.f32 %v1848, %v1034
      %v1850 = vmul.f32 %v1833, %v1035
      %v1851 = vmul.f32 %v1834, %v1036
      %v1852 = vmul.f32 %v1835, %v1037
      %v1853 = vmul.f32 %v1836, %v1038
      %v1854 = vmul.f32 %v1837, %v1039
      %v1855 = vmul.f32 %v1838, %v1040
      %v1856 = vmul.f32 %v1839, %v1041
      %1857 = vrot.lane.b32.xlu0 %v1761, 15
      %v1858 = vpop.permute.xlu0 %1857
      %1859 = vrot.lane.b32.xlu0 %v1762, 15
      %v1860 = vpop.permute.xlu0 %1859
      %1861 = vrot.lane.b32.xlu0 %v1763, 15
      %v1862 = vpop.permute.xlu0 %1861
      %1863 = vrot.lane.b32.xlu0 %v1764, 15
      %v1864 = vpop.permute.xlu0 %1863
      %1865 = vrot.lane.b32.xlu0 %v1765, 15
      %v1866 = vpop.permute.xlu0 %1865
      %1867 = vrot.lane.b32.xlu0 %v1766, 15
      %v1868 = vpop.permute.xlu0 %1867
      %1869 = vrot.lane.b32.xlu0 %v1767, 15
      %v1870 = vpop.permute.xlu0 %1869
      %1871 = vrot.lane.b32.xlu0 %v1768, 15
      %v1872 = vpop.permute.xlu0 %1871
      %v1873 = vsel %vm588, %v1858, %v1860
      %v1874 = vsel %vm588, %v1860, %v1862
      %v1875 = vsel %vm588, %v1862, %v1864
      %v1876 = vsel %vm588, %v1864, %v1866
      %v1877 = vsel %vm588, %v1866, %v1868
      %v1878 = vsel %vm588, %v1868, %v1870
      %v1879 = vsel %vm588, %v1870, %v1872
      %v1888 = vsel %vm588, 0.0, %v1858
      %v1889 = vmul.f32 %v1888, %v1094
      %v1890 = vmul.f32 %v1873, %v1095
      %v1891 = vmul.f32 %v1874, %v1096
      %v1892 = vmul.f32 %v1875, %v1097
      %v1893 = vmul.f32 %v1876, %v1098
      %v1894 = vmul.f32 %v1877, %v1099
      %v1895 = vmul.f32 %v1878, %v1100
      %v1896 = vmul.f32 %v1879, %v1101
      %1897 = vrot.lane.b32.xlu0 %v1761, 1
      %v1898 = vpop.permute.xlu0 %1897
      %1899 = vrot.lane.b32.xlu0 %v1762, 1
      %v1900 = vpop.permute.xlu0 %1899
      %1901 = vrot.lane.b32.xlu0 %v1763, 1
      %v1902 = vpop.permute.xlu0 %1901
      %1903 = vrot.lane.b32.xlu0 %v1764, 1
      %v1904 = vpop.permute.xlu0 %1903
      %1905 = vrot.lane.b32.xlu0 %v1765, 1
      %v1906 = vpop.permute.xlu0 %1905
      %1907 = vrot.lane.b32.xlu0 %v1766, 1
      %v1908 = vpop.permute.xlu0 %1907
      %1909 = vrot.lane.b32.xlu0 %v1767, 1
      %v1910 = vpop.permute.xlu0 %1909
      %1911 = vrot.lane.b32.xlu0 %v1768, 1
      %v1912 = vpop.permute.xlu0 %1911
      %v1913 = vsel %vm620, %v1898, %v1900
      %v1914 = vsel %vm620, %v1900, %v1902
      %v1915 = vsel %vm620, %v1902, %v1904
      %v1916 = vsel %vm620, %v1904, %v1906
      %v1917 = vsel %vm620, %v1906, %v1908
      %v1918 = vsel %vm620, %v1908, %v1910
      %v1919 = vsel %vm620, %v1910, %v1912
      %v1928 = vsel %vm620, 0.0, %v1898
      %v1929 = vmul.f32 %v1928, %v1154
      %v1930 = vmul.f32 %v1913, %v1155
      %v1931 = vmul.f32 %v1914, %v1156
      %v1932 = vmul.f32 %v1915, %v1157
      %v1933 = vmul.f32 %v1916, %v1158
      %v1934 = vmul.f32 %v1917, %v1159
      %v1935 = vmul.f32 %v1918, %v1160
      %v1936 = vmul.f32 %v1919, %v1161
      %1937 = vrot.lane.b32.xlu0 %v1761, 127
      %v1938 = vpop.permute.xlu0 %1937
      %1939 = vrot.lane.b32.xlu0 %v1762, 127
      %v1940 = vpop.permute.xlu0 %1939
      %1941 = vrot.lane.b32.xlu0 %v1763, 127
      %v1942 = vpop.permute.xlu0 %1941
      %1943 = vrot.lane.b32.xlu0 %v1764, 127
      %v1944 = vpop.permute.xlu0 %1943
      %1945 = vrot.lane.b32.xlu0 %v1765, 127
      %v1946 = vpop.permute.xlu0 %1945
      %1947 = vrot.lane.b32.xlu0 %v1766, 127
      %v1948 = vpop.permute.xlu0 %1947
      %1949 = vrot.lane.b32.xlu0 %v1767, 127
      %v1950 = vpop.permute.xlu0 %1949
      %1951 = vrot.lane.b32.xlu0 %v1768, 127
      %v1952 = vpop.permute.xlu0 %1951
      %v1953 = vsel %vm652, %v1938, %v1940
      %v1954 = vsel %vm652, %v1940, %v1942
      %v1955 = vsel %vm652, %v1942, %v1944
      %v1956 = vsel %vm652, %v1944, %v1946
      %v1957 = vsel %vm652, %v1946, %v1948
      %v1958 = vsel %vm652, %v1948, %v1950
      %v1959 = vsel %vm652, %v1950, %v1952
      %v1968 = vsel %vm652, %v1952, 0.0
      %v1969 = vmul.f32 %v1953, %v1214
      %v1970 = vmul.f32 %v1954, %v1215
      %v1971 = vmul.f32 %v1955, %v1216
      %v1972 = vmul.f32 %v1956, %v1217
      %v1973 = vmul.f32 %v1957, %v1218
      %v1974 = vmul.f32 %v1958, %v1219
      %v1975 = vmul.f32 %v1959, %v1220
      %v1976 = vmul.f32 %v1968, %v1221
      %1977 = vrot.lane.b32.xlu0 %v1761, 113
      %v1978 = vpop.permute.xlu0 %1977
      %1979 = vrot.lane.b32.xlu0 %v1762, 113
      %v1980 = vpop.permute.xlu0 %1979
      %1981 = vrot.lane.b32.xlu0 %v1763, 113
      %v1982 = vpop.permute.xlu0 %1981
      %1983 = vrot.lane.b32.xlu0 %v1764, 113
      %v1984 = vpop.permute.xlu0 %1983
      %1985 = vrot.lane.b32.xlu0 %v1765, 113
      %v1986 = vpop.permute.xlu0 %1985
      %1987 = vrot.lane.b32.xlu0 %v1766, 113
      %v1988 = vpop.permute.xlu0 %1987
      %1989 = vrot.lane.b32.xlu0 %v1767, 113
      %v1990 = vpop.permute.xlu0 %1989
      %1991 = vrot.lane.b32.xlu0 %v1768, 113
      %v1992 = vpop.permute.xlu0 %1991
      %v1993 = vsel %vm684, %v1978, %v1980
      %v1994 = vsel %vm684, %v1980, %v1982
      %v1995 = vsel %vm684, %v1982, %v1984
      %v1996 = vsel %vm684, %v1984, %v1986
      %v1997 = vsel %vm684, %v1986, %v1988
      %v1998 = vsel %vm684, %v1988, %v1990
      %v1999 = vsel %vm684, %v1990, %v1992
      %v2008 = vsel %vm684, %v1992, 0.0
      %v2009 = vmul.f32 %v1993, %v1275
      %v2010 = vmul.f32 %v1994, %v1276
      %v2011 = vmul.f32 %v1995, %v1277
      %v2012 = vmul.f32 %v1996, %v1278
      %v2013 = vmul.f32 %v1997, %v1279
      %v2014 = vmul.f32 %v1998, %v1280
      %v2015 = vmul.f32 %v1999, %v1281
      %v2016 = vmul.f32 %v2008, %v1282
      %2017 = vrot.lane.b32.xlu0 %v1761, 112
      %v2018 = vpop.permute.xlu0 %2017
      %2019 = vrot.lane.b32.xlu0 %v1762, 112
      %v2020 = vpop.permute.xlu0 %2019
      %2021 = vrot.lane.b32.xlu0 %v1763, 112
      %v2022 = vpop.permute.xlu0 %2021
      %2023 = vrot.lane.b32.xlu0 %v1764, 112
      %v2024 = vpop.permute.xlu0 %2023
      %2025 = vrot.lane.b32.xlu0 %v1765, 112
      %v2026 = vpop.permute.xlu0 %2025
      %2027 = vrot.lane.b32.xlu0 %v1766, 112
      %v2028 = vpop.permute.xlu0 %2027
      %2029 = vrot.lane.b32.xlu0 %v1767, 112
      %v2030 = vpop.permute.xlu0 %2029
      %2031 = vrot.lane.b32.xlu0 %v1768, 112
      %v2032 = vpop.permute.xlu0 %2031
      %v2033 = vsel %vm716, %v2018, %v2020
      %v2034 = vsel %vm716, %v2020, %v2022
      %v2035 = vsel %vm716, %v2022, %v2024
      %v2036 = vsel %vm716, %v2024, %v2026
      %v2037 = vsel %vm716, %v2026, %v2028
      %v2038 = vsel %vm716, %v2028, %v2030
      %v2039 = vsel %vm716, %v2030, %v2032
      %v2048 = vsel %vm716, %v2032, 0.0
      %v2049 = vmul.f32 %v2033, %v1336
      %v2050 = vmul.f32 %v2034, %v1337
      %v2051 = vmul.f32 %v2035, %v1338
      %v2052 = vmul.f32 %v2036, %v1339
      %v2053 = vmul.f32 %v2037, %v1340
      %v2054 = vmul.f32 %v2038, %v1341
      %v2055 = vmul.f32 %v2039, %v1342
      %v2056 = vmul.f32 %v2048, %v1343
      %2057 = vrot.lane.b32.xlu0 %v1761, 111
      %v2058 = vpop.permute.xlu0 %2057
      %2059 = vrot.lane.b32.xlu0 %v1762, 111
      %v2060 = vpop.permute.xlu0 %2059
      %2061 = vrot.lane.b32.xlu0 %v1763, 111
      %v2062 = vpop.permute.xlu0 %2061
      %2063 = vrot.lane.b32.xlu0 %v1764, 111
      %v2064 = vpop.permute.xlu0 %2063
      %2065 = vrot.lane.b32.xlu0 %v1765, 111
      %v2066 = vpop.permute.xlu0 %2065
      %2067 = vrot.lane.b32.xlu0 %v1766, 111
      %v2068 = vpop.permute.xlu0 %2067
      %2069 = vrot.lane.b32.xlu0 %v1767, 111
      %v2070 = vpop.permute.xlu0 %2069
      %2071 = vrot.lane.b32.xlu0 %v1768, 111
      %v2072 = vpop.permute.xlu0 %2071
      %v2073 = vsel %vm748, %v2058, %v2060
      %v2074 = vsel %vm748, %v2060, %v2062
      %v2075 = vsel %vm748, %v2062, %v2064
      %v2076 = vsel %vm748, %v2064, %v2066
      %v2077 = vsel %vm748, %v2066, %v2068
      %v2078 = vsel %vm748, %v2068, %v2070
      %v2079 = vsel %vm748, %v2070, %v2072
      %v2088 = vsel %vm748, %v2072, 0.0
      %v2089 = vmul.f32 %v2073, %v1397
      %v2090 = vmul.f32 %v2074, %v1398
      %v2091 = vmul.f32 %v2075, %v1399
      %v2092 = vmul.f32 %v2076, %v1400
      %v2093 = vmul.f32 %v2077, %v1401
      %v2094 = vmul.f32 %v2078, %v1402
      %v2095 = vmul.f32 %v2079, %v1403
      %v2096 = vmul.f32 %v2088, %v1404
      %v2097 = vpack.c.bf16 %v1849, %v1809
      %v2098 = vpack.c.bf16 %v1850, %v1810
      %v2099 = vpack.c.bf16 %v1851, %v1811
      %v2100 = vpack.c.bf16 %v1852, %v1812
      %v2101 = vpack.c.bf16 %v1853, %v1813
      %v2102 = vpack.c.bf16 %v1854, %v1814
      %v2103 = vpack.c.bf16 %v1855, %v1815
      %v2104 = vpack.c.bf16 %v1856, %v1816
      %v2105 = vpack.c.bf16 %v1929, %v1889
      %v2106 = vpack.c.bf16 %v1930, %v1890
      %v2107 = vpack.c.bf16 %v1931, %v1891
      %v2108 = vpack.c.bf16 %v1932, %v1892
      %v2109 = vpack.c.bf16 %v1933, %v1893
      %v2110 = vpack.c.bf16 %v1934, %v1894
      %v2111 = vpack.c.bf16 %v1935, %v1895
      %v2112 = vpack.c.bf16 %v1936, %v1896
      %v2113 = vpack.c.bf16 %v1969, %v1761
      %v2114 = vpack.c.bf16 %v1970, %v1762
      %v2115 = vpack.c.bf16 %v1971, %v1763
      %v2116 = vpack.c.bf16 %v1972, %v1764
      %v2117 = vpack.c.bf16 %v1973, %v1765
      %v2118 = vpack.c.bf16 %v1974, %v1766
      %v2119 = vpack.c.bf16 %v1975, %v1767
      %v2120 = vpack.c.bf16 %v1976, %v1768
      %v2121 = vpack.c.bf16 %v2049, %v2009
      %v2122 = vpack.c.bf16 %v2050, %v2010
      %v2123 = vpack.c.bf16 %v2051, %v2011
      %v2124 = vpack.c.bf16 %v2052, %v2012
      %v2125 = vpack.c.bf16 %v2053, %v2013
      %v2126 = vpack.c.bf16 %v2054, %v2014
      %v2127 = vpack.c.bf16 %v2055, %v2015
      %v2128 = vpack.c.bf16 %v2056, %v2016
      %v2129 = vpack.c.bf16 %v2089, %v2089
      %v2130 = vpack.c.bf16 %v2090, %v2090
      %v2131 = vpack.c.bf16 %v2091, %v2091
      %v2132 = vpack.c.bf16 %v2092, %v2092
      %v2133 = vpack.c.bf16 %v2093, %v2093
      %v2134 = vpack.c.bf16 %v2094, %v2094
      %v2135 = vpack.c.bf16 %v2095, %v2095
      %v2136 = vpack.c.bf16 %v2096, %v2096
      %v2137 = vld [vmem:[%s5] sm:$0x3]
      %v2138 = vld [vmem:[%s6] sm:$0xf]
      %2140 = vset.pattern.permute.xlu0 0
      %2141 = vperm.xlu0 %2140, %v2138
      %v2142 = vpop.permute.xlu0 %2141
      %v2145 = vsel %vm830, %v2137, 0
      %v2148 = vsel %vm837, %v2129, 0
      %v2151 = vsel %vm837, %v2130, 0
      %v2154 = vsel %vm837, %v2131, 0
      %v2157 = vsel %vm837, %v2132, 0
      %v2160 = vsel %vm837, %v2133, 0
      %v2163 = vsel %vm837, %v2134, 0
      %v2166 = vsel %vm837, %v2135, 0
      %v2169 = vsel %vm837, %v2136, 0
      %2171 = vmatpush.bf16.msra.mxu0 0
      %2172 = vmatpush.bf16.msra.mxu0 0
      %2173 = vmatpush.bf16.msra.mxu0 0
      %2174 = vmatpush.bf16.msra.mxu0 %v2148
      %2175 = vmatpush.bf16.msra.mxu0 %v2121
      %2176 = vmatpush.bf16.msra.mxu0 %v2113
      %2177 = vmatpush.bf16.msra.mxu0 %v2105
      %2178 = vmatpush.bf16.msra.mxu0 %v2097
      %2179 = vmatmul.bf16.gmra.mxu0 %v2145
      %v2180 = vpop.f32.mrf.mxu0
      %v2181 = vadd.f32 %v2142, %v2180
      %v2182 = vpop.f32.mrf.mxu0
      %2183 = vdwg.mxu0
      %2184 = vmatpush.bf16.msra.mxu0 0
      %2185 = vmatpush.bf16.msra.mxu0 0
      %2186 = vmatpush.bf16.msra.mxu0 0
      %2187 = vmatpush.bf16.msra.mxu0 %v2151
      %2188 = vmatpush.bf16.msra.mxu0 %v2122
      %2189 = vmatpush.bf16.msra.mxu0 %v2114
      %2190 = vmatpush.bf16.msra.mxu0 %v2106
      %2191 = vmatpush.bf16.msra.mxu0 %v2098
      %2192 = vmatmul.bf16.gmra.mxu0 %v2145
      %v2193 = vpop.f32.mrf.mxu0
      %v2194 = vadd.f32 %v2142, %v2193
      %v2195 = vpop.f32.mrf.mxu0
      %2196 = vdwg.mxu0
      %2197 = vmatpush.bf16.msra.mxu0 0
      %2198 = vmatpush.bf16.msra.mxu0 0
      %2199 = vmatpush.bf16.msra.mxu0 0
      %2200 = vmatpush.bf16.msra.mxu0 %v2154
      %2201 = vmatpush.bf16.msra.mxu0 %v2123
      %2202 = vmatpush.bf16.msra.mxu0 %v2115
      %2203 = vmatpush.bf16.msra.mxu0 %v2107
      %2204 = vmatpush.bf16.msra.mxu0 %v2099
      %2205 = vmatmul.bf16.gmra.mxu0 %v2145
      %v2206 = vpop.f32.mrf.mxu0
      %v2207 = vadd.f32 %v2142, %v2206
      %v2208 = vpop.f32.mrf.mxu0
      %2209 = vdwg.mxu0
      %2210 = vmatpush.bf16.msra.mxu0 0
      %2211 = vmatpush.bf16.msra.mxu0 0
      %2212 = vmatpush.bf16.msra.mxu0 0
      %2213 = vmatpush.bf16.msra.mxu0 %v2157
      %2214 = vmatpush.bf16.msra.mxu0 %v2124
      %2215 = vmatpush.bf16.msra.mxu0 %v2116
      %2216 = vmatpush.bf16.msra.mxu0 %v2108
      %2217 = vmatpush.bf16.msra.mxu0 %v2100
      %2218 = vmatmul.bf16.gmra.mxu0 %v2145
      %v2219 = vpop.f32.mrf.mxu0
      %v2220 = vadd.f32 %v2142, %v2219
      %v2221 = vpop.f32.mrf.mxu0
      %2222 = vdwg.mxu0
      %2223 = vmatpush.bf16.msra.mxu0 0
      %2224 = vmatpush.bf16.msra.mxu0 0
      %2225 = vmatpush.bf16.msra.mxu0 0
      %2226 = vmatpush.bf16.msra.mxu0 %v2160
      %2227 = vmatpush.bf16.msra.mxu0 %v2125
      %2228 = vmatpush.bf16.msra.mxu0 %v2117
      %2229 = vmatpush.bf16.msra.mxu0 %v2109
      %2230 = vmatpush.bf16.msra.mxu0 %v2101
      %2231 = vmatmul.bf16.gmra.mxu0 %v2145
      %v2232 = vpop.f32.mrf.mxu0
      %v2233 = vadd.f32 %v2142, %v2232
      %v2234 = vpop.f32.mrf.mxu0
      %2235 = vdwg.mxu0
      %2236 = vmatpush.bf16.msra.mxu0 0
      %2237 = vmatpush.bf16.msra.mxu0 0
      %2238 = vmatpush.bf16.msra.mxu0 0
      %2239 = vmatpush.bf16.msra.mxu0 %v2163
      %2240 = vmatpush.bf16.msra.mxu0 %v2126
      %2241 = vmatpush.bf16.msra.mxu0 %v2118
      %2242 = vmatpush.bf16.msra.mxu0 %v2110
      %2243 = vmatpush.bf16.msra.mxu0 %v2102
      %2244 = vmatmul.bf16.gmra.mxu0 %v2145
      %v2245 = vpop.f32.mrf.mxu0
      %v2246 = vadd.f32 %v2142, %v2245
      %v2247 = vpop.f32.mrf.mxu0
      %2248 = vdwg.mxu0
      %2249 = vmatpush.bf16.msra.mxu0 0
      %2250 = vmatpush.bf16.msra.mxu0 0
      %2251 = vmatpush.bf16.msra.mxu0 0
      %2252 = vmatpush.bf16.msra.mxu0 %v2166
      %2253 = vmatpush.bf16.msra.mxu0 %v2127
      %2254 = vmatpush.bf16.msra.mxu0 %v2119
      %2255 = vmatpush.bf16.msra.mxu0 %v2111
      %2256 = vmatpush.bf16.msra.mxu0 %v2103
      %2257 = vmatmul.bf16.gmra.mxu0 %v2145
      %v2258 = vpop.f32.mrf.mxu0
      %v2259 = vadd.f32 %v2142, %v2258
      %v2260 = vpop.f32.mrf.mxu0
      %2261 = vdwg.mxu0
      %2262 = vmatpush.bf16.msra.mxu0 0
      %2263 = vmatpush.bf16.msra.mxu0 0
      %2264 = vmatpush.bf16.msra.mxu0 0
      %2265 = vmatpush.bf16.msra.mxu0 %v2169
      %2266 = vmatpush.bf16.msra.mxu0 %v2128
      %2267 = vmatpush.bf16.msra.mxu0 %v2120
      %2268 = vmatpush.bf16.msra.mxu0 %v2112
      %2269 = vmatpush.bf16.msra.mxu0 %v2104
      %2270 = vmatmul.bf16.gmra.mxu0 %v2145
      %v2271 = vpop.f32.mrf.mxu0
      %v2272 = vadd.f32 %v2142, %v2271
      %v2273 = vpop.f32.mrf.mxu0
      %2274 = vdwg.mxu0
      %v2275 = vadd.f32 %v2181, %v862
      %v2276 = vadd.f32 %v2194, %v881
      %v2277 = vadd.f32 %v2207, %v900
      %v2278 = vadd.f32 %v2220, %v919
      %v2279 = vadd.f32 %v2233, %v930
      %v2280 = vadd.f32 %v2246, %v931
      %v2281 = vadd.f32 %v2259, %v932
      %v2282 = vadd.f32 %v2272, %v933
      %vm2283 = vcmp.ge.f32.partialorder %v2275, 0.0
      %vm2284 = vcmp.ge.f32.partialorder %v2276, 0.0
      %vm2285 = vcmp.ge.f32.partialorder %v2277, 0.0
      %vm2286 = vcmp.ge.f32.partialorder %v2278, 0.0
      %vm2287 = vcmp.ge.f32.partialorder %v2279, 0.0
      %vm2288 = vcmp.ge.f32.partialorder %v2280, 0.0
      %vm2289 = vcmp.ge.f32.partialorder %v2281, 0.0
      %vm2290 = vcmp.ge.f32.partialorder %v2282, 0.0
      %v2291 = vmul.f32 %v2275, 0.25
      %v2292 = vmul.f32 %v2276, 0.25
      %v2293 = vmul.f32 %v2277, 0.25
      %v2294 = vmul.f32 %v2278, 0.25
      %v2295 = vmul.f32 %v2279, 0.25
      %v2296 = vmul.f32 %v2280, 0.25
      %v2297 = vmul.f32 %v2281, 0.25
      %v2298 = vmul.f32 %v2282, 0.25
      %v2299 = vsel %vm2283, %v2275, %v2291
      %v2300 = vsel %vm2284, %v2276, %v2292
      %v2301 = vsel %vm2285, %v2277, %v2293
      %v2302 = vsel %vm2286, %v2278, %v2294
      %v2303 = vsel %vm2287, %v2279, %v2295
      %v2304 = vsel %vm2288, %v2280, %v2296
      %v2305 = vsel %vm2289, %v2281, %v2297
      %v2306 = vsel %vm2290, %v2282, %v2298
      %v2307 = vsel %vm837, %v860, 0.0
      %v2308 = vsel %vm837, %v879, 0.0
      %v2309 = vadd.f32 %v2307, %v2308
      %2310 = vadd.xlane.f32.xlu0 %v2309
      %v2311 = vpop.xlane.xlu0 %2310
      %v2312 = vrcp.pop 256.0
      %v2313 = vmul.f32 256.0, %v2312
      %v2314 = vsub.f32 1.0, %v2313
      %v2315 = vmul.f32 %v2312, %v2314
      %v2316 = vadd.f32 %v2312, %v2315
      %vm2317 = vweird.f32 %v2312
      %v2318 = vsel %vm2317, %v2312, %v2316
      %v2319 = vmul.f32 %v2311, %v2318
      %v2320 = vsub.f32 %v860, %v2319
      %v2321 = vsub.f32 %v879, %v2319
      %v2322 = vmul.f32 %v2320, %v2320
      %v2323 = vmul.f32 %v2321, %v2321
      %v2324 = vsel %vm837, %v2322, 0.0
      %v2325 = vsel %vm837, %v2323, 0.0
      %v2326 = vadd.f32 %v2324, %v2325
      %2327 = vadd.xlane.f32.xlu0 %v2326
      %v2328 = vpop.xlane.xlu0 %2327
      %v2329 = vmul.f32 %v2328, %v2318
      %v2330 = vadd.f32 %v2329, 1e-05
      %v2331 = vrsqrt.pop %v2330
      %v2332 = vmul.f32 %v2331, %v2330
      %v2333 = vmul.f32 %v2332, %v2331
      %v2334 = vmul.f32 0.5, %v2333
      %v2335 = vsub.f32 1.5, %v2334
      %v2336 = vmul.f32 %v2331, %v2335
      %vm2337 = vweird.f32 %v2330
      %vm2338 = vweird.f32 %v2331
      %vm2339 = vmor %vm2337, %vm2338
      %v2340 = vsel %vm2339, %v2331, %v2336
      %v2341 = vmul.f32 %v2320, %v2340
      %v2342 = vmul.f32 %v2321, %v2340
      %v2343 = vsel %vm837, %v898, 0.0
      %v2344 = vsel %vm837, %v917, 0.0
      %v2345 = vadd.f32 %v2343, %v2344
      %2346 = vadd.xlane.f32.xlu0 %v2345
      %v2347 = vpop.xlane.xlu0 %2346
      %v2348 = vmul.f32 %v2347, %v2318
      %v2349 = vsub.f32 %v898, %v2348
      %v2350 = vsub.f32 %v917, %v2348
      %v2351 = vmul.f32 %v2349, %v2349
      %v2352 = vmul.f32 %v2350, %v2350
      %v2353 = vsel %vm837, %v2351, 0.0
      %v2354 = vsel %vm837, %v2352, 0.0
      %v2355 = vadd.f32 %v2353, %v2354
      %2356 = vadd.xlane.f32.xlu0 %v2355
      %v2357 = vpop.xlane.xlu0 %2356
      %v2358 = vmul.f32 %v2357, %v2318
      %v2359 = vadd.f32 %v2358, 1e-05
      %v2360 = vrsqrt.pop %v2359
      %v2361 = vmul.f32 %v2360, %v2359
      %v2362 = vmul.f32 %v2361, %v2360
      %v2363 = vmul.f32 0.5, %v2362
      %v2364 = vsub.f32 1.5, %v2363
      %v2365 = vmul.f32 %v2360, %v2364
      %vm2366 = vweird.f32 %v2359
      %vm2367 = vweird.f32 %v2360
      %vm2368 = vmor %vm2366, %vm2367
      %v2369 = vsel %vm2368, %v2360, %v2365
      %v2370 = vmul.f32 %v2349, %v2369
      %v2371 = vmul.f32 %v2350, %v2369
      %v2372 = vld [vmem:[%s7] sm:$0xf]
      %2374 = vset.pattern.permute.xlu0 0
      %2375 = vperm.xlu0 %2374, %v2372
      %v2376 = vpop.permute.xlu0 %2375
      %v2378 = vmul.f32 %v2341, %v2376
      %v2379 = vmul.f32 %v2342, %v2376
      %v2380 = vmul.f32 %v2370, %v2376
      %v2381 = vmul.f32 %v2371, %v2376
      %v2382 = vld [vmem:[%s8] sm:$0xf]
      %2384 = vset.pattern.permute.xlu0 0
      %2385 = vperm.xlu0 %2384, %v2382
      %v2386 = vpop.permute.xlu0 %2385
      %v2388 = vadd.f32 %v2378, %v2386
      %v2389 = vadd.f32 %v2379, %v2386
      %v2390 = vadd.f32 %v2380, %v2386
      %v2391 = vadd.f32 %v2381, %v2386
      %v2396 = vrot.slane %v2303, 4
      %v2397 = vrot.slane %v2304, 4
      %v2398 = vrot.slane %v2305, 4
      %v2399 = vrot.slane %v2306, 4
      %v2404 = vsel %vm837, %v2388, %v860
      %v2405 = vsel %vm837, %v2389, %v879
      %v2406 = vsel %vm837, %v2390, %v898
      %v2407 = vsel %vm837, %v2391, %v917
      %v2408 = vsel %vm837, %v2299, %v2396
      %v2409 = vsel %vm837, %v2300, %v2397
      %v2410 = vsel %vm837, %v2301, %v2398
      %v2411 = vsel %vm837, %v2302, %v2399
      %vm2412 = vcmp.ge.f32.partialorder %v2404, 0.0
      %vm2413 = vcmp.ge.f32.partialorder %v2405, 0.0
      %vm2414 = vcmp.ge.f32.partialorder %v2406, 0.0
      %vm2415 = vcmp.ge.f32.partialorder %v2407, 0.0
      %vm2416 = vcmp.ge.f32.partialorder %v2408, 0.0
      %vm2417 = vcmp.ge.f32.partialorder %v2409, 0.0
      %vm2418 = vcmp.ge.f32.partialorder %v2410, 0.0
      %vm2419 = vcmp.ge.f32.partialorder %v2411, 0.0
      %v2420 = vmul.f32 %v2404, 0.2
      %v2421 = vmul.f32 %v2405, 0.2
      %v2422 = vmul.f32 %v2406, 0.2
      %v2423 = vmul.f32 %v2407, 0.2
      %v2424 = vmul.f32 %v2408, 0.2
      %v2425 = vmul.f32 %v2409, 0.2
      %v2426 = vmul.f32 %v2410, 0.2
      %v2427 = vmul.f32 %v2411, 0.2
      %v2428 = vsel %vm2412, %v2404, %v2420
      %v2429 = vsel %vm2413, %v2405, %v2421
      %v2430 = vsel %vm2414, %v2406, %v2422
      %v2431 = vsel %vm2415, %v2407, %v2423
      %v2432 = vsel %vm2416, %v2408, %v2424
      %v2433 = vsel %vm2417, %v2409, %v2425
      %v2434 = vsel %vm2418, %v2410, %v2426
      %v2435 = vsel %vm2419, %v2411, %v2427
      %2444 = vrot.lane.b32.xlu0 %v2428, 17
      %v2445 = vpop.permute.xlu0 %2444
      %2446 = vrot.lane.b32.xlu0 %v2429, 17
      %v2447 = vpop.permute.xlu0 %2446
      %2448 = vrot.lane.b32.xlu0 %v2430, 17
      %v2449 = vpop.permute.xlu0 %2448
      %2450 = vrot.lane.b32.xlu0 %v2431, 17
      %v2451 = vpop.permute.xlu0 %2450
      %2452 = vrot.lane.b32.xlu0 %v2432, 17
      %v2453 = vpop.permute.xlu0 %2452
      %2454 = vrot.lane.b32.xlu0 %v2433, 17
      %v2455 = vpop.permute.xlu0 %2454
      %2456 = vrot.lane.b32.xlu0 %v2434, 17
      %v2457 = vpop.permute.xlu0 %2456
      %2458 = vrot.lane.b32.xlu0 %v2435, 17
      %v2459 = vpop.permute.xlu0 %2458
      %v2460 = vsel %vm525, %v2445, %v2447
      %v2461 = vsel %vm525, %v2447, %v2449
      %v2462 = vsel %vm525, %v2449, %v2451
      %v2463 = vsel %vm525, %v2453, %v2455
      %v2464 = vsel %vm525, %v2455, %v2457
      %v2465 = vsel %vm525, %v2457, %v2459
      %v2474 = vsel %vm525, 0.0, %v2445
      %v2475 = vsel %vm525, 0.0, %v2453
      %v2476 = vmul.f32 %v2474, %v536
      %v2477 = vmul.f32 %v2460, %v537
      %v2478 = vmul.f32 %v2461, %v538
      %v2479 = vmul.f32 %v2462, %v539
      %v2480 = vmul.f32 %v2475, %v536
      %v2481 = vmul.f32 %v2463, %v537
      %v2482 = vmul.f32 %v2464, %v538
      %v2483 = vmul.f32 %v2465, %v539
      %2484 = vrot.lane.b32.xlu0 %v2428, 16
      %v2485 = vpop.permute.xlu0 %2484
      %2486 = vrot.lane.b32.xlu0 %v2429, 16
      %v2487 = vpop.permute.xlu0 %2486
      %2488 = vrot.lane.b32.xlu0 %v2430, 16
      %v2489 = vpop.permute.xlu0 %2488
      %2490 = vrot.lane.b32.xlu0 %v2431, 16
      %v2491 = vpop.permute.xlu0 %2490
      %2492 = vrot.lane.b32.xlu0 %v2432, 16
      %v2493 = vpop.permute.xlu0 %2492
      %2494 = vrot.lane.b32.xlu0 %v2433, 16
      %v2495 = vpop.permute.xlu0 %2494
      %2496 = vrot.lane.b32.xlu0 %v2434, 16
      %v2497 = vpop.permute.xlu0 %2496
      %2498 = vrot.lane.b32.xlu0 %v2435, 16
      %v2499 = vpop.permute.xlu0 %2498
      %v2500 = vsel %vm556, %v2485, %v2487
      %v2501 = vsel %vm556, %v2487, %v2489
      %v2502 = vsel %vm556, %v2489, %v2491
      %v2503 = vsel %vm556, %v2493, %v2495
      %v2504 = vsel %vm556, %v2495, %v2497
      %v2505 = vsel %vm556, %v2497, %v2499
      %v2514 = vsel %vm556, 0.0, %v2485
      %v2515 = vsel %vm556, 0.0, %v2493
      %v2516 = vmul.f32 %v2514, %v568
      %v2517 = vmul.f32 %v2500, %v569
      %v2518 = vmul.f32 %v2501, %v570
      %v2519 = vmul.f32 %v2502, %v571
      %v2520 = vmul.f32 %v2515, %v568
      %v2521 = vmul.f32 %v2503, %v569
      %v2522 = vmul.f32 %v2504, %v570
      %v2523 = vmul.f32 %v2505, %v571
      %2524 = vrot.lane.b32.xlu0 %v2428, 15
      %v2525 = vpop.permute.xlu0 %2524
      %2526 = vrot.lane.b32.xlu0 %v2429, 15
      %v2527 = vpop.permute.xlu0 %2526
      %2528 = vrot.lane.b32.xlu0 %v2430, 15
      %v2529 = vpop.permute.xlu0 %2528
      %2530 = vrot.lane.b32.xlu0 %v2431, 15
      %v2531 = vpop.permute.xlu0 %2530
      %2532 = vrot.lane.b32.xlu0 %v2432, 15
      %v2533 = vpop.permute.xlu0 %2532
      %2534 = vrot.lane.b32.xlu0 %v2433, 15
      %v2535 = vpop.permute.xlu0 %2534
      %2536 = vrot.lane.b32.xlu0 %v2434, 15
      %v2537 = vpop.permute.xlu0 %2536
      %2538 = vrot.lane.b32.xlu0 %v2435, 15
      %v2539 = vpop.permute.xlu0 %2538
      %v2540 = vsel %vm588, %v2525, %v2527
      %v2541 = vsel %vm588, %v2527, %v2529
      %v2542 = vsel %vm588, %v2529, %v2531
      %v2543 = vsel %vm588, %v2533, %v2535
      %v2544 = vsel %vm588, %v2535, %v2537
      %v2545 = vsel %vm588, %v2537, %v2539
      %v2554 = vsel %vm588, 0.0, %v2525
      %v2555 = vsel %vm588, 0.0, %v2533
      %v2556 = vmul.f32 %v2554, %v600
      %v2557 = vmul.f32 %v2540, %v601
      %v2558 = vmul.f32 %v2541, %v602
      %v2559 = vmul.f32 %v2542, %v603
      %v2560 = vmul.f32 %v2555, %v600
      %v2561 = vmul.f32 %v2543, %v601
      %v2562 = vmul.f32 %v2544, %v602
      %v2563 = vmul.f32 %v2545, %v603
      %2564 = vrot.lane.b32.xlu0 %v2428, 1
      %v2565 = vpop.permute.xlu0 %2564
      %2566 = vrot.lane.b32.xlu0 %v2429, 1
      %v2567 = vpop.permute.xlu0 %2566
      %2568 = vrot.lane.b32.xlu0 %v2430, 1
      %v2569 = vpop.permute.xlu0 %2568
      %2570 = vrot.lane.b32.xlu0 %v2431, 1
      %v2571 = vpop.permute.xlu0 %2570
      %2572 = vrot.lane.b32.xlu0 %v2432, 1
      %v2573 = vpop.permute.xlu0 %2572
      %2574 = vrot.lane.b32.xlu0 %v2433, 1
      %v2575 = vpop.permute.xlu0 %2574
      %2576 = vrot.lane.b32.xlu0 %v2434, 1
      %v2577 = vpop.permute.xlu0 %2576
      %2578 = vrot.lane.b32.xlu0 %v2435, 1
      %v2579 = vpop.permute.xlu0 %2578
      %v2580 = vsel %vm620, %v2565, %v2567
      %v2581 = vsel %vm620, %v2567, %v2569
      %v2582 = vsel %vm620, %v2569, %v2571
      %v2583 = vsel %vm620, %v2573, %v2575
      %v2584 = vsel %vm620, %v2575, %v2577
      %v2585 = vsel %vm620, %v2577, %v2579
      %v2594 = vsel %vm620, 0.0, %v2565
      %v2595 = vsel %vm620, 0.0, %v2573
      %v2596 = vmul.f32 %v2594, %v632
      %v2597 = vmul.f32 %v2580, %v633
      %v2598 = vmul.f32 %v2581, %v634
      %v2599 = vmul.f32 %v2582, %v635
      %v2600 = vmul.f32 %v2595, %v632
      %v2601 = vmul.f32 %v2583, %v633
      %v2602 = vmul.f32 %v2584, %v634
      %v2603 = vmul.f32 %v2585, %v635
      %2604 = vrot.lane.b32.xlu0 %v2428, 127
      %v2605 = vpop.permute.xlu0 %2604
      %2606 = vrot.lane.b32.xlu0 %v2429, 127
      %v2607 = vpop.permute.xlu0 %2606
      %2608 = vrot.lane.b32.xlu0 %v2430, 127
      %v2609 = vpop.permute.xlu0 %2608
      %2610 = vrot.lane.b32.xlu0 %v2431, 127
      %v2611 = vpop.permute.xlu0 %2610
      %2612 = vrot.lane.b32.xlu0 %v2432, 127
      %v2613 = vpop.permute.xlu0 %2612
      %2614 = vrot.lane.b32.xlu0 %v2433, 127
      %v2615 = vpop.permute.xlu0 %2614
      %2616 = vrot.lane.b32.xlu0 %v2434, 127
      %v2617 = vpop.permute.xlu0 %2616
      %2618 = vrot.lane.b32.xlu0 %v2435, 127
      %v2619 = vpop.permute.xlu0 %2618
      %v2620 = vsel %vm652, %v2605, %v2607
      %v2621 = vsel %vm652, %v2607, %v2609
      %v2622 = vsel %vm652, %v2609, %v2611
      %v2623 = vsel %vm652, %v2613, %v2615
      %v2624 = vsel %vm652, %v2615, %v2617
      %v2625 = vsel %vm652, %v2617, %v2619
      %v2634 = vsel %vm652, %v2611, 0.0
      %v2635 = vsel %vm652, %v2619, 0.0
      %v2636 = vmul.f32 %v2620, %v664
      %v2637 = vmul.f32 %v2621, %v665
      %v2638 = vmul.f32 %v2622, %v666
      %v2639 = vmul.f32 %v2634, %v667
      %v2640 = vmul.f32 %v2623, %v664
      %v2641 = vmul.f32 %v2624, %v665
      %v2642 = vmul.f32 %v2625, %v666
      %v2643 = vmul.f32 %v2635, %v667
      %2644 = vrot.lane.b32.xlu0 %v2428, 113
      %v2645 = vpop.permute.xlu0 %2644
      %2646 = vrot.lane.b32.xlu0 %v2429, 113
      %v2647 = vpop.permute.xlu0 %2646
      %2648 = vrot.lane.b32.xlu0 %v2430, 113
      %v2649 = vpop.permute.xlu0 %2648
      %2650 = vrot.lane.b32.xlu0 %v2431, 113
      %v2651 = vpop.permute.xlu0 %2650
      %2652 = vrot.lane.b32.xlu0 %v2432, 113
      %v2653 = vpop.permute.xlu0 %2652
      %2654 = vrot.lane.b32.xlu0 %v2433, 113
      %v2655 = vpop.permute.xlu0 %2654
      %2656 = vrot.lane.b32.xlu0 %v2434, 113
      %v2657 = vpop.permute.xlu0 %2656
      %2658 = vrot.lane.b32.xlu0 %v2435, 113
      %v2659 = vpop.permute.xlu0 %2658
      %v2660 = vsel %vm684, %v2645, %v2647
      %v2661 = vsel %vm684, %v2647, %v2649
      %v2662 = vsel %vm684, %v2649, %v2651
      %v2663 = vsel %vm684, %v2653, %v2655
      %v2664 = vsel %vm684, %v2655, %v2657
      %v2665 = vsel %vm684, %v2657, %v2659
      %v2674 = vsel %vm684, %v2651, 0.0
      %v2675 = vsel %vm684, %v2659, 0.0
      %v2676 = vmul.f32 %v2660, %v696
      %v2677 = vmul.f32 %v2661, %v697
      %v2678 = vmul.f32 %v2662, %v698
      %v2679 = vmul.f32 %v2674, %v699
      %v2680 = vmul.f32 %v2663, %v696
      %v2681 = vmul.f32 %v2664, %v697
      %v2682 = vmul.f32 %v2665, %v698
      %v2683 = vmul.f32 %v2675, %v699
      %2684 = vrot.lane.b32.xlu0 %v2428, 112
      %v2685 = vpop.permute.xlu0 %2684
      %2686 = vrot.lane.b32.xlu0 %v2429, 112
      %v2687 = vpop.permute.xlu0 %2686
      %2688 = vrot.lane.b32.xlu0 %v2430, 112
      %v2689 = vpop.permute.xlu0 %2688
      %2690 = vrot.lane.b32.xlu0 %v2431, 112
      %v2691 = vpop.permute.xlu0 %2690
      %2692 = vrot.lane.b32.xlu0 %v2432, 112
      %v2693 = vpop.permute.xlu0 %2692
      %2694 = vrot.lane.b32.xlu0 %v2433, 112
      %v2695 = vpop.permute.xlu0 %2694
      %2696 = vrot.lane.b32.xlu0 %v2434, 112
      %v2697 = vpop.permute.xlu0 %2696
      %2698 = vrot.lane.b32.xlu0 %v2435, 112
      %v2699 = vpop.permute.xlu0 %2698
      %v2700 = vsel %vm716, %v2685, %v2687
      %v2701 = vsel %vm716, %v2687, %v2689
      %v2702 = vsel %vm716, %v2689, %v2691
      %v2703 = vsel %vm716, %v2693, %v2695
      %v2704 = vsel %vm716, %v2695, %v2697
      %v2705 = vsel %vm716, %v2697, %v2699
      %v2714 = vsel %vm716, %v2691, 0.0
      %v2715 = vsel %vm716, %v2699, 0.0
      %v2716 = vmul.f32 %v2700, %v728
      %v2717 = vmul.f32 %v2701, %v729
      %v2718 = vmul.f32 %v2702, %v730
      %v2719 = vmul.f32 %v2714, %v731
      %v2720 = vmul.f32 %v2703, %v728
      %v2721 = vmul.f32 %v2704, %v729
      %v2722 = vmul.f32 %v2705, %v730
      %v2723 = vmul.f32 %v2715, %v731
      %2724 = vrot.lane.b32.xlu0 %v2428, 111
      %v2725 = vpop.permute.xlu0 %2724
      %2726 = vrot.lane.b32.xlu0 %v2429, 111
      %v2727 = vpop.permute.xlu0 %2726
      %2728 = vrot.lane.b32.xlu0 %v2430, 111
      %v2729 = vpop.permute.xlu0 %2728
      %2730 = vrot.lane.b32.xlu0 %v2431, 111
      %v2731 = vpop.permute.xlu0 %2730
      %2732 = vrot.lane.b32.xlu0 %v2432, 111
      %v2733 = vpop.permute.xlu0 %2732
      %2734 = vrot.lane.b32.xlu0 %v2433, 111
      %v2735 = vpop.permute.xlu0 %2734
      %2736 = vrot.lane.b32.xlu0 %v2434, 111
      %v2737 = vpop.permute.xlu0 %2736
      %2738 = vrot.lane.b32.xlu0 %v2435, 111
      %v2739 = vpop.permute.xlu0 %2738
      %v2740 = vsel %vm748, %v2725, %v2727
      %v2741 = vsel %vm748, %v2727, %v2729
      %v2742 = vsel %vm748, %v2729, %v2731
      %v2743 = vsel %vm748, %v2733, %v2735
      %v2744 = vsel %vm748, %v2735, %v2737
      %v2745 = vsel %vm748, %v2737, %v2739
      %v2754 = vsel %vm748, %v2731, 0.0
      %v2755 = vsel %vm748, %v2739, 0.0
      %v2756 = vmul.f32 %v2740, %v760
      %v2757 = vmul.f32 %v2741, %v761
      %v2758 = vmul.f32 %v2742, %v762
      %v2759 = vmul.f32 %v2754, %v763
      %v2760 = vmul.f32 %v2743, %v760
      %v2761 = vmul.f32 %v2744, %v761
      %v2762 = vmul.f32 %v2745, %v762
      %v2763 = vmul.f32 %v2755, %v763
      %v2764 = vpack.c.bf16 %v2480, %v2476
      %v2765 = vpack.c.bf16 %v2481, %v2477
      %v2766 = vpack.c.bf16 %v2482, %v2478
      %v2767 = vpack.c.bf16 %v2483, %v2479
      %v2768 = vpack.c.bf16 %v2520, %v2516
      %v2769 = vpack.c.bf16 %v2521, %v2517
      %v2770 = vpack.c.bf16 %v2522, %v2518
      %v2771 = vpack.c.bf16 %v2523, %v2519
      %v2772 = vpack.c.bf16 %v2560, %v2556
      %v2773 = vpack.c.bf16 %v2561, %v2557
      %v2774 = vpack.c.bf16 %v2562, %v2558
      %v2775 = vpack.c.bf16 %v2563, %v2559
      %v2776 = vpack.c.bf16 %v2600, %v2596
      %v2777 = vpack.c.bf16 %v2601, %v2597
      %v2778 = vpack.c.bf16 %v2602, %v2598
      %v2779 = vpack.c.bf16 %v2603, %v2599
      %v2780 = vpack.c.bf16 %v2432, %v2428
      %v2781 = vpack.c.bf16 %v2433, %v2429
      %v2782 = vpack.c.bf16 %v2434, %v2430
      %v2783 = vpack.c.bf16 %v2435, %v2431
      %v2784 = vpack.c.bf16 %v2640, %v2636
      %v2785 = vpack.c.bf16 %v2641, %v2637
      %v2786 = vpack.c.bf16 %v2642, %v2638
      %v2787 = vpack.c.bf16 %v2643, %v2639
      %v2788 = vpack.c.bf16 %v2680, %v2676
      %v2789 = vpack.c.bf16 %v2681, %v2677
      %v2790 = vpack.c.bf16 %v2682, %v2678
      %v2791 = vpack.c.bf16 %v2683, %v2679
      %v2792 = vpack.c.bf16 %v2720, %v2716
      %v2793 = vpack.c.bf16 %v2721, %v2717
      %v2794 = vpack.c.bf16 %v2722, %v2718
      %v2795 = vpack.c.bf16 %v2723, %v2719
      %v2796 = vpack.c.bf16 %v2760, %v2756
      %v2797 = vpack.c.bf16 %v2761, %v2757
      %v2798 = vpack.c.bf16 %v2762, %v2758
      %v2799 = vpack.c.bf16 %v2763, %v2759
      %v2800 = vld [vmem:[%s9] sm:$0xff]
      %v2801 = vld [vmem:[%s9 + $0x8] sm:$0xff]
      %v2802 = vld [vmem:[%s10] sm:$0xff]
      %v2803 = vld [vmem:[%s10 + $0x8] sm:$0xff]
      %2805 = vset.pattern.permute.xlu0 0
      %2806 = vperm.xlu0 %2805, %v2802
      %v2807 = vpop.permute.xlu0 %2806
      %2810 = vset.pattern.permute.xlu0 0
      %2811 = vperm.xlu0 %2810, %v2803
      %v2812 = vpop.permute.xlu0 %2811
      %v2816 = vunpack.c.l.b16 %v2800
      %v2817 = vunpack.c.h.b16 %v2800
      %v2818 = vunpack.c.l.b16 %v2801
      %v2819 = vunpack.c.h.b16 %v2801
      %v2820 = vpack.c.b16 %v2818, %v2816
      %v2821 = vpack.c.b16 %v2819, %v2817
      %v2824 = vsel %vm556, %v2821, 0
      %2826 = vmatpush.bf16.msra.mxu0 %v2792
      %2827 = vmatpush.bf16.msra.mxu0 %v2788
      %2828 = vmatpush.bf16.msra.mxu0 %v2784
      %2829 = vmatpush.bf16.msra.mxu0 %v2780
      %2830 = vmatpush.bf16.msra.mxu0 %v2776
      %2831 = vmatpush.bf16.msra.mxu0 %v2772
      %2832 = vmatpush.bf16.msra.mxu0 %v2768
      %2833 = vmatpush.bf16.msra.mxu0 %v2764
      %2834 = vmatmul.bf16.gmra.mxu0 %v2820
      %v2835 = vpop.f32.mrf.mxu0
      %v2836 = vadd.f32 %v2807, %v2835
      %v2837 = vpop.f32.mrf.mxu0
      %v2838 = vadd.f32 %v2812, %v2837
      %2839 = vdwg.mxu0
      %2840 = vmatpush.bf16.msra.mxu0 0
      %2841 = vmatpush.bf16.msra.mxu0 0
      %2842 = vmatpush.bf16.msra.mxu0 0
      %2843 = vmatpush.bf16.msra.mxu0 0
      %2844 = vmatpush.bf16.msra.mxu0 0
      %2845 = vmatpush.bf16.msra.mxu0 0
      %2846 = vmatpush.bf16.msra.mxu0 0
      %2847 = vmatpush.bf16.msra.mxu0 %v2796
      %2848 = vmatmul.bf16.gmra.mxu0 %v2824
      %v2849 = vpop.f32.mrf.mxu0
      %v2850 = vadd.f32 %v2836, %v2849
      %v2851 = vpop.f32.mrf.mxu0
      %v2852 = vadd.f32 %v2838, %v2851
      %2853 = vdwg.mxu0
      %2854 = vmatpush.bf16.msra.mxu0 %v2793
      %2855 = vmatpush.bf16.msra.mxu0 %v2789
      %2856 = vmatpush.bf16.msra.mxu0 %v2785
      %2857 = vmatpush.bf16.msra.mxu0 %v2781
      %2858 = vmatpush.bf16.msra.mxu0 %v2777
      %2859 = vmatpush.bf16.msra.mxu0 %v2773
      %2860 = vmatpush.bf16.msra.mxu0 %v2769
      %2861 = vmatpush.bf16.msra.mxu0 %v2765
      %2862 = vmatmul.bf16.gmra.mxu0 %v2820
      %v2863 = vpop.f32.mrf.mxu0
      %v2864 = vadd.f32 %v2807, %v2863
      %v2865 = vpop.f32.mrf.mxu0
      %v2866 = vadd.f32 %v2812, %v2865
      %2867 = vdwg.mxu0
      %2868 = vmatpush.bf16.msra.mxu0 0
      %2869 = vmatpush.bf16.msra.mxu0 0
      %2870 = vmatpush.bf16.msra.mxu0 0
      %2871 = vmatpush.bf16.msra.mxu0 0
      %2872 = vmatpush.bf16.msra.mxu0 0
      %2873 = vmatpush.bf16.msra.mxu0 0
      %2874 = vmatpush.bf16.msra.mxu0 0
      %2875 = vmatpush.bf16.msra.mxu0 %v2797
      %2876 = vmatmul.bf16.gmra.mxu0 %v2824
      %v2877 = vpop.f32.mrf.mxu0
      %v2878 = vadd.f32 %v2864, %v2877
      %v2879 = vpop.f32.mrf.mxu0
      %v2880 = vadd.f32 %v2866, %v2879
      %2881 = vdwg.mxu0
      %2882 = vmatpush.bf16.msra.mxu0 %v2794
      %2883 = vmatpush.bf16.msra.mxu0 %v2790
      %2884 = vmatpush.bf16.msra.mxu0 %v2786
      %2885 = vmatpush.bf16.msra.mxu0 %v2782
      %2886 = vmatpush.bf16.msra.mxu0 %v2778
      %2887 = vmatpush.bf16.msra.mxu0 %v2774
      %2888 = vmatpush.bf16.msra.mxu0 %v2770
      %2889 = vmatpush.bf16.msra.mxu0 %v2766
      %2890 = vmatmul.bf16.gmra.mxu0 %v2820
      %v2891 = vpop.f32.mrf.mxu0
      %v2892 = vadd.f32 %v2807, %v2891
      %v2893 = vpop.f32.mrf.mxu0
      %v2894 = vadd.f32 %v2812, %v2893
      %2895 = vdwg.mxu0
      %2896 = vmatpush.bf16.msra.mxu0 0
      %2897 = vmatpush.bf16.msra.mxu0 0
      %2898 = vmatpush.bf16.msra.mxu0 0
      %2899 = vmatpush.bf16.msra.mxu0 0
      %2900 = vmatpush.bf16.msra.mxu0 0
      %2901 = vmatpush.bf16.msra.mxu0 0
      %2902 = vmatpush.bf16.msra.mxu0 0
      %2903 = vmatpush.bf16.msra.mxu0 %v2798
      %2904 = vmatmul.bf16.gmra.mxu0 %v2824
      %v2905 = vpop.f32.mrf.mxu0
      %v2906 = vadd.f32 %v2892, %v2905
      %v2907 = vpop.f32.mrf.mxu0
      %v2908 = vadd.f32 %v2894, %v2907
      %2909 = vdwg.mxu0
      %2910 = vmatpush.bf16.msra.mxu0 %v2795
      %2911 = vmatpush.bf16.msra.mxu0 %v2791
      %2912 = vmatpush.bf16.msra.mxu0 %v2787
      %2913 = vmatpush.bf16.msra.mxu0 %v2783
      %2914 = vmatpush.bf16.msra.mxu0 %v2779
      %2915 = vmatpush.bf16.msra.mxu0 %v2775
      %2916 = vmatpush.bf16.msra.mxu0 %v2771
      %2917 = vmatpush.bf16.msra.mxu0 %v2767
      %2918 = vmatmul.bf16.gmra.mxu0 %v2820
      %v2919 = vpop.f32.mrf.mxu0
      %v2920 = vadd.f32 %v2807, %v2919
      %v2921 = vpop.f32.mrf.mxu0
      %v2922 = vadd.f32 %v2812, %v2921
      %2923 = vdwg.mxu0
      %2924 = vmatpush.bf16.msra.mxu0 0
      %2925 = vmatpush.bf16.msra.mxu0 0
      %2926 = vmatpush.bf16.msra.mxu0 0
      %2927 = vmatpush.bf16.msra.mxu0 0
      %2928 = vmatpush.bf16.msra.mxu0 0
      %2929 = vmatpush.bf16.msra.mxu0 0
      %2930 = vmatpush.bf16.msra.mxu0 0
      %2931 = vmatpush.bf16.msra.mxu0 %v2799
      %2932 = vmatmul.bf16.gmra.mxu0 %v2824
      %v2933 = vpop.f32.mrf.mxu0
      %v2934 = vadd.f32 %v2920, %v2933
      %v2935 = vpop.f32.mrf.mxu0
      %v2936 = vadd.f32 %v2922, %v2935
      %2937 = vdwg.mxu0
      %vm2938 = vcmp.ge.f32.partialorder %v2850, 0.0
      %vm2939 = vcmp.ge.f32.partialorder %v2878, 0.0
      %vm2940 = vcmp.ge.f32.partialorder %v2906, 0.0
      %vm2941 = vcmp.ge.f32.partialorder %v2934, 0.0
      %vm2942 = vcmp.ge.f32.partialorder %v2852, 0.0
      %vm2943 = vcmp.ge.f32.partialorder %v2880, 0.0
      %vm2944 = vcmp.ge.f32.partialorder %v2908, 0.0
      %vm2945 = vcmp.ge.f32.partialorder %v2936, 0.0
      %v2946 = vmul.f32 %v2850, 0.2
      %v2947 = vmul.f32 %v2878, 0.2
      %v2948 = vmul.f32 %v2906, 0.2
      %v2949 = vmul.f32 %v2934, 0.2
      %v2950 = vmul.f32 %v2852, 0.2
      %v2951 = vmul.f32 %v2880, 0.2
      %v2952 = vmul.f32 %v2908, 0.2
      %v2953 = vmul.f32 %v2936, 0.2
      %v2954 = vsel %vm2938, %v2850, %v2946
      %v2955 = vsel %vm2939, %v2878, %v2947
      %v2956 = vsel %vm2940, %v2906, %v2948
      %v2957 = vsel %vm2941, %v2934, %v2949
      %v2958 = vsel %vm2942, %v2852, %v2950
      %v2959 = vsel %vm2943, %v2880, %v2951
      %v2960 = vsel %vm2944, %v2908, %v2952
      %v2961 = vsel %vm2945, %v2936, %v2953
      %v2962 = vadd.f32 %v2954, %v865
      %v2963 = vadd.f32 %v2955, %v884
      %v2964 = vadd.f32 %v2956, %v903
      %v2965 = vadd.f32 %v2957, %v922
      %v2966 = vadd.f32 %v2958, %v867
      %v2967 = vadd.f32 %v2959, %v886
      %v2968 = vadd.f32 %v2960, %v905
      %v2969 = vadd.f32 %v2961, %v924
      %2970 = vst [vmem:[%s502] sm:$0xff] %v2962
      %2971 = vst [vmem:[%s502 + $0x8] sm:$0xff] %v2963
      %2972 = vst [vmem:[%s502 + $0x10] sm:$0xff] %v2964
      %2973 = vst [vmem:[%s502 + $0x18] sm:$0xff] %v2965
      %2974 = vst [vmem:[%s502 + $0x20] sm:$0xff] %v2966
      %2975 = vst [vmem:[%s502 + $0x28] sm:$0xff] %v2967
      %2976 = vst [vmem:[%s502 + $0x30] sm:$0xff] %v2968
      %2977 = vst [vmem:[%s502 + $0x38] sm:$0xff] %v2969
      %2986 = vrot.lane.b32.xlu0 %v2962, 17
      %v2987 = vpop.permute.xlu0 %2986
      %2988 = vrot.lane.b32.xlu0 %v2963, 17
      %v2989 = vpop.permute.xlu0 %2988
      %2990 = vrot.lane.b32.xlu0 %v2964, 17
      %v2991 = vpop.permute.xlu0 %2990
      %2992 = vrot.lane.b32.xlu0 %v2965, 17
      %v2993 = vpop.permute.xlu0 %2992
      %2994 = vrot.lane.b32.xlu0 %v2966, 17
      %v2995 = vpop.permute.xlu0 %2994
      %2996 = vrot.lane.b32.xlu0 %v2967, 17
      %v2997 = vpop.permute.xlu0 %2996
      %2998 = vrot.lane.b32.xlu0 %v2968, 17
      %v2999 = vpop.permute.xlu0 %2998
      %3000 = vrot.lane.b32.xlu0 %v2969, 17
      %v3001 = vpop.permute.xlu0 %3000
      %v3002 = vsel %vm525, %v2987, %v2989
      %v3003 = vsel %vm525, %v2989, %v2991
      %v3004 = vsel %vm525, %v2991, %v2993
      %v3005 = vsel %vm525, %v2995, %v2997
      %v3006 = vsel %vm525, %v2997, %v2999
      %v3007 = vsel %vm525, %v2999, %v3001
      %v3016 = vsel %vm525, 0.0, %v2987
      %v3017 = vsel %vm525, 0.0, %v2995
      %v3018 = vld [vmem:[%s12] ss:$8 sm:$0xf]
      %v3020 = vperm.slane %v3018, 0
      %v3021 = vperm.slane %v3018, 1
      %v3022 = vperm.slane %v3018, 2
      %v3023 = vperm.slane %v3018, 3
      %v3028 = vmul.f32 %v3016, %v3020
      %v3029 = vmul.f32 %v3002, %v3021
      %v3030 = vmul.f32 %v3003, %v3022
      %v3031 = vmul.f32 %v3004, %v3023
      %v3032 = vmul.f32 %v3017, %v3020
      %v3033 = vmul.f32 %v3005, %v3021
      %v3034 = vmul.f32 %v3006, %v3022
      %v3035 = vmul.f32 %v3007, %v3023
      %3036 = vrot.lane.b32.xlu0 %v2962, 16
      %v3037 = vpop.permute.xlu0 %3036
      %3038 = vrot.lane.b32.xlu0 %v2963, 16
      %v3039 = vpop.permute.xlu0 %3038
      %3040 = vrot.lane.b32.xlu0 %v2964, 16
      %v3041 = vpop.permute.xlu0 %3040
      %3042 = vrot.lane.b32.xlu0 %v2965, 16
      %v3043 = vpop.permute.xlu0 %3042
      %3044 = vrot.lane.b32.xlu0 %v2966, 16
      %v3045 = vpop.permute.xlu0 %3044
      %3046 = vrot.lane.b32.xlu0 %v2967, 16
      %v3047 = vpop.permute.xlu0 %3046
      %3048 = vrot.lane.b32.xlu0 %v2968, 16
      %v3049 = vpop.permute.xlu0 %3048
      %3050 = vrot.lane.b32.xlu0 %v2969, 16
      %v3051 = vpop.permute.xlu0 %3050
      %v3052 = vsel %vm556, %v3037, %v3039
      %v3053 = vsel %vm556, %v3039, %v3041
      %v3054 = vsel %vm556, %v3041, %v3043
      %v3055 = vsel %vm556, %v3045, %v3047
      %v3056 = vsel %vm556, %v3047, %v3049
      %v3057 = vsel %vm556, %v3049, %v3051
      %v3066 = vsel %vm556, 0.0, %v3037
      %v3067 = vsel %vm556, 0.0, %v3045
      %v3068 = vld [vmem:[%s565] ss:$8 sm:$0xf]
      %v3070 = vperm.slane %v3068, 0
      %v3071 = vperm.slane %v3068, 1
      %v3072 = vperm.slane %v3068, 2
      %v3073 = vperm.slane %v3068, 3
      %v3078 = vmul.f32 %v3066, %v3070
      %v3079 = vmul.f32 %v3052, %v3071
      %v3080 = vmul.f32 %v3053, %v3072
      %v3081 = vmul.f32 %v3054, %v3073
      %v3082 = vmul.f32 %v3067, %v3070
      %v3083 = vmul.f32 %v3055, %v3071
      %v3084 = vmul.f32 %v3056, %v3072
      %v3085 = vmul.f32 %v3057, %v3073
      %3086 = vrot.lane.b32.xlu0 %v2962, 15
      %v3087 = vpop.permute.xlu0 %3086
      %3088 = vrot.lane.b32.xlu0 %v2963, 15
      %v3089 = vpop.permute.xlu0 %3088
      %3090 = vrot.lane.b32.xlu0 %v2964, 15
      %v3091 = vpop.permute.xlu0 %3090
      %3092 = vrot.lane.b32.xlu0 %v2965, 15
      %v3093 = vpop.permute.xlu0 %3092
      %3094 = vrot.lane.b32.xlu0 %v2966, 15
      %v3095 = vpop.permute.xlu0 %3094
      %3096 = vrot.lane.b32.xlu0 %v2967, 15
      %v3097 = vpop.permute.xlu0 %3096
      %3098 = vrot.lane.b32.xlu0 %v2968, 15
      %v3099 = vpop.permute.xlu0 %3098
      %3100 = vrot.lane.b32.xlu0 %v2969, 15
      %v3101 = vpop.permute.xlu0 %3100
      %v3102 = vsel %vm588, %v3087, %v3089
      %v3103 = vsel %vm588, %v3089, %v3091
      %v3104 = vsel %vm588, %v3091, %v3093
      %v3105 = vsel %vm588, %v3095, %v3097
      %v3106 = vsel %vm588, %v3097, %v3099
      %v3107 = vsel %vm588, %v3099, %v3101
      %v3116 = vsel %vm588, 0.0, %v3087
      %v3117 = vsel %vm588, 0.0, %v3095
      %v3118 = vld [vmem:[%s597] ss:$8 sm:$0xf]
      %v3120 = vperm.slane %v3118, 0
      %v3121 = vperm.slane %v3118, 1
      %v3122 = vperm.slane %v3118, 2
      %v3123 = vperm.slane %v3118, 3
      %v3128 = vmul.f32 %v3116, %v3120
      %v3129 = vmul.f32 %v3102, %v3121
      %v3130 = vmul.f32 %v3103, %v3122
      %v3131 = vmul.f32 %v3104, %v3123
      %v3132 = vmul.f32 %v3117, %v3120
      %v3133 = vmul.f32 %v3105, %v3121
      %v3134 = vmul.f32 %v3106, %v3122
      %v3135 = vmul.f32 %v3107, %v3123
      %3136 = vrot.lane.b32.xlu0 %v2962, 14
      %v3137 = vpop.permute.xlu0 %3136
      %3138 = vrot.lane.b32.xlu0 %v2963, 14
      %v3139 = vpop.permute.xlu0 %3138
      %3140 = vrot.lane.b32.xlu0 %v2964, 14
      %v3141 = vpop.permute.xlu0 %3140
      %3142 = vrot.lane.b32.xlu0 %v2965, 14
      %v3143 = vpop.permute.xlu0 %3142
      %3144 = vrot.lane.b32.xlu0 %v2966, 14
      %v3145 = vpop.permute.xlu0 %3144
      %3146 = vrot.lane.b32.xlu0 %v2967, 14
      %v3147 = vpop.permute.xlu0 %3146
      %3148 = vrot.lane.b32.xlu0 %v2968, 14
      %v3149 = vpop.permute.xlu0 %3148
      %3150 = vrot.lane.b32.xlu0 %v2969, 14
      %v3151 = vpop.permute.xlu0 %3150
      %vm3152 = vcmask 113664
      %v3153 = vsel %vm3152, %v3137, %v3139
      %v3154 = vsel %vm3152, %v3139, %v3141
      %v3155 = vsel %vm3152, %v3141, %v3143
      %v3156 = vsel %vm3152, %v3145, %v3147
      %v3157 = vsel %vm3152, %v3147, %v3149
      %v3158 = vsel %vm3152, %v3149, %v3151
      %v3167 = vsel %vm3152, 0.0, %v3137
      %v3168 = vsel %vm3152, 0.0, %v3145
      %s3169 = scalar_lea.vmem %s12, 3
      %v3170 = vld [vmem:[%s3169] ss:$8 sm:$0xf]
      %v3172 = vperm.slane %v3170, 0
      %v3173 = vperm.slane %v3170, 1
      %v3174 = vperm.slane %v3170, 2
      %v3175 = vperm.slane %v3170, 3
      %v3180 = vmul.f32 %v3167, %v3172
      %v3181 = vmul.f32 %v3153, %v3173
      %v3182 = vmul.f32 %v3154, %v3174
      %v3183 = vmul.f32 %v3155, %v3175
      %v3184 = vmul.f32 %v3168, %v3172
      %v3185 = vmul.f32 %v3156, %v3173
      %v3186 = vmul.f32 %v3157, %v3174
      %v3187 = vmul.f32 %v3158, %v3175
      %3188 = vrot.lane.b32.xlu0 %v2962, 1
      %v3189 = vpop.permute.xlu0 %3188
      %3190 = vrot.lane.b32.xlu0 %v2963, 1
      %v3191 = vpop.permute.xlu0 %3190
      %3192 = vrot.lane.b32.xlu0 %v2964, 1
      %v3193 = vpop.permute.xlu0 %3192
      %3194 = vrot.lane.b32.xlu0 %v2965, 1
      %v3195 = vpop.permute.xlu0 %3194
      %3196 = vrot.lane.b32.xlu0 %v2966, 1
      %v3197 = vpop.permute.xlu0 %3196
      %3198 = vrot.lane.b32.xlu0 %v2967, 1
      %v3199 = vpop.permute.xlu0 %3198
      %3200 = vrot.lane.b32.xlu0 %v2968, 1
      %v3201 = vpop.permute.xlu0 %3200
      %3202 = vrot.lane.b32.xlu0 %v2969, 1
      %v3203 = vpop.permute.xlu0 %3202
      %v3204 = vsel %vm620, %v3189, %v3191
      %v3205 = vsel %vm620, %v3191, %v3193
      %v3206 = vsel %vm620, %v3193, %v3195
      %v3207 = vsel %vm620, %v3197, %v3199
      %v3208 = vsel %vm620, %v3199, %v3201
      %v3209 = vsel %vm620, %v3201, %v3203
      %v3218 = vsel %vm620, 0.0, %v3189
      %v3219 = vsel %vm620, 0.0, %v3197
      %v3220 = vld [vmem:[%s629] ss:$8 sm:$0xf]
      %v3222 = vperm.slane %v3220, 0
      %v3223 = vperm.slane %v3220, 1
      %v3224 = vperm.slane %v3220, 2
      %v3225 = vperm.slane %v3220, 3
      %v3230 = vmul.f32 %v3218, %v3222
      %v3231 = vmul.f32 %v3204, %v3223
      %v3232 = vmul.f32 %v3205, %v3224
      %v3233 = vmul.f32 %v3206, %v3225
      %v3234 = vmul.f32 %v3219, %v3222
      %v3235 = vmul.f32 %v3207, %v3223
      %v3236 = vmul.f32 %v3208, %v3224
      %v3237 = vmul.f32 %v3209, %v3225
      %3238 = vrot.lane.b32.xlu0 %v2962, 127
      %v3239 = vpop.permute.xlu0 %3238
      %3240 = vrot.lane.b32.xlu0 %v2963, 127
      %v3241 = vpop.permute.xlu0 %3240
      %3242 = vrot.lane.b32.xlu0 %v2964, 127
      %v3243 = vpop.permute.xlu0 %3242
      %3244 = vrot.lane.b32.xlu0 %v2965, 127
      %v3245 = vpop.permute.xlu0 %3244
      %3246 = vrot.lane.b32.xlu0 %v2966, 127
      %v3247 = vpop.permute.xlu0 %3246
      %3248 = vrot.lane.b32.xlu0 %v2967, 127
      %v3249 = vpop.permute.xlu0 %3248
      %3250 = vrot.lane.b32.xlu0 %v2968, 127
      %v3251 = vpop.permute.xlu0 %3250
      %3252 = vrot.lane.b32.xlu0 %v2969, 127
      %v3253 = vpop.permute.xlu0 %3252
      %v3254 = vsel %vm652, %v3239, %v3241
      %v3255 = vsel %vm652, %v3241, %v3243
      %v3256 = vsel %vm652, %v3243, %v3245
      %v3257 = vsel %vm652, %v3247, %v3249
      %v3258 = vsel %vm652, %v3249, %v3251
      %v3259 = vsel %vm652, %v3251, %v3253
      %v3268 = vsel %vm652, %v3245, 0.0
      %v3269 = vsel %vm652, %v3253, 0.0
      %v3270 = vld [vmem:[%s661] ss:$8 sm:$0xf]
      %v3272 = vperm.slane %v3270, 0
      %v3273 = vperm.slane %v3270, 1
      %v3274 = vperm.slane %v3270, 2
      %v3275 = vperm.slane %v3270, 3
      %v3280 = vmul.f32 %v3254, %v3272
      %v3281 = vmul.f32 %v3255, %v3273
      %v3282 = vmul.f32 %v3256, %v3274
      %v3283 = vmul.f32 %v3268, %v3275
      %v3284 = vmul.f32 %v3257, %v3272
      %v3285 = vmul.f32 %v3258, %v3273
      %v3286 = vmul.f32 %v3259, %v3274
      %v3287 = vmul.f32 %v3269, %v3275
      %3288 = vrot.lane.b32.xlu0 %v2962, 126
      %v3289 = vpop.permute.xlu0 %3288
      %3290 = vrot.lane.b32.xlu0 %v2963, 126
      %v3291 = vpop.permute.xlu0 %3290
      %3292 = vrot.lane.b32.xlu0 %v2964, 126
      %v3293 = vpop.permute.xlu0 %3292
      %3294 = vrot.lane.b32.xlu0 %v2965, 126
      %v3295 = vpop.permute.xlu0 %3294
      %3296 = vrot.lane.b32.xlu0 %v2966, 126
      %v3297 = vpop.permute.xlu0 %3296
      %3298 = vrot.lane.b32.xlu0 %v2967, 126
      %v3299 = vpop.permute.xlu0 %3298
      %3300 = vrot.lane.b32.xlu0 %v2968, 126
      %v3301 = vpop.permute.xlu0 %3300
      %3302 = vrot.lane.b32.xlu0 %v2969, 126
      %v3303 = vpop.permute.xlu0 %3302
      %vm3304 = vcmask 1031168
      %v3305 = vsel %vm3304, %v3289, %v3291
      %v3306 = vsel %vm3304, %v3291, %v3293
      %v3307 = vsel %vm3304, %v3293, %v3295
      %v3308 = vsel %vm3304, %v3297, %v3299
      %v3309 = vsel %vm3304, %v3299, %v3301
      %v3310 = vsel %vm3304, %v3301, %v3303
      %v3319 = vsel %vm3304, %v3295, 0.0
      %v3320 = vsel %vm3304, %v3303, 0.0
      %s3321 = scalar_lea.vmem %s12, 7
      %v3322 = vld [vmem:[%s3321] ss:$8 sm:$0xf]
      %v3324 = vperm.slane %v3322, 0
      %v3325 = vperm.slane %v3322, 1
      %v3326 = vperm.slane %v3322, 2
      %v3327 = vperm.slane %v3322, 3
      %v3332 = vmul.f32 %v3305, %v3324
      %v3333 = vmul.f32 %v3306, %v3325
      %v3334 = vmul.f32 %v3307, %v3326
      %v3335 = vmul.f32 %v3319, %v3327
      %v3336 = vmul.f32 %v3308, %v3324
      %v3337 = vmul.f32 %v3309, %v3325
      %v3338 = vmul.f32 %v3310, %v3326
      %v3339 = vmul.f32 %v3320, %v3327
      %3340 = vrot.lane.b32.xlu0 %v2962, 113
      %v3341 = vpop.permute.xlu0 %3340
      %3342 = vrot.lane.b32.xlu0 %v2963, 113
      %v3343 = vpop.permute.xlu0 %3342
      %3344 = vrot.lane.b32.xlu0 %v2964, 113
      %v3345 = vpop.permute.xlu0 %3344
      %3346 = vrot.lane.b32.xlu0 %v2965, 113
      %v3347 = vpop.permute.xlu0 %3346
      %3348 = vrot.lane.b32.xlu0 %v2966, 113
      %v3349 = vpop.permute.xlu0 %3348
      %3350 = vrot.lane.b32.xlu0 %v2967, 113
      %v3351 = vpop.permute.xlu0 %3350
      %3352 = vrot.lane.b32.xlu0 %v2968, 113
      %v3353 = vpop.permute.xlu0 %3352
      %3354 = vrot.lane.b32.xlu0 %v2969, 113
      %v3355 = vpop.permute.xlu0 %3354
      %v3356 = vsel %vm684, %v3341, %v3343
      %v3357 = vsel %vm684, %v3343, %v3345
      %v3358 = vsel %vm684, %v3345, %v3347
      %v3359 = vsel %vm684, %v3349, %v3351
      %v3360 = vsel %vm684, %v3351, %v3353
      %v3361 = vsel %vm684, %v3353, %v3355
      %v3370 = vsel %vm684, %v3347, 0.0
      %v3371 = vsel %vm684, %v3355, 0.0
      %v3372 = vld [vmem:[%s693] ss:$8 sm:$0xf]
      %v3374 = vperm.slane %v3372, 0
      %v3375 = vperm.slane %v3372, 1
      %v3376 = vperm.slane %v3372, 2
      %v3377 = vperm.slane %v3372, 3
      %v3382 = vmul.f32 %v3356, %v3374
      %v3383 = vmul.f32 %v3357, %v3375
      %v3384 = vmul.f32 %v3358, %v3376
      %v3385 = vmul.f32 %v3370, %v3377
      %v3386 = vmul.f32 %v3359, %v3374
      %v3387 = vmul.f32 %v3360, %v3375
      %v3388 = vmul.f32 %v3361, %v3376
      %v3389 = vmul.f32 %v3371, %v3377
      %3390 = vrot.lane.b32.xlu0 %v2962, 112
      %v3391 = vpop.permute.xlu0 %3390
      %3392 = vrot.lane.b32.xlu0 %v2963, 112
      %v3393 = vpop.permute.xlu0 %3392
      %3394 = vrot.lane.b32.xlu0 %v2964, 112
      %v3395 = vpop.permute.xlu0 %3394
      %3396 = vrot.lane.b32.xlu0 %v2965, 112
      %v3397 = vpop.permute.xlu0 %3396
      %3398 = vrot.lane.b32.xlu0 %v2966, 112
      %v3399 = vpop.permute.xlu0 %3398
      %3400 = vrot.lane.b32.xlu0 %v2967, 112
      %v3401 = vpop.permute.xlu0 %3400
      %3402 = vrot.lane.b32.xlu0 %v2968, 112
      %v3403 = vpop.permute.xlu0 %3402
      %3404 = vrot.lane.b32.xlu0 %v2969, 112
      %v3405 = vpop.permute.xlu0 %3404
      %v3406 = vsel %vm716, %v3391, %v3393
      %v3407 = vsel %vm716, %v3393, %v3395
      %v3408 = vsel %vm716, %v3395, %v3397
      %v3409 = vsel %vm716, %v3399, %v3401
      %v3410 = vsel %vm716, %v3401, %v3403
      %v3411 = vsel %vm716, %v3403, %v3405
      %v3420 = vsel %vm716, %v3397, 0.0
      %v3421 = vsel %vm716, %v3405, 0.0
      %v3422 = vld [vmem:[%s725] ss:$8 sm:$0xf]
      %v3424 = vperm.slane %v3422, 0
      %v3425 = vperm.slane %v3422, 1
      %v3426 = vperm.slane %v3422, 2
      %v3427 = vperm.slane %v3422, 3
      %v3432 = vmul.f32 %v3406, %v3424
      %v3433 = vmul.f32 %v3407, %v3425
      %v3434 = vmul.f32 %v3408, %v3426
      %v3435 = vmul.f32 %v3420, %v3427
      %v3436 = vmul.f32 %v3409, %v3424
      %v3437 = vmul.f32 %v3410, %v3425
      %v3438 = vmul.f32 %v3411, %v3426
      %v3439 = vmul.f32 %v3421, %v3427
      %3440 = vrot.lane.b32.xlu0 %v2962, 111
      %v3441 = vpop.permute.xlu0 %3440
      %3442 = vrot.lane.b32.xlu0 %v2963, 111
      %v3443 = vpop.permute.xlu0 %3442
      %3444 = vrot.lane.b32.xlu0 %v2964, 111
      %v3445 = vpop.permute.xlu0 %3444
      %3446 = vrot.lane.b32.xlu0 %v2965, 111
      %v3447 = vpop.permute.xlu0 %3446
      %3448 = vrot.lane.b32.xlu0 %v2966, 111
      %v3449 = vpop.permute.xlu0 %3448
      %3450 = vrot.lane.b32.xlu0 %v2967, 111
      %v3451 = vpop.permute.xlu0 %3450
      %3452 = vrot.lane.b32.xlu0 %v2968, 111
      %v3453 = vpop.permute.xlu0 %3452
      %3454 = vrot.lane.b32.xlu0 %v2969, 111
      %v3455 = vpop.permute.xlu0 %3454
      %v3456 = vsel %vm748, %v3441, %v3443
      %v3457 = vsel %vm748, %v3443, %v3445
      %v3458 = vsel %vm748, %v3445, %v3447
      %v3459 = vsel %vm748, %v3449, %v3451
      %v3460 = vsel %vm748, %v3451, %v3453
      %v3461 = vsel %vm748, %v3453, %v3455
      %v3470 = vsel %vm748, %v3447, 0.0
      %v3471 = vsel %vm748, %v3455, 0.0
      %v3472 = vld [vmem:[%s757] ss:$8 sm:$0xf]
      %v3474 = vperm.slane %v3472, 0
      %v3475 = vperm.slane %v3472, 1
      %v3476 = vperm.slane %v3472, 2
      %v3477 = vperm.slane %v3472, 3
      %v3482 = vmul.f32 %v3456, %v3474
      %v3483 = vmul.f32 %v3457, %v3475
      %v3484 = vmul.f32 %v3458, %v3476
      %v3485 = vmul.f32 %v3470, %v3477
      %v3486 = vmul.f32 %v3459, %v3474
      %v3487 = vmul.f32 %v3460, %v3475
      %v3488 = vmul.f32 %v3461, %v3476
      %v3489 = vmul.f32 %v3471, %v3477
      %3490 = vrot.lane.b32.xlu0 %v2962, 110
      %v3491 = vpop.permute.xlu0 %3490
      %3492 = vrot.lane.b32.xlu0 %v2963, 110
      %v3493 = vpop.permute.xlu0 %3492
      %3494 = vrot.lane.b32.xlu0 %v2964, 110
      %v3495 = vpop.permute.xlu0 %3494
      %3496 = vrot.lane.b32.xlu0 %v2965, 110
      %v3497 = vpop.permute.xlu0 %3496
      %3498 = vrot.lane.b32.xlu0 %v2966, 110
      %v3499 = vpop.permute.xlu0 %3498
      %3500 = vrot.lane.b32.xlu0 %v2967, 110
      %v3501 = vpop.permute.xlu0 %3500
      %3502 = vrot.lane.b32.xlu0 %v2968, 110
      %v3503 = vpop.permute.xlu0 %3502
      %3504 = vrot.lane.b32.xlu0 %v2969, 110
      %v3505 = vpop.permute.xlu0 %3504
      %vm3506 = vcmask 900096
      %v3507 = vsel %vm3506, %v3491, %v3493
      %v3508 = vsel %vm3506, %v3493, %v3495
      %v3509 = vsel %vm3506, %v3495, %v3497
      %v3510 = vsel %vm3506, %v3499, %v3501
      %v3511 = vsel %vm3506, %v3501, %v3503
      %v3512 = vsel %vm3506, %v3503, %v3505
      %v3521 = vsel %vm3506, %v3497, 0.0
      %v3522 = vsel %vm3506, %v3505, 0.0
      %s3523 = scalar_lea.vmem %s12, 67
      %v3524 = vld [vmem:[%s3523] ss:$8 sm:$0xf]
      %v3526 = vperm.slane %v3524, 0
      %v3527 = vperm.slane %v3524, 1
      %v3528 = vperm.slane %v3524, 2
      %v3529 = vperm.slane %v3524, 3
      %v3534 = vmul.f32 %v3507, %v3526
      %v3535 = vmul.f32 %v3508, %v3527
      %v3536 = vmul.f32 %v3509, %v3528
      %v3537 = vmul.f32 %v3521, %v3529
      %v3538 = vmul.f32 %v3510, %v3526
      %v3539 = vmul.f32 %v3511, %v3527
      %v3540 = vmul.f32 %v3512, %v3528
      %v3541 = vmul.f32 %v3522, %v3529
      %3542 = vrot.lane.b32.xlu0 %v2962, 97
      %v3543 = vpop.permute.xlu0 %3542
      %3544 = vrot.lane.b32.xlu0 %v2963, 97
      %v3545 = vpop.permute.xlu0 %3544
      %3546 = vrot.lane.b32.xlu0 %v2964, 97
      %v3547 = vpop.permute.xlu0 %3546
      %3548 = vrot.lane.b32.xlu0 %v2965, 97
      %v3549 = vpop.permute.xlu0 %3548
      %3550 = vrot.lane.b32.xlu0 %v2966, 97
      %v3551 = vpop.permute.xlu0 %3550
      %3552 = vrot.lane.b32.xlu0 %v2967, 97
      %v3553 = vpop.permute.xlu0 %3552
      %3554 = vrot.lane.b32.xlu0 %v2968, 97
      %v3555 = vpop.permute.xlu0 %3554
      %3556 = vrot.lane.b32.xlu0 %v2969, 97
      %v3557 = vpop.permute.xlu0 %3556
      %vm3558 = vcmask 793600
      %v3559 = vsel %vm3558, %v3543, %v3545
      %v3560 = vsel %vm3558, %v3545, %v3547
      %v3561 = vsel %vm3558, %v3547, %v3549
      %v3562 = vsel %vm3558, %v3551, %v3553
      %v3563 = vsel %vm3558, %v3553, %v3555
      %v3564 = vsel %vm3558, %v3555, %v3557
      %v3573 = vsel %vm3558, %v3549, 0.0
      %v3574 = vsel %vm3558, %v3557, 0.0
      %s3575 = scalar_lea.vmem %s12, 68
      %v3576 = vld [vmem:[%s3575] ss:$8 sm:$0xf]
      %v3578 = vperm.slane %v3576, 0
      %v3579 = vperm.slane %v3576, 1
      %v3580 = vperm.slane %v3576, 2
      %v3581 = vperm.slane %v3576, 3
      %v3586 = vmul.f32 %v3559, %v3578
      %v3587 = vmul.f32 %v3560, %v3579
      %v3588 = vmul.f32 %v3561, %v3580
      %v3589 = vmul.f32 %v3573, %v3581
      %v3590 = vmul.f32 %v3562, %v3578
      %v3591 = vmul.f32 %v3563, %v3579
      %v3592 = vmul.f32 %v3564, %v3580
      %v3593 = vmul.f32 %v3574, %v3581
      %3594 = vrot.lane.b32.xlu0 %v2962, 96
      %v3595 = vpop.permute.xlu0 %3594
      %3596 = vrot.lane.b32.xlu0 %v2963, 96
      %v3597 = vpop.permute.xlu0 %3596
      %3598 = vrot.lane.b32.xlu0 %v2964, 96
      %v3599 = vpop.permute.xlu0 %3598
      %3600 = vrot.lane.b32.xlu0 %v2965, 96
      %v3601 = vpop.permute.xlu0 %3600
      %3602 = vrot.lane.b32.xlu0 %v2966, 96
      %v3603 = vpop.permute.xlu0 %3602
      %3604 = vrot.lane.b32.xlu0 %v2967, 96
      %v3605 = vpop.permute.xlu0 %3604
      %3606 = vrot.lane.b32.xlu0 %v2968, 96
      %v3607 = vpop.permute.xlu0 %3606
      %3608 = vrot.lane.b32.xlu0 %v2969, 96
      %v3609 = vpop.permute.xlu0 %3608
      %vm3610 = vcmask 785408
      %v3611 = vsel %vm3610, %v3595, %v3597
      %v3612 = vsel %vm3610, %v3597, %v3599
      %v3613 = vsel %vm3610, %v3599, %v3601
      %v3614 = vsel %vm3610, %v3603, %v3605
      %v3615 = vsel %vm3610, %v3605, %v3607
      %v3616 = vsel %vm3610, %v3607, %v3609
      %v3625 = vsel %vm3610, %v3601, 0.0
      %v3626 = vsel %vm3610, %v3609, 0.0
      %s3627 = scalar_lea.vmem %s12, 69
      %v3628 = vld [vmem:[%s3627] ss:$8 sm:$0xf]
      %v3630 = vperm.slane %v3628, 0
      %v3631 = vperm.slane %v3628, 1
      %v3632 = vperm.slane %v3628, 2
      %v3633 = vperm.slane %v3628, 3
      %v3638 = vmul.f32 %v3611, %v3630
      %v3639 = vmul.f32 %v3612, %v3631
      %v3640 = vmul.f32 %v3613, %v3632
      %v3641 = vmul.f32 %v3625, %v3633
      %v3642 = vmul.f32 %v3614, %v3630
      %v3643 = vmul.f32 %v3615, %v3631
      %v3644 = vmul.f32 %v3616, %v3632
      %v3645 = vmul.f32 %v3626, %v3633
      %3646 = vrot.lane.b32.xlu0 %v2962, 95
      %v3647 = vpop.permute.xlu0 %3646
      %3648 = vrot.lane.b32.xlu0 %v2963, 95
      %v3649 = vpop.permute.xlu0 %3648
      %3650 = vrot.lane.b32.xlu0 %v2964, 95
      %v3651 = vpop.permute.xlu0 %3650
      %3652 = vrot.lane.b32.xlu0 %v2965, 95
      %v3653 = vpop.permute.xlu0 %3652
      %3654 = vrot.lane.b32.xlu0 %v2966, 95
      %v3655 = vpop.permute.xlu0 %3654
      %3656 = vrot.lane.b32.xlu0 %v2967, 95
      %v3657 = vpop.permute.xlu0 %3656
      %3658 = vrot.lane.b32.xlu0 %v2968, 95
      %v3659 = vpop.permute.xlu0 %3658
      %3660 = vrot.lane.b32.xlu0 %v2969, 95
      %v3661 = vpop.permute.xlu0 %3660
      %vm3662 = vcmask 777216
      %v3663 = vsel %vm3662, %v3647, %v3649
      %v3664 = vsel %vm3662, %v3649, %v3651
      %v3665 = vsel %vm3662, %v3651, %v3653
      %v3666 = vsel %vm3662, %v3655, %v3657
      %v3667 = vsel %vm3662, %v3657, %v3659
      %v3668 = vsel %vm3662, %v3659, %v3661
      %v3677 = vsel %vm3662, %v3653, 0.0
      %v3678 = vsel %vm3662, %v3661, 0.0
      %s3679 = scalar_lea.vmem %s12, 70
      %v3680 = vld [vmem:[%s3679] ss:$8 sm:$0xf]
      %v3682 = vperm.slane %v3680, 0
      %v3683 = vperm.slane %v3680, 1
      %v3684 = vperm.slane %v3680, 2
      %v3685 = vperm.slane %v3680, 3
      %v3690 = vmul.f32 %v3663, %v3682
      %v3691 = vmul.f32 %v3664, %v3683
      %v3692 = vmul.f32 %v3665, %v3684
      %v3693 = vmul.f32 %v3677, %v3685
      %v3694 = vmul.f32 %v3666, %v3682
      %v3695 = vmul.f32 %v3667, %v3683
      %v3696 = vmul.f32 %v3668, %v3684
      %v3697 = vmul.f32 %v3678, %v3685
      %3698 = vrot.lane.b32.xlu0 %v2962, 94
      %v3699 = vpop.permute.xlu0 %3698
      %3700 = vrot.lane.b32.xlu0 %v2963, 94
      %v3701 = vpop.permute.xlu0 %3700
      %3702 = vrot.lane.b32.xlu0 %v2964, 94
      %v3703 = vpop.permute.xlu0 %3702
      %3704 = vrot.lane.b32.xlu0 %v2965, 94
      %v3705 = vpop.permute.xlu0 %3704
      %3706 = vrot.lane.b32.xlu0 %v2966, 94
      %v3707 = vpop.permute.xlu0 %3706
      %3708 = vrot.lane.b32.xlu0 %v2967, 94
      %v3709 = vpop.permute.xlu0 %3708
      %3710 = vrot.lane.b32.xlu0 %v2968, 94
      %v3711 = vpop.permute.xlu0 %3710
      %3712 = vrot.lane.b32.xlu0 %v2969, 94
      %v3713 = vpop.permute.xlu0 %3712
      %vm3714 = vcmask 769024
      %v3715 = vsel %vm3714, %v3699, %v3701
      %v3716 = vsel %vm3714, %v3701, %v3703
      %v3717 = vsel %vm3714, %v3703, %v3705
      %v3718 = vsel %vm3714, %v3707, %v3709
      %v3719 = vsel %vm3714, %v3709, %v3711
      %v3720 = vsel %vm3714, %v3711, %v3713
      %v3729 = vsel %vm3714, %v3705, 0.0
      %v3730 = vsel %vm3714, %v3713, 0.0
      %s3731 = scalar_lea.vmem %s12, 71
      %v3732 = vld [vmem:[%s3731] ss:$8 sm:$0xf]
      %v3734 = vperm.slane %v3732, 0
      %v3735 = vperm.slane %v3732, 1
      %v3736 = vperm.slane %v3732, 2
      %v3737 = vperm.slane %v3732, 3
      %v3742 = vmul.f32 %v3715, %v3734
      %v3743 = vmul.f32 %v3716, %v3735
      %v3744 = vmul.f32 %v3717, %v3736
      %v3745 = vmul.f32 %v3729, %v3737
      %v3746 = vmul.f32 %v3718, %v3734
      %v3747 = vmul.f32 %v3719, %v3735
      %v3748 = vmul.f32 %v3720, %v3736
      %v3749 = vmul.f32 %v3730, %v3737
      %v3750 = vpack.c.bf16 %v3032, %v3028
      %v3751 = vpack.c.bf16 %v3033, %v3029
      %v3752 = vpack.c.bf16 %v3034, %v3030
      %v3753 = vpack.c.bf16 %v3035, %v3031
      %v3754 = vpack.c.bf16 %v3082, %v3078
      %v3755 = vpack.c.bf16 %v3083, %v3079
      %v3756 = vpack.c.bf16 %v3084, %v3080
      %v3757 = vpack.c.bf16 %v3085, %v3081
      %v3758 = vpack.c.bf16 %v3132, %v3128
      %v3759 = vpack.c.bf16 %v3133, %v3129
      %v3760 = vpack.c.bf16 %v3134, %v3130
      %v3761 = vpack.c.bf16 %v3135, %v3131
      %v3762 = vpack.c.bf16 %v3184, %v3180
      %v3763 = vpack.c.bf16 %v3185, %v3181
      %v3764 = vpack.c.bf16 %v3186, %v3182
      %v3765 = vpack.c.bf16 %v3187, %v3183
      %v3766 = vpack.c.bf16 %v3234, %v3230
      %v3767 = vpack.c.bf16 %v3235, %v3231
      %v3768 = vpack.c.bf16 %v3236, %v3232
      %v3769 = vpack.c.bf16 %v3237, %v3233
      %v3770 = vpack.c.bf16 %v2966, %v2962
      %v3771 = vpack.c.bf16 %v2967, %v2963
      %v3772 = vpack.c.bf16 %v2968, %v2964
      %v3773 = vpack.c.bf16 %v2969, %v2965
      %v3774 = vpack.c.bf16 %v3284, %v3280
      %v3775 = vpack.c.bf16 %v3285, %v3281
      %v3776 = vpack.c.bf16 %v3286, %v3282
      %v3777 = vpack.c.bf16 %v3287, %v3283
      %v3778 = vpack.c.bf16 %v3336, %v3332
      %v3779 = vpack.c.bf16 %v3337, %v3333
      %v3780 = vpack.c.bf16 %v3338, %v3334
      %v3781 = vpack.c.bf16 %v3339, %v3335
      %v3782 = vpack.c.bf16 %v3386, %v3382
      %v3783 = vpack.c.bf16 %v3387, %v3383
      %v3784 = vpack.c.bf16 %v3388, %v3384
      %v3785 = vpack.c.bf16 %v3389, %v3385
      %v3786 = vpack.c.bf16 %v3436, %v3432
      %v3787 = vpack.c.bf16 %v3437, %v3433
      %v3788 = vpack.c.bf16 %v3438, %v3434
      %v3789 = vpack.c.bf16 %v3439, %v3435
      %v3790 = vpack.c.bf16 %v3486, %v3482
      %v3791 = vpack.c.bf16 %v3487, %v3483
      %v3792 = vpack.c.bf16 %v3488, %v3484
      %v3793 = vpack.c.bf16 %v3489, %v3485
      %v3794 = vpack.c.bf16 %v3538, %v3534
      %v3795 = vpack.c.bf16 %v3539, %v3535
      %v3796 = vpack.c.bf16 %v3540, %v3536
      %v3797 = vpack.c.bf16 %v3541, %v3537
      %v3798 = vpack.c.bf16 %v3590, %v3586
      %v3799 = vpack.c.bf16 %v3591, %v3587
      %v3800 = vpack.c.bf16 %v3592, %v3588
      %v3801 = vpack.c.bf16 %v3593, %v3589
      %v3802 = vpack.c.bf16 %v3642, %v3638
      %v3803 = vpack.c.bf16 %v3643, %v3639
      %v3804 = vpack.c.bf16 %v3644, %v3640
      %v3805 = vpack.c.bf16 %v3645, %v3641
      %v3806 = vpack.c.bf16 %v3694, %v3690
      %v3807 = vpack.c.bf16 %v3695, %v3691
      %v3808 = vpack.c.bf16 %v3696, %v3692
      %v3809 = vpack.c.bf16 %v3697, %v3693
      %v3810 = vpack.c.bf16 %v3746, %v3742
      %v3811 = vpack.c.bf16 %v3747, %v3743
      %v3812 = vpack.c.bf16 %v3748, %v3744
      %v3813 = vpack.c.bf16 %v3749, %v3745
      %v3814 = vld [vmem:[%s11] sm:$0xff]
      %v3815 = vld [vmem:[%s11 + $0x8] sm:$0xff]
      %v3818 = vunpack.c.l.b16 %v3814
      %v3819 = vunpack.c.h.b16 %v3814
      %v3820 = vunpack.c.l.b16 %v3815
      %v3821 = vunpack.c.h.b16 %v3815
      %v3822 = vpack.c.b16 %v3820, %v3818
      %v3823 = vpack.c.b16 %v3821, %v3819
      %3826 = vmatpush.bf16.msra.mxu0 %v3778
      %3827 = vmatpush.bf16.msra.mxu0 %v3774
      %3828 = vmatpush.bf16.msra.mxu0 %v3770
      %3829 = vmatpush.bf16.msra.mxu0 %v3766
      %3830 = vmatpush.bf16.msra.mxu0 %v3762
      %3831 = vmatpush.bf16.msra.mxu0 %v3758
      %3832 = vmatpush.bf16.msra.mxu0 %v3754
      %3833 = vmatpush.bf16.msra.mxu0 %v3750
      %3834 = vmatmul.bf16.gmra.mxu0 %v3822
      %v3835 = vpop.f32.mrf.mxu0
      %v3836 = vadd.f32 0.0, %v3835
      %v3837 = vpop.f32.mrf.mxu0
      %v3838 = vadd.f32 0.0, %v3837
      %3839 = vdwg.mxu0
      %3840 = vmatpush.bf16.msra.mxu0 %v3810
      %3841 = vmatpush.bf16.msra.mxu0 %v3806
      %3842 = vmatpush.bf16.msra.mxu0 %v3802
      %3843 = vmatpush.bf16.msra.mxu0 %v3798
      %3844 = vmatpush.bf16.msra.mxu0 %v3794
      %3845 = vmatpush.bf16.msra.mxu0 %v3790
      %3846 = vmatpush.bf16.msra.mxu0 %v3786
      %3847 = vmatpush.bf16.msra.mxu0 %v3782
      %3848 = vmatmul.bf16.gmra.mxu0 %v3823
      %v3849 = vpop.f32.mrf.mxu0
      %v3850 = vadd.f32 %v3836, %v3849
      %v3851 = vpop.f32.mrf.mxu0
      %v3852 = vadd.f32 %v3838, %v3851
      %3853 = vdwg.mxu0
      %3854 = vmatpush.bf16.msra.mxu0 %v3779
      %3855 = vmatpush.bf16.msra.mxu0 %v3775
      %3856 = vmatpush.bf16.msra.mxu0 %v3771
      %3857 = vmatpush.bf16.msra.mxu0 %v3767
      %3858 = vmatpush.bf16.msra.mxu0 %v3763
      %3859 = vmatpush.bf16.msra.mxu0 %v3759
      %3860 = vmatpush.bf16.msra.mxu0 %v3755
      %3861 = vmatpush.bf16.msra.mxu0 %v3751
      %3862 = vmatmul.bf16.gmra.mxu0 %v3822
      %v3863 = vpop.f32.mrf.mxu0
      %v3864 = vadd.f32 0.0, %v3863
      %v3865 = vpop.f32.mrf.mxu0
      %v3866 = vadd.f32 0.0, %v3865
      %3867 = vdwg.mxu0
      %3868 = vmatpush.bf16.msra.mxu0 %v3811
      %3869 = vmatpush.bf16.msra.mxu0 %v3807
      %3870 = vmatpush.bf16.msra.mxu0 %v3803
      %3871 = vmatpush.bf16.msra.mxu0 %v3799
      %3872 = vmatpush.bf16.msra.mxu0 %v3795
      %3873 = vmatpush.bf16.msra.mxu0 %v3791
      %3874 = vmatpush.bf16.msra.mxu0 %v3787
      %3875 = vmatpush.bf16.msra.mxu0 %v3783
      %3876 = vmatmul.bf16.gmra.mxu0 %v3823
      %v3877 = vpop.f32.mrf.mxu0
      %v3878 = vadd.f32 %v3864, %v3877
      %v3879 = vpop.f32.mrf.mxu0
      %v3880 = vadd.f32 %v3866, %v3879
      %3881 = vdwg.mxu0
      %3882 = vmatpush.bf16.msra.mxu0 %v3780
      %3883 = vmatpush.bf16.msra.mxu0 %v3776
      %3884 = vmatpush.bf16.msra.mxu0 %v3772
      %3885 = vmatpush.bf16.msra.mxu0 %v3768
      %3886 = vmatpush.bf16.msra.mxu0 %v3764
      %3887 = vmatpush.bf16.msra.mxu0 %v3760
      %3888 = vmatpush.bf16.msra.mxu0 %v3756
      %3889 = vmatpush.bf16.msra.mxu0 %v3752
      %3890 = vmatmul.bf16.gmra.mxu0 %v3822
      %v3891 = vpop.f32.mrf.mxu0
      %v3892 = vadd.f32 0.0, %v3891
      %v3893 = vpop.f32.mrf.mxu0
      %v3894 = vadd.f32 0.0, %v3893
      %3895 = vdwg.mxu0
      %3896 = vmatpush.bf16.msra.mxu0 %v3812
      %3897 = vmatpush.bf16.msra.mxu0 %v3808
      %3898 = vmatpush.bf16.msra.mxu0 %v3804
      %3899 = vmatpush.bf16.msra.mxu0 %v3800
      %3900 = vmatpush.bf16.msra.mxu0 %v3796
      %3901 = vmatpush.bf16.msra.mxu0 %v3792
      %3902 = vmatpush.bf16.msra.mxu0 %v3788
      %3903 = vmatpush.bf16.msra.mxu0 %v3784
      %3904 = vmatmul.bf16.gmra.mxu0 %v3823
      %v3905 = vpop.f32.mrf.mxu0
      %v3906 = vadd.f32 %v3892, %v3905
      %v3907 = vpop.f32.mrf.mxu0
      %v3908 = vadd.f32 %v3894, %v3907
      %3909 = vdwg.mxu0
      %3910 = vmatpush.bf16.msra.mxu0 %v3781
      %3911 = vmatpush.bf16.msra.mxu0 %v3777
      %3912 = vmatpush.bf16.msra.mxu0 %v3773
      %3913 = vmatpush.bf16.msra.mxu0 %v3769
      %3914 = vmatpush.bf16.msra.mxu0 %v3765
      %3915 = vmatpush.bf16.msra.mxu0 %v3761
      %3916 = vmatpush.bf16.msra.mxu0 %v3757
      %3917 = vmatpush.bf16.msra.mxu0 %v3753
      %3918 = vmatmul.bf16.gmra.mxu0 %v3822
      %v3919 = vpop.f32.mrf.mxu0
      %v3920 = vadd.f32 0.0, %v3919
      %v3921 = vpop.f32.mrf.mxu0
      %v3922 = vadd.f32 0.0, %v3921
      %3923 = vdwg.mxu0
      %3924 = vmatpush.bf16.msra.mxu0 %v3813
      %3925 = vmatpush.bf16.msra.mxu0 %v3809
      %3926 = vmatpush.bf16.msra.mxu0 %v3805
      %3927 = vmatpush.bf16.msra.mxu0 %v3801
      %3928 = vmatpush.bf16.msra.mxu0 %v3797
      %3929 = vmatpush.bf16.msra.mxu0 %v3793
      %3930 = vmatpush.bf16.msra.mxu0 %v3789
      %3931 = vmatpush.bf16.msra.mxu0 %v3785
      %3932 = vmatmul.bf16.gmra.mxu0 %v3823
      %v3933 = vpop.f32.mrf.mxu0
      %v3934 = vadd.f32 %v3920, %v3933
      %v3935 = vpop.f32.mrf.mxu0
      %v3936 = vadd.f32 %v3922, %v3935
      %3937 = vdwg.mxu0
      %v3938 = vld [vmem:[%s13] sm:$0xff]
      %v3939 = vld [vmem:[%s13 + $0x8] sm:$0xff]
      %v3940 = vld [vmem:[%s13 + $0x10] sm:$0xff]
      %v3941 = vld [vmem:[%s13 + $0x18] sm:$0xff]
      %v3942 = vld [vmem:[%s13 + $0x20] sm:$0xff]
      %v3943 = vld [vmem:[%s13 + $0x28] sm:$0xff]
      %v3944 = vld [vmem:[%s13 + $0x30] sm:$0xff]
      %v3945 = vld [vmem:[%s13 + $0x38] sm:$0xff]
      %v3946 = vld [vmem:[%s13 + $0x40] sm:$0xff]
      %v3947 = vld [vmem:[%s13 + $0x48] sm:$0xff]
      %v3948 = vld [vmem:[%s13 + $0x50] sm:$0xff]
      %v3949 = vld [vmem:[%s13 + $0x58] sm:$0xff]
      %v3950 = vld [vmem:[%s13 + $0x60] sm:$0xff]
      %v3951 = vld [vmem:[%s13 + $0x68] sm:$0xff]
      %v3952 = vld [vmem:[%s13 + $0x70] sm:$0xff]
      %v3953 = vld [vmem:[%s13 + $0x78] sm:$0xff]
      %v3954 = vld [vmem:[%s13 + $0x80] sm:$0xff]
      %v3955 = vld [vmem:[%s13 + $0x88] sm:$0xff]
      %v3956 = vld [vmem:[%s13 + $0x90] sm:$0xff]
      %v3957 = vld [vmem:[%s13 + $0x98] sm:$0xff]
      %v3958 = vld [vmem:[%s13 + $0xa0] sm:$0xff]
      %v3959 = vld [vmem:[%s13 + $0xa8] sm:$0xff]
      %v3960 = vld [vmem:[%s13 + $0xb0] sm:$0xff]
      %v3961 = vld [vmem:[%s13 + $0xb8] sm:$0xff]
      %v3962 = vld [vmem:[%s13 + $0xc0] sm:$0xff]
      %v3963 = vld [vmem:[%s13 + $0xc8] sm:$0xff]
      %v3964 = vld [vmem:[%s13 + $0xd0] sm:$0xff]
      %v3965 = vld [vmem:[%s13 + $0xd8] sm:$0xff]
      %v3966 = vld [vmem:[%s13 + $0xe0] sm:$0xff]
      %v3967 = vld [vmem:[%s13 + $0xe8] sm:$0xff]
      %v3968 = vld [vmem:[%s13 + $0xf0] sm:$0xff]
      %v3969 = vld [vmem:[%s13 + $0xf8] sm:$0xff]
      %v3970 = vld [vmem:[%s13 + $0x100] sm:$0xff]
      %v3971 = vld [vmem:[%s13 + $0x108] sm:$0xff]
      %v3972 = vld [vmem:[%s13 + $0x110] sm:$0xff]
      %v3973 = vld [vmem:[%s13 + $0x118] sm:$0xff]
      %v3974 = vld [vmem:[%s13 + $0x120] sm:$0xff]
      %v3975 = vld [vmem:[%s13 + $0x128] sm:$0xff]
      %v3976 = vld [vmem:[%s13 + $0x130] sm:$0xff]
      %v3977 = vld [vmem:[%s13 + $0x138] sm:$0xff]
      %v3978 = vld [vmem:[%s13 + $0x140] sm:$0xff]
      %v3979 = vld [vmem:[%s13 + $0x148] sm:$0xff]
      %v3980 = vld [vmem:[%s13 + $0x150] sm:$0xff]
      %v3981 = vld [vmem:[%s13 + $0x158] sm:$0xff]
      %v3982 = vld [vmem:[%s13 + $0x160] sm:$0xff]
      %v3983 = vld [vmem:[%s13 + $0x168] sm:$0xff]
      %v3984 = vld [vmem:[%s13 + $0x170] sm:$0xff]
      %v3985 = vld [vmem:[%s13 + $0x178] sm:$0xff]
      %v3986 = vld [vmem:[%s13 + $0x180] sm:$0xff]
      %v3987 = vld [vmem:[%s13 + $0x188] sm:$0xff]
      %v3988 = vld [vmem:[%s13 + $0x190] sm:$0xff]
      %v3989 = vld [vmem:[%s13 + $0x198] sm:$0xff]
      %v3990 = vld [vmem:[%s13 + $0x1a0] sm:$0xff]
      %v3991 = vld [vmem:[%s13 + $0x1a8] sm:$0xff]
      %v3992 = vld [vmem:[%s13 + $0x1b0] sm:$0xff]
      %v3993 = vld [vmem:[%s13 + $0x1b8] sm:$0xff]
      %v3994 = vld [vmem:[%s13 + $0x1c0] sm:$0xff]
      %v3995 = vld [vmem:[%s13 + $0x1c8] sm:$0xff]
      %v3996 = vld [vmem:[%s13 + $0x1d0] sm:$0xff]
      %v3997 = vld [vmem:[%s13 + $0x1d8] sm:$0xff]
      %v3998 = vld [vmem:[%s13 + $0x1e0] sm:$0xff]
      %v3999 = vld [vmem:[%s13 + $0x1e8] sm:$0xff]
      %v4000 = vld [vmem:[%s13 + $0x1f0] sm:$0xff]
      %v4001 = vld [vmem:[%s13 + $0x1f8] sm:$0xff]
      %4002 = vmatpush.msra.mxu0 %v3953
      %4003 = vmatpush.msra.mxu0 %v3952
      %4004 = vmatpush.msra.mxu0 %v3951
      %4005 = vmatpush.msra.mxu0 %v3950
      %4006 = vmatpush.msra.mxu0 %v3949
      %4007 = vmatpush.msra.mxu0 %v3948
      %4008 = vmatpush.msra.mxu0 %v3947
      %4009 = vmatpush.msra.mxu0 %v3946
      %4010 = vmatpush.msra.mxu0 %v3945
      %4011 = vmatpush.msra.mxu0 %v3944
      %4012 = vmatpush.msra.mxu0 %v3943
      %4013 = vmatpush.msra.mxu0 %v3942
      %4014 = vmatpush.msra.mxu0 %v3941
      %4015 = vmatpush.msra.mxu0 %v3940
      %4016 = vmatpush.msra.mxu0 %v3939
      %4017 = vmatpush.msra.mxu0 %v3938
      %4018 = vmatmul.f32.gmra.mxu0 %v3850
      %v4019 = vpop.f32.mrf.mxu0
      %v4020 = vadd.f32 0.0, %v4019
      %4021 = vmatmul.f32.gmra.mxu0 %v3852
      %v4022 = vpop.f32.mrf.mxu0
      %v4023 = vadd.f32 0.0, %v4022
      %4024 = vdwg.mxu0
      %4025 = vmatpush.msra.mxu0 %v3969
      %4026 = vmatpush.msra.mxu0 %v3968
      %4027 = vmatpush.msra.mxu0 %v3967
      %4028 = vmatpush.msra.mxu0 %v3966
      %4029 = vmatpush.msra.mxu0 %v3965
      %4030 = vmatpush.msra.mxu0 %v3964
      %4031 = vmatpush.msra.mxu0 %v3963
      %4032 = vmatpush.msra.mxu0 %v3962
      %4033 = vmatpush.msra.mxu0 %v3961
      %4034 = vmatpush.msra.mxu0 %v3960
      %4035 = vmatpush.msra.mxu0 %v3959
      %4036 = vmatpush.msra.mxu0 %v3958
      %4037 = vmatpush.msra.mxu0 %v3957
      %4038 = vmatpush.msra.mxu0 %v3956
      %4039 = vmatpush.msra.mxu0 %v3955
      %4040 = vmatpush.msra.mxu0 %v3954
      %4041 = vmatmul.f32.gmra.mxu0 %v3878
      %v4042 = vpop.f32.mrf.mxu0
      %v4043 = vadd.f32 %v4020, %v4042
      %4044 = vmatmul.f32.gmra.mxu0 %v3880
      %v4045 = vpop.f32.mrf.mxu0
      %v4046 = vadd.f32 %v4023, %v4045
      %4047 = vdwg.mxu0
      %4048 = vmatpush.msra.mxu0 %v3985
      %4049 = vmatpush.msra.mxu0 %v3984
      %4050 = vmatpush.msra.mxu0 %v3983
      %4051 = vmatpush.msra.mxu0 %v3982
      %4052 = vmatpush.msra.mxu0 %v3981
      %4053 = vmatpush.msra.mxu0 %v3980
      %4054 = vmatpush.msra.mxu0 %v3979
      %4055 = vmatpush.msra.mxu0 %v3978
      %4056 = vmatpush.msra.mxu0 %v3977
      %4057 = vmatpush.msra.mxu0 %v3976
      %4058 = vmatpush.msra.mxu0 %v3975
      %4059 = vmatpush.msra.mxu0 %v3974
      %4060 = vmatpush.msra.mxu0 %v3973
      %4061 = vmatpush.msra.mxu0 %v3972
      %4062 = vmatpush.msra.mxu0 %v3971
      %4063 = vmatpush.msra.mxu0 %v3970
      %4064 = vmatmul.f32.gmra.mxu0 %v3906
      %v4065 = vpop.f32.mrf.mxu0
      %v4066 = vadd.f32 %v4043, %v4065
      %4067 = vmatmul.f32.gmra.mxu0 %v3908
      %v4068 = vpop.f32.mrf.mxu0
      %v4069 = vadd.f32 %v4046, %v4068
      %4070 = vdwg.mxu0
      %4071 = vmatpush.msra.mxu0 %v4001
      %4072 = vmatpush.msra.mxu0 %v4000
      %4073 = vmatpush.msra.mxu0 %v3999
      %4074 = vmatpush.msra.mxu0 %v3998
      %4075 = vmatpush.msra.mxu0 %v3997
      %4076 = vmatpush.msra.mxu0 %v3996
      %4077 = vmatpush.msra.mxu0 %v3995
      %4078 = vmatpush.msra.mxu0 %v3994
      %4079 = vmatpush.msra.mxu0 %v3993
      %4080 = vmatpush.msra.mxu0 %v3992
      %4081 = vmatpush.msra.mxu0 %v3991
      %4082 = vmatpush.msra.mxu0 %v3990
      %4083 = vmatpush.msra.mxu0 %v3989
      %4084 = vmatpush.msra.mxu0 %v3988
      %4085 = vmatpush.msra.mxu0 %v3987
      %4086 = vmatpush.msra.mxu0 %v3986
      %4087 = vmatmul.f32.gmra.mxu0 %v3934
      %v4088 = vpop.f32.mrf.mxu0
      %v4089 = vadd.f32 %v4066, %v4088
      %4090 = vmatmul.f32.gmra.mxu0 %v3936
      %v4091 = vpop.f32.mrf.mxu0
      %v4092 = vadd.f32 %v4069, %v4091
      %4093 = vdwg.mxu0
      %4094 = vst [vmem:[%s507] sm:$0xff] %v4089
      %4095 = vst [vmem:[%s507 + $0x8] sm:$0xff] %v4092
      %p4096 = scmp.lt.s32.totalorder %s27, 1
      %s4097 = scalar_select %p4096, %s27, 1
      %s4098 = smul.addr %s4097, 8
      %s4099 = smul.addr %s4098, 8
      %s4100 = scalar_lea.vmem %s14, %s4099
      %p4101 = scmp.lt.s32.totalorder %s27, 1
      %s4102 = scalar_select %p4101, %s27, 1
      %s4103 = smul.addr %s4102, 2
      %s4104 = smul.addr %s4103, 8
      %s4105 = scalar_lea.vmem %s15, %s4104
      // Predicated region
      $region77: #{_lambda_.1} parent=75 // pred_check
        %p4106 = pneg %p344
      $region78: #{_lambda_.1} parent=75 // pred_check_branch
        %4108 = sbr.rel (%p4106) target = $region80
      $region79: #{_lambda_.1} parent=75 // pred_region
        _
      $region80: #{_lambda_.1} parent=75 // pred_fallthru
        _
      // Predicated region
      $region81: #{_lambda_.1} parent=75 // pred_check
        %p4109 = pneg %p370
      $region82: #{_lambda_.1} parent=75 // pred_check_branch
        %4111 = sbr.rel (%p4109) target = $region84
      $region83: #{_lambda_.1} parent=75 // pred_region
        _
      $region84: #{_lambda_.1} parent=75 // pred_fallthru
        _
    $region76: #{_lambda_.1} parent=5 // pred_fallthru
      _
    %p4112 = scmp.le.s32.totalorder 2, %s22
    // Predicated region
    $region85: #{_lambda_.1} parent=5 // pred_check
      %p4113 = pneg %p4112
    $region86: #{_lambda_.1} parent=5 // pred_check_branch
      %4115 = sbr.rel (%p4113) target = $region88
    $region87: #{_lambda_.1} parent=5 // pred_region
      %s4116 = ssub.s32 %s22, 2
      // Predicated region
      $region89: #{_lambda_.1} parent=87 // pred_check
        %p4117 = pneg %p350
      $region90: #{_lambda_.1} parent=87 // pred_check_branch
        %4119 = sbr.rel (%p4117) target = $region92
      $region91: #{_lambda_.1} parent=87 // pred_region
        %p4120 = scmp.lt.s32.totalorder %s28, 1
        %s4121 = scalar_select %p4120, %s28, 1
        %s4122 = smul.addr %s4121, 8
        %s4123 = smul.addr %s4122, 8
        %s4124 = scalar_lea.vmem %s14, %s4123
      $region92: #{_lambda_.1} parent=87 // pred_fallthru
        _
      // Predicated region
      $region93: #{_lambda_.1} parent=87 // pred_check
        %p4125 = pneg %p376
      $region94: #{_lambda_.1} parent=87 // pred_check_branch
        %4127 = sbr.rel (%p4125) target = $region96
      $region95: #{_lambda_.1} parent=87 // pred_region
        %p4128 = scmp.lt.s32.totalorder %s28, 1
        %s4129 = scalar_select %p4128, %s28, 1
        %s4130 = smul.addr %s4129, 2
        %s4131 = smul.addr %s4130, 8
        %s4132 = scalar_lea.vmem %s15, %s4131
      $region96: #{_lambda_.1} parent=87 // pred_fallthru
        _
    $region88: #{_lambda_.1} parent=5 // pred_fallthru
      _
  $region6: #{_lambda_.1} parent=0 // loop_footer
    %s26 = sadd.s32 1, %s22
  $region7: #{_lambda_.1} parent=0 // loop_footer_branch
    %21 = sbr.rel target = $region3
  $region8: #{_lambda_.1} parent=0 // loop_exit
    _

</llo_original>
